<compile_context>
chip_gen: v5e
topology: v5e:2x2
jax: 0.10.0
libtpu: 0.0.40
codegen_flags: <defaults>
</compile_context>

<pallas_src>
import functools
import math

import jax
import jax.numpy as jnp
from jax import lax
from jax.experimental import pallas as pl
from jax.experimental.pallas import tpu as pltpu

_LANE = 128
_SUBLANE = 8
_NEG_INF = -1e30  # finite "-inf" for padded vocab columns (exp underflows to 0)


def _round_up(x, m):
    return (x + m - 1) // m * m


# ---------------------------------------------------------------------------
# Kernel
# ---------------------------------------------------------------------------
def attention_speller_kernel(
    inputs_ref,     # (T_tile, B, E)
    h0_ref,         # (2, B, H)
    c0_ref,         # (2, B, H)
    listener_ref,   # (B, L, H)  batch-major for sublane packing / lane-axis softmax
    w1_ref,         # (E+H, G1p) fused [x|h]->4H gate weight, layer 1 (LSTMCell)
    b1_ref,         # (1, G1p)
    w2_ref,         # (2H, G2p)  fused [ctx|h]->4H gate weight, layer 2 (LSTM)
    b2_ref,         # (1, G2p)
    w_lin_ref,      # (H, Vp)
    b_lin_ref,      # (1, Vp)    padded vocab columns hold -1e30
    out_ref,        # (T_tile*B, Vp) flat (time, batch) rows -> lane-dense store
    carry_ref,      # VMEM scratch (4, B, H): h1, c1, h2, c2 (persists across grid)
    h2_slab_ref,    # VMEM scratch (T_tile*B, H)
    *,
    attn_approx_reciprocal: bool,
):
    t_tile, B, _ = inputs_ref.shape
    H = h0_ref.shape[-1]
    cdt = w1_ref.dtype  # matmul operand dtype (f32 or bf16)

    # ---- initialise the recurrent carry on the first time-tile only ----
    @pl.when(pl.program_id(0) == 0)
    def _init():
        carry_ref[0] = h0_ref[0]
        carry_ref[1] = c0_ref[0]
        carry_ref[2] = h0_ref[1]
        carry_ref[3] = c0_ref[1]

    # ---- hoist weight loads / bias broadcasts out of the serial time loop ----
    listener = listener_ref[...]                                  # (B, L, H) f32
    w1 = w1_ref[...]
    w2 = w2_ref[...]
    b1 = jnp.broadcast_to(b1_ref[...], (B, b1_ref.shape[-1]))
    b2 = jnp.broadcast_to(b2_ref[...], (B, b2_ref.shape[-1]))

    def lstm_step(x, h, c, w_cat, b_cat):
        # One fused MXU matmul: [x | h] @ W_cat -> (B, 4H[pad]); gate order i, f, g, o.
        xh = jnp.concatenate([x, h], axis=-1).astype(cdt)
        gates = jnp.dot(xh, w_cat, preferred_element_type=jnp.float32) + b_cat
        # Packed transcendentals: 2 full-vreg EUP pushes instead of 4 quarter-lane.
        sig = jax.nn.sigmoid(gates)
        th = jnp.tanh(gates)
        i = sig[:, 0 * H:1 * H]
        f = sig[:, 1 * H:2 * H]
        g = th[:, 2 * H:3 * H]
        o = sig[:, 3 * H:4 * H]
        c_new = f * c + i * g
        h_new = o * jnp.tanh(c_new)
        return h_new, c_new

    def step(t, carry):
        h1, c1, h2, c2 = carry
        x = inputs_ref[t]                                          # (B, E)

        # ---- layer 1: LSTMCell ----
        h1, c1 = lstm_step(x, h1, c1, w1, b1)

        # ---- attention (VPU multiply + reduces, softmax over lane axis L) ----
        # TODO(synk): stream listener in L-chunks with an online softmax for long L.
        e = jnp.sum(listener * h1[:, None, :], axis=-1)            # (B, L)
        m = jnp.max(e, axis=-1, keepdims=True)
        p = jnp.exp(e - m)
        denom = jnp.sum(p, axis=-1, keepdims=True)
        a = p * pl.reciprocal(denom, approx=attn_approx_reciprocal)
        ctx = jnp.sum(a[:, :, None] * listener, axis=1)            # (B, H)

        # ---- layer 2: LSTM (sequential, fused into the same loop) ----
        h2, c2 = lstm_step(ctx, h2, c2, w2, b2)

        # stage h2 into the flat slab (tile-aligned row block, B is a multiple of 8)
        start = pl.multiple_of(t * B, _SUBLANE)
        h2_slab_ref[pl.ds(start, B), :] = h2
        return (h1, c1, h2, c2)

    carry0 = (carry_ref[0], carry_ref[1], carry_ref[2], carry_ref[3])
    h1, c1, h2, c2 = lax.fori_loop(0, t_tile, step, carry0,
                                   unroll=min(t_tile, 8))

    # persist recurrent state for the next time-tile
    carry_ref[0] = h1
    carry_ref[1] = c1
    carry_ref[2] = h2
    carry_ref[3] = c2

    # ---- hoisted vocab projection + softmax: one matmul, lane-dense (Vp) store ----
    logits = (jnp.dot(h2_slab_ref[...].astype(cdt), w_lin_ref[...],
                      preferred_element_type=jnp.float32)
              + b_lin_ref[...])                                    # (T_tile*B, Vp)
    m = jnp.max(logits, axis=-1, keepdims=True)
    p = jnp.exp(logits - m)
    probs = p * pl.reciprocal(jnp.sum(p, axis=-1, keepdims=True), approx=False)
    out_ref[...] = probs.astype(out_ref.dtype)


# ---------------------------------------------------------------------------
# Wrapper
# ---------------------------------------------------------------------------
def attention_speller(inputs, h0, c0, listener_outputs, params, *,
                      t_tile=None, compute_dtype=jnp.float32,
                      attn_approx_reciprocal=True, vocab_size=None):
    """inputs (T,B,E); h0/c0 (2,B,H); listener_outputs (L,B,H) -> (T,B,V) softmax."""
    T, B, E = inputs.shape
    H = h0.shape[-1]
    Vp = params["w_lin"].shape[-1]

    if t_tile is None:
        t_tile = T
    assert T % t_tile == 0, (T, t_tile)
    grid = (T // t_tile,)

    # Pad batch to a multiple of 8 (full sublane tiles, aligned slab stores).
    Bp = _round_up(B, _SUBLANE)
    if Bp != B:
        pad_b = ((0, 0), (0, Bp - B), (0, 0))
        inputs = jnp.pad(inputs, pad_b)
        h0 = jnp.pad(h0, pad_b)
        c0 = jnp.pad(c0, pad_b)
        listener_outputs = jnp.pad(listener_outputs, pad_b)

    # (L, B, H) -> (B, L, H): one wrapper-side transpose so per-step attention works
    # on per-batch (L, H) tiles and the softmax reduces over the lane axis.
    listener_blh = jnp.transpose(listener_outputs, (1, 0, 2))

    cast = lambda w: w.astype(compute_dtype)
    args = (
        inputs, h0, c0, listener_blh,
        cast(params["w1"]), params["b1"],
        cast(params["w2"]), params["b2"],
        cast(params["w_lin"]), params["b_lin"],
    )

    # Constant-index inputs (state / listener / weights / biases): single-buffered.
    def const_spec(x):
        idx_map = lambda t, _z=(0,) * x.ndim: _z
        if hasattr(pl, "Buffered"):
            try:
                return pl.BlockSpec(x.shape, idx_map, pipeline_mode=pl.Buffered(1))
            except TypeError:
                pass
        return pl.BlockSpec(x.shape, idx_map)

    in_specs = (
        [pl.BlockSpec((t_tile, Bp, E), lambda t: (t, 0, 0))]   # inputs: tiled over T
        + [const_spec(a) for a in args[1:]]
    )
    out_specs = pl.BlockSpec((t_tile * Bp, Vp), lambda t: (t, 0))

    # VMEM budget: 2x pipelined tiles (inputs/outputs), 1x constants, scratch.
    it = 4
    est = (2 * t_tile * Bp * E * it
           + 2 * t_tile * Bp * Vp * it
           + sum(int(math.prod(a.shape)) * a.dtype.itemsize for a in args[1:])
           + (4 * Bp * H + t_tile * Bp * H) * it)
    vmem_limit = int(min(max(est * 1.5, 32 * 2**20), 64 * 2**20))

    grid_spec = pltpu.PrefetchScalarGridSpec(
        num_scalar_prefetch=0,
        grid=grid,
        in_specs=in_specs,
        out_specs=out_specs,
        scratch_shapes=[
            pltpu.VMEM((4, Bp, H), jnp.float32),            # h1, c1, h2, c2 carry
            pltpu.VMEM((t_tile * Bp, H), jnp.float32),      # per-tile flat h2 slab
        ],
    )

    kernel = functools.partial(attention_speller_kernel,
                               attn_approx_reciprocal=attn_approx_reciprocal)

    out_flat = pl.pallas_call(
        kernel,
        out_shape=jax.ShapeDtypeStruct((T * Bp, Vp), jnp.float32),
        grid_spec=grid_spec,
        compiler_params=pltpu.CompilerParams(
            dimension_semantics=("arbitrary",),             # time recurrence is serial
            vmem_limit_bytes=vmem_limit,
        ),
    )(*args)

    out = out_flat.reshape(T, Bp, Vp)[:, :B, :]
    if vocab_size is not None and vocab_size != Vp:
        out = out[..., :vocab_size]
    return out


# ---------------------------------------------------------------------------
# Parameter preparation (from PyTorch-style tensors) and pure-JAX reference
# ---------------------------------------------------------------------------
def prepare_params(pt, hidden_size):
    """PyTorch-layout weights -> fused, lane-padded kernel layout."""
    H = hidden_size
    V = pt["linear.weight"].shape[0]
    G = 4 * H
    Gp = _round_up(G, _LANE)

    def fuse_gate(w_ih, w_hh, b_ih, b_hh):
        # gates = [x | h] @ W_cat + b, with W_cat = [w_ih^T ; w_hh^T] of shape (in+H, 4H)
        w = jnp.concatenate([w_ih.T, w_hh.T], axis=0)
        b = (b_ih + b_hh).reshape(1, G)
        if Gp != G:
            w = jnp.pad(w, ((0, 0), (0, Gp - G)))
            b = jnp.pad(b, ((0, 0), (0, Gp - G)))
        return w, b

    w1, b1 = fuse_gate(pt["lstm1.weight_ih"], pt["lstm1.weight_hh"],
                       pt["lstm1.bias_ih"], pt["lstm1.bias_hh"])
    w2, b2 = fuse_gate(pt["lstm2.weight_ih_l0"], pt["lstm2.weight_hh_l0"],
                       pt["lstm2.bias_ih_l0"], pt["lstm2.bias_hh_l0"])

    Vp = _round_up(V, _LANE)
    w_lin = pt["linear.weight"].T                              # (H, V)
    b_lin = pt["linear.bias"].reshape(1, V)
    if Vp != V:
        w_lin = jnp.pad(w_lin, ((0, 0), (0, Vp - V)))
        b_lin = jnp.pad(b_lin, ((0, 0), (0, Vp - V)), constant_values=_NEG_INF)

    return dict(w1=w1, b1=b1, w2=w2, b2=b2, w_lin=w_lin, b_lin=b_lin)


def _ref_lstm_step(x, h, c, w_ih, w_hh, b_ih, b_hh):
    gates = x @ w_ih.T + h @ w_hh.T + b_ih + b_hh
    i, f, g, o = jnp.split(gates, 4, axis=-1)
    i = jax.nn.sigmoid(i)
    f = jax.nn.sigmoid(f)
    g = jnp.tanh(g)
    o = jax.nn.sigmoid(o)
    c_new = f * c + i * g
    return o * jnp.tanh(c_new), c_new


def reference(inputs, h0, c0, listener, pt):
    """Pure-JAX re-implementation of the PyTorch AttentionSpeller forward."""
    T = inputs.shape[0]
    h1, c1 = h0[0], c0[0]
    h2, c2 = h0[1], c0[1]
    ctxs = []
    for t in range(T):
        h1, c1 = _ref_lstm_step(inputs[t], h1, c1,
                                pt["lstm1.weight_ih"], pt["lstm1.weight_hh"],
                                pt["lstm1.bias_ih"], pt["lstm1.bias_hh"])
        e = jnp.einsum('lbh,bh->bl', listener, h1)
        a = jax.nn.softmax(e, axis=-1)
        ctxs.append(jnp.einsum('bl,lbh->bh', a, listener))
    outs = []
    for t in range(T):
        h2, c2 = _ref_lstm_step(ctxs[t], h2, c2,
                                pt["lstm2.weight_ih_l0"], pt["lstm2.weight_hh_l0"],
                                pt["lstm2.bias_ih_l0"], pt["lstm2.bias_hh_l0"])
        logits = h2 @ pt["linear.weight"].T + pt["linear.bias"]
        outs.append(jax.nn.softmax(logits, axis=-1))
    return jnp.stack(outs, axis=0)


# ---------------------------------------------------------------------------
# Test
# ---------------------------------------------------------------------------
if __name__ == "__main__":
    # T=seq, B=batch, E=embed, H=hidden, V=vocab, L=listener seq
    T, B, E, H, V, L = 8, 2, 16, 32, 16, 10

    key = jax.random.PRNGKey(0)
    ks = iter(jax.random.split(key, 20))
    scale = 1.0 / math.sqrt(H)

    def u(shape):
        return jax.random.uniform(next(ks), shape, jnp.float32, -scale, scale)

    pt = {
        "lstm1.weight_ih": u((4 * H, E)),
        "lstm1.weight_hh": u((4 * H, H)),
        "lstm1.bias_ih": u((4 * H,)),
        "lstm1.bias_hh": u((4 * H,)),
        "lstm2.weight_ih_l0": u((4 * H, H)),
        "lstm2.weight_hh_l0": u((4 * H, H)),
        "lstm2.bias_ih_l0": u((4 * H,)),
        "lstm2.bias_hh_l0": u((4 * H,)),
        "linear.weight": u((V, H)),
        "linear.bias": u((V,)),
    }
    params = prepare_params(pt, H)

    inputs = jax.random.normal(next(ks), (T, B, E), jnp.float32)
    h0 = jax.random.normal(next(ks), (2, B, H), jnp.float32)
    c0 = jax.random.normal(next(ks), (2, B, H), jnp.float32)
    listener_outputs = jax.random.normal(next(ks), (L, B, H), jnp.float32)

    # f32 run, gridded over T (t_tile=4 -> grid of 2, exercising the carry scratch).
    run_f32 = jax.jit(functools.partial(attention_speller, t_tile=4, vocab_size=V))
    out = jax.block_until_ready(run_f32(inputs, h0, c0, listener_outputs, params))

    assert out.shape == (T, B, V), out.shape
    # output softmax rows must sum to 1 (exact reciprocal, padded vocab cols get 0)
    assert bool(jnp.allclose(jnp.sum(out, axis=-1), 1.0, atol=1e-4))
    # compare against the pure-JAX reference (loose tol: approx EUP reciprocal inside
    # the per-step attention softmax)
    ref = reference(inputs, h0, c0, listener_outputs, pt)
    err = float(jnp.max(jnp.abs(out - ref)))
    assert err < 2e-2, err

    # bf16-weight path (MXU-friendly on v5e/v6e/v7x): smoke test
    run_bf16 = jax.jit(functools.partial(attention_speller, t_tile=4, vocab_size=V,
                                         compute_dtype=jnp.bfloat16))
    out_b = jax.block_until_ready(run_bf16(inputs, h0, c0, listener_outputs, params))
    assert out_b.shape == (T, B, V)
    assert bool(jnp.allclose(jnp.sum(out_b, axis=-1), 1.0, atol=1e-3))
    assert bool(jnp.allclose(out_b, ref, atol=5e-2))

    print("KERNEL_OK")
</pallas_src>

<mosaic_0001>
module attributes {stable_mosaic.version = 11 : i64} {
  func.func @attention_speller_kernel(%arg0: i32, %arg1: memref<4x8x16xf32, #tpu.memory_space<vmem>>, %arg2: memref<2x8x32xf32, #tpu.memory_space<vmem>>, %arg3: memref<2x8x32xf32, #tpu.memory_space<vmem>>, %arg4: memref<8x10x32xf32, #tpu.memory_space<vmem>>, %arg5: memref<48x128xf32, #tpu.memory_space<vmem>>, %arg6: memref<1x128xf32, #tpu.memory_space<vmem>>, %arg7: memref<64x128xf32, #tpu.memory_space<vmem>>, %arg8: memref<1x128xf32, #tpu.memory_space<vmem>>, %arg9: memref<32x128xf32, #tpu.memory_space<vmem>>, %arg10: memref<1x128xf32, #tpu.memory_space<vmem>>, %arg11: memref<32x128xf32, #tpu.memory_space<vmem>>, %arg12: memref<4x8x32xf32, #tpu.memory_space<vmem>>, %arg13: memref<32x32xf32, #tpu.memory_space<vmem>>) attributes {dimension_semantics = [#tpu.dimension_semantics<arbitrary>], iteration_bounds = array<i64: 2>, scalar_prefetch = 0 : i64, scratch_operands = 2 : i64, tpu.core_type = #tpu.core_type<tc>, window_params = [{transform_indices = @transform_0, window_bounds = array<i64: 4, 8, 16>}, {pipeline_mode = #tpu.pipeline_mode<synchronous>, transform_indices = @transform_1, window_bounds = array<i64: 2, 8, 32>}, {pipeline_mode = #tpu.pipeline_mode<synchronous>, transform_indices = @transform_2, window_bounds = array<i64: 2, 8, 32>}, {pipeline_mode = #tpu.pipeline_mode<synchronous>, transform_indices = @transform_3, window_bounds = array<i64: 8, 10, 32>}, {pipeline_mode = #tpu.pipeline_mode<synchronous>, transform_indices = @transform_4, window_bounds = array<i64: 48, 128>}, {pipeline_mode = #tpu.pipeline_mode<synchronous>, transform_indices = @transform_5, window_bounds = array<i64: 1, 128>}, {pipeline_mode = #tpu.pipeline_mode<synchronous>, transform_indices = @transform_6, window_bounds = array<i64: 64, 128>}, {pipeline_mode = #tpu.pipeline_mode<synchronous>, transform_indices = @transform_7, window_bounds = array<i64: 1, 128>}, {pipeline_mode = #tpu.pipeline_mode<synchronous>, transform_indices = @transform_8, window_bounds = array<i64: 32, 128>}, {pipeline_mode = #tpu.pipeline_mode<synchronous>, transform_indices = @transform_9, window_bounds = array<i64: 1, 128>}, {transform_indices = @transform_10, window_bounds = array<i64: 32, 128>}]} {
    %c0_i32 = arith.constant 0 : i32
    %0 = arith.cmpi eq, %arg0, %c0_i32 : i32
    %1 = arith.extui %0 : i1 to i32
    %c0_i32_0 = arith.constant 0 : i32
    %2 = arith.cmpi ne, %1, %c0_i32_0 : i32
    scf.if %2 {
      %c0_90 = arith.constant 0 : index
      %c0_91 = arith.constant 0 : index
      %c0_92 = arith.constant 0 : index
      %293 = vector.load %arg2[%c0_90, %c0_91, %c0_92] : memref<2x8x32xf32, #tpu.memory_space<vmem>>, vector<1x8x32xf32>
      %294 = vector.shape_cast %293 : vector<1x8x32xf32> to vector<8x32xf32>
      %c0_93 = arith.constant 0 : index
      %c0_94 = arith.constant 0 : index
      %c0_95 = arith.constant 0 : index
      %295 = vector.load %arg12[%c0_93, %c0_94, %c0_95] : memref<4x8x32xf32, #tpu.memory_space<vmem>>, vector<1x8x32xf32>
      %296 = vector.shape_cast %295 : vector<1x8x32xf32> to vector<8x32xf32>
      %297 = vector.shape_cast %294 : vector<8x32xf32> to vector<1x8x32xf32>
      tpu.vector_store %arg12[%c0_93, %c0_94, %c0_95], %297 {strides = array<i32>} : memref<4x8x32xf32, #tpu.memory_space<vmem>>, vector<1x8x32xf32>,
      %c0_96 = arith.constant 0 : index
      %c0_97 = arith.constant 0 : index
      %c0_98 = arith.constant 0 : index
      %298 = vector.load %arg3[%c0_96, %c0_97, %c0_98] : memref<2x8x32xf32, #tpu.memory_space<vmem>>, vector<1x8x32xf32>
      %299 = vector.shape_cast %298 : vector<1x8x32xf32> to vector<8x32xf32>
      %c1_99 = arith.constant 1 : index
      %c0_100 = arith.constant 0 : index
      %c0_101 = arith.constant 0 : index
      %300 = vector.load %arg12[%c1_99, %c0_100, %c0_101] : memref<4x8x32xf32, #tpu.memory_space<vmem>>, vector<1x8x32xf32>
      %301 = vector.shape_cast %300 : vector<1x8x32xf32> to vector<8x32xf32>
      %302 = vector.shape_cast %299 : vector<8x32xf32> to vector<1x8x32xf32>
      tpu.vector_store %arg12[%c1_99, %c0_100, %c0_101], %302 {strides = array<i32>} : memref<4x8x32xf32, #tpu.memory_space<vmem>>, vector<1x8x32xf32>,
      %c1_102 = arith.constant 1 : index
      %c0_103 = arith.constant 0 : index
      %c0_104 = arith.constant 0 : index
      %303 = vector.load %arg2[%c1_102, %c0_103, %c0_104] : memref<2x8x32xf32, #tpu.memory_space<vmem>>, vector<1x8x32xf32>
      %304 = vector.shape_cast %303 : vector<1x8x32xf32> to vector<8x32xf32>
      %c2_105 = arith.constant 2 : index
      %c0_106 = arith.constant 0 : index
      %c0_107 = arith.constant 0 : index
      %305 = vector.load %arg12[%c2_105, %c0_106, %c0_107] : memref<4x8x32xf32, #tpu.memory_space<vmem>>, vector<1x8x32xf32>
      %306 = vector.shape_cast %305 : vector<1x8x32xf32> to vector<8x32xf32>
      %307 = vector.shape_cast %304 : vector<8x32xf32> to vector<1x8x32xf32>
      tpu.vector_store %arg12[%c2_105, %c0_106, %c0_107], %307 {strides = array<i32>} : memref<4x8x32xf32, #tpu.memory_space<vmem>>, vector<1x8x32xf32>,
      %c1_108 = arith.constant 1 : index
      %c0_109 = arith.constant 0 : index
      %c0_110 = arith.constant 0 : index
      %308 = vector.load %arg3[%c1_108, %c0_109, %c0_110] : memref<2x8x32xf32, #tpu.memory_space<vmem>>, vector<1x8x32xf32>
      %309 = vector.shape_cast %308 : vector<1x8x32xf32> to vector<8x32xf32>
      %c3_111 = arith.constant 3 : index
      %c0_112 = arith.constant 0 : index
      %c0_113 = arith.constant 0 : index
      %310 = vector.load %arg12[%c3_111, %c0_112, %c0_113] : memref<4x8x32xf32, #tpu.memory_space<vmem>>, vector<1x8x32xf32>
      %311 = vector.shape_cast %310 : vector<1x8x32xf32> to vector<8x32xf32>
      %312 = vector.shape_cast %309 : vector<8x32xf32> to vector<1x8x32xf32>
      tpu.vector_store %arg12[%c3_111, %c0_112, %c0_113], %312 {strides = array<i32>} : memref<4x8x32xf32, #tpu.memory_space<vmem>>, vector<1x8x32xf32>,
    } else {
    }
    %c0 = arith.constant 0 : index
    %c0_1 = arith.constant 0 : index
    %c0_2 = arith.constant 0 : index
    %3 = vector.load %arg4[%c0, %c0_1, %c0_2] : memref<8x10x32xf32, #tpu.memory_space<vmem>>, vector<8x10x32xf32>
    %c0_3 = arith.constant 0 : index
    %c0_4 = arith.constant 0 : index
    %4 = vector.load %arg5[%c0_3, %c0_4] : memref<48x128xf32, #tpu.memory_space<vmem>>, vector<48x128xf32>
    %c0_5 = arith.constant 0 : index
    %c0_6 = arith.constant 0 : index
    %5 = vector.load %arg7[%c0_5, %c0_6] : memref<64x128xf32, #tpu.memory_space<vmem>>, vector<64x128xf32>
    %c0_7 = arith.constant 0 : index
    %c0_8 = arith.constant 0 : index
    %6 = vector.load %arg6[%c0_7, %c0_8] : memref<1x128xf32, #tpu.memory_space<vmem>>, vector<1x128xf32>
    %7 = vector.shape_cast %6 : vector<1x128xf32> to vector<1x128xf32>
    %8 = vector.broadcast %7 : vector<1x128xf32> to vector<8x128xf32>
    %c0_9 = arith.constant 0 : index
    %c0_10 = arith.constant 0 : index
    %9 = vector.load %arg8[%c0_9, %c0_10] : memref<1x128xf32, #tpu.memory_space<vmem>>, vector<1x128xf32>
    %10 = vector.shape_cast %9 : vector<1x128xf32> to vector<1x128xf32>
    %11 = vector.broadcast %10 : vector<1x128xf32> to vector<8x128xf32>
    %c0_11 = arith.constant 0 : index
    %c0_12 = arith.constant 0 : index
    %c0_13 = arith.constant 0 : index
    %12 = vector.load %arg12[%c0_11, %c0_12, %c0_13] : memref<4x8x32xf32, #tpu.memory_space<vmem>>, vector<1x8x32xf32>
    %13 = vector.shape_cast %12 : vector<1x8x32xf32> to vector<8x32xf32>
    %c1 = arith.constant 1 : index
    %c0_14 = arith.constant 0 : index
    %c0_15 = arith.constant 0 : index
    %14 = vector.load %arg12[%c1, %c0_14, %c0_15] : memref<4x8x32xf32, #tpu.memory_space<vmem>>, vector<1x8x32xf32>
    %15 = vector.shape_cast %14 : vector<1x8x32xf32> to vector<8x32xf32>
    %c2 = arith.constant 2 : index
    %c0_16 = arith.constant 0 : index
    %c0_17 = arith.constant 0 : index
    %16 = vector.load %arg12[%c2, %c0_16, %c0_17] : memref<4x8x32xf32, #tpu.memory_space<vmem>>, vector<1x8x32xf32>
    %17 = vector.shape_cast %16 : vector<1x8x32xf32> to vector<8x32xf32>
    %c3 = arith.constant 3 : index
    %c0_18 = arith.constant 0 : index
    %c0_19 = arith.constant 0 : index
    %18 = vector.load %arg12[%c3, %c0_18, %c0_19] : memref<4x8x32xf32, #tpu.memory_space<vmem>>, vector<1x8x32xf32>
    %19 = vector.shape_cast %18 : vector<1x8x32xf32> to vector<8x32xf32>
    %c0_i32_20 = arith.constant 0 : i32
    %20 = arith.index_cast %c0_i32_20 : i32 to index
    %c0_21 = arith.constant 0 : index
    %c0_22 = arith.constant 0 : index
    %21 = vector.load %arg1[%20, %c0_21, %c0_22] : memref<4x8x16xf32, #tpu.memory_space<vmem>>, vector<1x8x16xf32>
    %22 = vector.shape_cast %21 : vector<1x8x16xf32> to vector<8x16xf32>
    %23 = tpu.concatenate %22, %13 in 1 : vector<8x16xf32>, vector<8x32xf32> -> vector<8x48xf32>
    %cst = arith.constant dense<0.000000e+00> : vector<8x128xf32>
    %24 = tpu.matmul %23, %4, %cst {dimension_numbers = #tpu.dot_dimension_numbers<[1], [0], [0], [1], [0, 0, 1, 1], [], []>} : vector<8x48xf32>, vector<48x128xf32>, vector<8x128xf32> -> vector<8x128xf32>
    %25 = arith.addf %24, %8 : vector<8x128xf32>
    %26 = arith.negf %25 : vector<8x128xf32>
    %27 = math.exp %26 : vector<8x128xf32>
    %cst_23 = arith.constant 1.000000e+00 : f32
    %28 = vector.broadcast %cst_23 : f32 to vector<8x128xf32>
    %29 = arith.addf %28, %27 : vector<8x128xf32>
    %30 = arith.divf %28, %29 : vector<8x128xf32>
    %31 = math.tanh %25 : vector<8x128xf32>
    %32 = vector.extract_strided_slice %30 {offsets = [0, 0], sizes = [8, 32], strides = [1, 1]} : vector<8x128xf32> to vector<8x32xf32>
    %33 = vector.extract_strided_slice %30 {offsets = [0, 32], sizes = [8, 32], strides = [1, 1]} : vector<8x128xf32> to vector<8x32xf32>
    %34 = vector.extract_strided_slice %31 {offsets = [0, 64], sizes = [8, 32], strides = [1, 1]} : vector<8x128xf32> to vector<8x32xf32>
    %35 = vector.extract_strided_slice %30 {offsets = [0, 96], sizes = [8, 32], strides = [1, 1]} : vector<8x128xf32> to vector<8x32xf32>
    %36 = arith.mulf %33, %15 : vector<8x32xf32>
    %37 = arith.mulf %32, %34 : vector<8x32xf32>
    %38 = arith.addf %36, %37 : vector<8x32xf32>
    %39 = math.tanh %38 : vector<8x32xf32>
    %40 = arith.mulf %35, %39 : vector<8x32xf32>
    %41 = vector.shape_cast %40 : vector<8x32xf32> to vector<8x1x32xf32>
    %42 = vector.broadcast %41 : vector<8x1x32xf32> to vector<8x10x32xf32>
    %43 = arith.mulf %3, %42 : vector<8x10x32xf32>
    %cst_24 = arith.constant dense<0.000000e+00> : vector<8x10xf32>
    %44 = vector.multi_reduction <add>, %43, %cst_24 [2] : vector<8x10x32xf32> to vector<8x10xf32>
    %cst_25 = arith.constant dense<0xFF800000> : vector<8xf32>
    %45 = vector.multi_reduction <maximumf>, %44, %cst_25 [1] : vector<8x10xf32> to vector<8xf32>
    %46 = vector.shape_cast %45 : vector<8xf32> to vector<8x1xf32>
    %47 = vector.broadcast %46 : vector<8x1xf32> to vector<8x10xf32>
    %48 = arith.subf %44, %47 : vector<8x10xf32>
    %49 = math.exp %48 : vector<8x10xf32>
    %cst_26 = arith.constant dense<0.000000e+00> : vector<8xf32>
    %50 = vector.multi_reduction <add>, %49, %cst_26 [1] : vector<8x10xf32> to vector<8xf32>
    %51 = vector.shape_cast %50 : vector<8xf32> to vector<8x1xf32>
    %52 = tpu.reciprocal %51 {approx = true} : vector<8x1xf32> -> vector<8x1xf32>
    %53 = vector.broadcast %52 : vector<8x1xf32> to vector<8x10xf32>
    %54 = arith.mulf %49, %53 : vector<8x10xf32>
    %55 = vector.shape_cast %54 : vector<8x10xf32> to vector<8x10x1xf32>
    %56 = vector.broadcast %55 : vector<8x10x1xf32> to vector<8x10x32xf32>
    %57 = arith.mulf %56, %3 : vector<8x10x32xf32>
    %cst_27 = arith.constant dense<0.000000e+00> : vector<8x32xf32>
    %58 = vector.multi_reduction <add>, %57, %cst_27 [1] : vector<8x10x32xf32> to vector<8x32xf32>
    %59 = tpu.concatenate %58, %17 in 1 : vector<8x32xf32>, vector<8x32xf32> -> vector<8x64xf32>
    %cst_28 = arith.constant dense<0.000000e+00> : vector<8x128xf32>
    %60 = tpu.matmul %59, %5, %cst_28 {dimension_numbers = #tpu.dot_dimension_numbers<[1], [0], [0], [1], [0, 0, 1, 1], [], []>} : vector<8x64xf32>, vector<64x128xf32>, vector<8x128xf32> -> vector<8x128xf32>
    %61 = arith.addf %60, %11 : vector<8x128xf32>
    %62 = arith.negf %61 : vector<8x128xf32>
    %63 = math.exp %62 : vector<8x128xf32>
    %cst_29 = arith.constant 1.000000e+00 : f32
    %64 = vector.broadcast %cst_29 : f32 to vector<8x128xf32>
    %65 = arith.addf %64, %63 : vector<8x128xf32>
    %66 = arith.divf %64, %65 : vector<8x128xf32>
    %67 = math.tanh %61 : vector<8x128xf32>
    %68 = vector.extract_strided_slice %66 {offsets = [0, 0], sizes = [8, 32], strides = [1, 1]} : vector<8x128xf32> to vector<8x32xf32>
    %69 = vector.extract_strided_slice %66 {offsets = [0, 32], sizes = [8, 32], strides = [1, 1]} : vector<8x128xf32> to vector<8x32xf32>
    %70 = vector.extract_strided_slice %67 {offsets = [0, 64], sizes = [8, 32], strides = [1, 1]} : vector<8x128xf32> to vector<8x32xf32>
    %71 = vector.extract_strided_slice %66 {offsets = [0, 96], sizes = [8, 32], strides = [1, 1]} : vector<8x128xf32> to vector<8x32xf32>
    %72 = arith.mulf %69, %19 : vector<8x32xf32>
    %73 = arith.mulf %68, %70 : vector<8x32xf32>
    %74 = arith.addf %72, %73 : vector<8x32xf32>
    %75 = math.tanh %74 : vector<8x32xf32>
    %76 = arith.mulf %71, %75 : vector<8x32xf32>
    %c8_i32 = arith.constant 8 : i32
    %77 = arith.muli %c0_i32_20, %c8_i32 : i32
    %78 = tpu.assume_multiple %77, 8 : i32
    %79 = arith.index_cast %78 : i32 to index
    %c0_30 = arith.constant 0 : index
    %80 = vector.load %arg13[%79, %c0_30] : memref<32x32xf32, #tpu.memory_space<vmem>>, vector<8x32xf32>
    tpu.vector_store %arg13[%79, %c0_30], %76 {strides = array<i32>} : memref<32x32xf32, #tpu.memory_space<vmem>>, vector<8x32xf32>,
    %c1_i32 = arith.constant 1 : i32
    %81 = arith.index_cast %c1_i32 : i32 to index
    %c0_31 = arith.constant 0 : index
    %c0_32 = arith.constant 0 : index
    %82 = vector.load %arg1[%81, %c0_31, %c0_32] : memref<4x8x16xf32, #tpu.memory_space<vmem>>, vector<1x8x16xf32>
    %83 = vector.shape_cast %82 : vector<1x8x16xf32> to vector<8x16xf32>
    %84 = tpu.concatenate %83, %40 in 1 : vector<8x16xf32>, vector<8x32xf32> -> vector<8x48xf32>
    %cst_33 = arith.constant dense<0.000000e+00> : vector<8x128xf32>
    %85 = tpu.matmul %84, %4, %cst_33 {dimension_numbers = #tpu.dot_dimension_numbers<[1], [0], [0], [1], [0, 0, 1, 1], [], []>} : vector<8x48xf32>, vector<48x128xf32>, vector<8x128xf32> -> vector<8x128xf32>
    %86 = arith.addf %85, %8 : vector<8x128xf32>
    %87 = arith.negf %86 : vector<8x128xf32>
    %88 = math.exp %87 : vector<8x128xf32>
    %cst_34 = arith.constant 1.000000e+00 : f32
    %89 = vector.broadcast %cst_34 : f32 to vector<8x128xf32>
    %90 = arith.addf %89, %88 : vector<8x128xf32>
    %91 = arith.divf %89, %90 : vector<8x128xf32>
    %92 = math.tanh %86 : vector<8x128xf32>
    %93 = vector.extract_strided_slice %91 {offsets = [0, 0], sizes = [8, 32], strides = [1, 1]} : vector<8x128xf32> to vector<8x32xf32>
    %94 = vector.extract_strided_slice %91 {offsets = [0, 32], sizes = [8, 32], strides = [1, 1]} : vector<8x128xf32> to vector<8x32xf32>
    %95 = vector.extract_strided_slice %92 {offsets = [0, 64], sizes = [8, 32], strides = [1, 1]} : vector<8x128xf32> to vector<8x32xf32>
    %96 = vector.extract_strided_slice %91 {offsets = [0, 96], sizes = [8, 32], strides = [1, 1]} : vector<8x128xf32> to vector<8x32xf32>
    %97 = arith.mulf %94, %38 : vector<8x32xf32>
    %98 = arith.mulf %93, %95 : vector<8x32xf32>
    %99 = arith.addf %97, %98 : vector<8x32xf32>
    %100 = math.tanh %99 : vector<8x32xf32>
    %101 = arith.mulf %96, %100 : vector<8x32xf32>
    %102 = vector.shape_cast %101 : vector<8x32xf32> to vector<8x1x32xf32>
    %103 = vector.broadcast %102 : vector<8x1x32xf32> to vector<8x10x32xf32>
    %104 = arith.mulf %3, %103 : vector<8x10x32xf32>
    %cst_35 = arith.constant dense<0.000000e+00> : vector<8x10xf32>
    %105 = vector.multi_reduction <add>, %104, %cst_35 [2] : vector<8x10x32xf32> to vector<8x10xf32>
    %cst_36 = arith.constant dense<0xFF800000> : vector<8xf32>
    %106 = vector.multi_reduction <maximumf>, %105, %cst_36 [1] : vector<8x10xf32> to vector<8xf32>
    %107 = vector.shape_cast %106 : vector<8xf32> to vector<8x1xf32>
    %108 = vector.broadcast %107 : vector<8x1xf32> to vector<8x10xf32>
    %109 = arith.subf %105, %108 : vector<8x10xf32>
    %110 = math.exp %109 : vector<8x10xf32>
    %cst_37 = arith.constant dense<0.000000e+00> : vector<8xf32>
    %111 = vector.multi_reduction <add>, %110, %cst_37 [1] : vector<8x10xf32> to vector<8xf32>
    %112 = vector.shape_cast %111 : vector<8xf32> to vector<8x1xf32>
    %113 = tpu.reciprocal %112 {approx = true} : vector<8x1xf32> -> vector<8x1xf32>
    %114 = vector.broadcast %113 : vector<8x1xf32> to vector<8x10xf32>
    %115 = arith.mulf %110, %114 : vector<8x10xf32>
    %116 = vector.shape_cast %115 : vector<8x10xf32> to vector<8x10x1xf32>
    %117 = vector.broadcast %116 : vector<8x10x1xf32> to vector<8x10x32xf32>
    %118 = arith.mulf %117, %3 : vector<8x10x32xf32>
    %cst_38 = arith.constant dense<0.000000e+00> : vector<8x32xf32>
    %119 = vector.multi_reduction <add>, %118, %cst_38 [1] : vector<8x10x32xf32> to vector<8x32xf32>
    %120 = tpu.concatenate %119, %76 in 1 : vector<8x32xf32>, vector<8x32xf32> -> vector<8x64xf32>
    %cst_39 = arith.constant dense<0.000000e+00> : vector<8x128xf32>
    %121 = tpu.matmul %120, %5, %cst_39 {dimension_numbers = #tpu.dot_dimension_numbers<[1], [0], [0], [1], [0, 0, 1, 1], [], []>} : vector<8x64xf32>, vector<64x128xf32>, vector<8x128xf32> -> vector<8x128xf32>
    %122 = arith.addf %121, %11 : vector<8x128xf32>
    %123 = arith.negf %122 : vector<8x128xf32>
    %124 = math.exp %123 : vector<8x128xf32>
    %cst_40 = arith.constant 1.000000e+00 : f32
    %125 = vector.broadcast %cst_40 : f32 to vector<8x128xf32>
    %126 = arith.addf %125, %124 : vector<8x128xf32>
    %127 = arith.divf %125, %126 : vector<8x128xf32>
    %128 = math.tanh %122 : vector<8x128xf32>
    %129 = vector.extract_strided_slice %127 {offsets = [0, 0], sizes = [8, 32], strides = [1, 1]} : vector<8x128xf32> to vector<8x32xf32>
    %130 = vector.extract_strided_slice %127 {offsets = [0, 32], sizes = [8, 32], strides = [1, 1]} : vector<8x128xf32> to vector<8x32xf32>
    %131 = vector.extract_strided_slice %128 {offsets = [0, 64], sizes = [8, 32], strides = [1, 1]} : vector<8x128xf32> to vector<8x32xf32>
    %132 = vector.extract_strided_slice %127 {offsets = [0, 96], sizes = [8, 32], strides = [1, 1]} : vector<8x128xf32> to vector<8x32xf32>
    %133 = arith.mulf %130, %74 : vector<8x32xf32>
    %134 = arith.mulf %129, %131 : vector<8x32xf32>
    %135 = arith.addf %133, %134 : vector<8x32xf32>
    %136 = math.tanh %135 : vector<8x32xf32>
    %137 = arith.mulf %132, %136 : vector<8x32xf32>
    %c8_i32_41 = arith.constant 8 : i32
    %138 = arith.muli %c1_i32, %c8_i32_41 : i32
    %139 = tpu.assume_multiple %138, 8 : i32
    %140 = arith.index_cast %139 : i32 to index
    %c0_42 = arith.constant 0 : index
    %141 = vector.load %arg13[%140, %c0_42] : memref<32x32xf32, #tpu.memory_space<vmem>>, vector<8x32xf32>
    tpu.vector_store %arg13[%140, %c0_42], %137 {strides = array<i32>} : memref<32x32xf32, #tpu.memory_space<vmem>>, vector<8x32xf32>,
    %c2_i32 = arith.constant 2 : i32
    %142 = arith.index_cast %c2_i32 : i32 to index
    %c0_43 = arith.constant 0 : index
    %c0_44 = arith.constant 0 : index
    %143 = vector.load %arg1[%142, %c0_43, %c0_44] : memref<4x8x16xf32, #tpu.memory_space<vmem>>, vector<1x8x16xf32>
    %144 = vector.shape_cast %143 : vector<1x8x16xf32> to vector<8x16xf32>
    %145 = tpu.concatenate %144, %101 in 1 : vector<8x16xf32>, vector<8x32xf32> -> vector<8x48xf32>
    %cst_45 = arith.constant dense<0.000000e+00> : vector<8x128xf32>
    %146 = tpu.matmul %145, %4, %cst_45 {dimension_numbers = #tpu.dot_dimension_numbers<[1], [0], [0], [1], [0, 0, 1, 1], [], []>} : vector<8x48xf32>, vector<48x128xf32>, vector<8x128xf32> -> vector<8x128xf32>
    %147 = arith.addf %146, %8 : vector<8x128xf32>
    %148 = arith.negf %147 : vector<8x128xf32>
    %149 = math.exp %148 : vector<8x128xf32>
    %cst_46 = arith.constant 1.000000e+00 : f32
    %150 = vector.broadcast %cst_46 : f32 to vector<8x128xf32>
    %151 = arith.addf %150, %149 : vector<8x128xf32>
    %152 = arith.divf %150, %151 : vector<8x128xf32>
    %153 = math.tanh %147 : vector<8x128xf32>
    %154 = vector.extract_strided_slice %152 {offsets = [0, 0], sizes = [8, 32], strides = [1, 1]} : vector<8x128xf32> to vector<8x32xf32>
    %155 = vector.extract_strided_slice %152 {offsets = [0, 32], sizes = [8, 32], strides = [1, 1]} : vector<8x128xf32> to vector<8x32xf32>
    %156 = vector.extract_strided_slice %153 {offsets = [0, 64], sizes = [8, 32], strides = [1, 1]} : vector<8x128xf32> to vector<8x32xf32>
    %157 = vector.extract_strided_slice %152 {offsets = [0, 96], sizes = [8, 32], strides = [1, 1]} : vector<8x128xf32> to vector<8x32xf32>
    %158 = arith.mulf %155, %99 : vector<8x32xf32>
    %159 = arith.mulf %154, %156 : vector<8x32xf32>
    %160 = arith.addf %158, %159 : vector<8x32xf32>
    %161 = math.tanh %160 : vector<8x32xf32>
    %162 = arith.mulf %157, %161 : vector<8x32xf32>
    %163 = vector.shape_cast %162 : vector<8x32xf32> to vector<8x1x32xf32>
    %164 = vector.broadcast %163 : vector<8x1x32xf32> to vector<8x10x32xf32>
    %165 = arith.mulf %3, %164 : vector<8x10x32xf32>
    %cst_47 = arith.constant dense<0.000000e+00> : vector<8x10xf32>
    %166 = vector.multi_reduction <add>, %165, %cst_47 [2] : vector<8x10x32xf32> to vector<8x10xf32>
    %cst_48 = arith.constant dense<0xFF800000> : vector<8xf32>
    %167 = vector.multi_reduction <maximumf>, %166, %cst_48 [1] : vector<8x10xf32> to vector<8xf32>
    %168 = vector.shape_cast %167 : vector<8xf32> to vector<8x1xf32>
    %169 = vector.broadcast %168 : vector<8x1xf32> to vector<8x10xf32>
    %170 = arith.subf %166, %169 : vector<8x10xf32>
    %171 = math.exp %170 : vector<8x10xf32>
    %cst_49 = arith.constant dense<0.000000e+00> : vector<8xf32>
    %172 = vector.multi_reduction <add>, %171, %cst_49 [1] : vector<8x10xf32> to vector<8xf32>
    %173 = vector.shape_cast %172 : vector<8xf32> to vector<8x1xf32>
    %174 = tpu.reciprocal %173 {approx = true} : vector<8x1xf32> -> vector<8x1xf32>
    %175 = vector.broadcast %174 : vector<8x1xf32> to vector<8x10xf32>
    %176 = arith.mulf %171, %175 : vector<8x10xf32>
    %177 = vector.shape_cast %176 : vector<8x10xf32> to vector<8x10x1xf32>
    %178 = vector.broadcast %177 : vector<8x10x1xf32> to vector<8x10x32xf32>
    %179 = arith.mulf %178, %3 : vector<8x10x32xf32>
    %cst_50 = arith.constant dense<0.000000e+00> : vector<8x32xf32>
    %180 = vector.multi_reduction <add>, %179, %cst_50 [1] : vector<8x10x32xf32> to vector<8x32xf32>
    %181 = tpu.concatenate %180, %137 in 1 : vector<8x32xf32>, vector<8x32xf32> -> vector<8x64xf32>
    %cst_51 = arith.constant dense<0.000000e+00> : vector<8x128xf32>
    %182 = tpu.matmul %181, %5, %cst_51 {dimension_numbers = #tpu.dot_dimension_numbers<[1], [0], [0], [1], [0, 0, 1, 1], [], []>} : vector<8x64xf32>, vector<64x128xf32>, vector<8x128xf32> -> vector<8x128xf32>
    %183 = arith.addf %182, %11 : vector<8x128xf32>
    %184 = arith.negf %183 : vector<8x128xf32>
    %185 = math.exp %184 : vector<8x128xf32>
    %cst_52 = arith.constant 1.000000e+00 : f32
    %186 = vector.broadcast %cst_52 : f32 to vector<8x128xf32>
    %187 = arith.addf %186, %185 : vector<8x128xf32>
    %188 = arith.divf %186, %187 : vector<8x128xf32>
    %189 = math.tanh %183 : vector<8x128xf32>
    %190 = vector.extract_strided_slice %188 {offsets = [0, 0], sizes = [8, 32], strides = [1, 1]} : vector<8x128xf32> to vector<8x32xf32>
    %191 = vector.extract_strided_slice %188 {offsets = [0, 32], sizes = [8, 32], strides = [1, 1]} : vector<8x128xf32> to vector<8x32xf32>
    %192 = vector.extract_strided_slice %189 {offsets = [0, 64], sizes = [8, 32], strides = [1, 1]} : vector<8x128xf32> to vector<8x32xf32>
    %193 = vector.extract_strided_slice %188 {offsets = [0, 96], sizes = [8, 32], strides = [1, 1]} : vector<8x128xf32> to vector<8x32xf32>
    %194 = arith.mulf %191, %135 : vector<8x32xf32>
    %195 = arith.mulf %190, %192 : vector<8x32xf32>
    %196 = arith.addf %194, %195 : vector<8x32xf32>
    %197 = math.tanh %196 : vector<8x32xf32>
    %198 = arith.mulf %193, %197 : vector<8x32xf32>
    %c8_i32_53 = arith.constant 8 : i32
    %199 = arith.muli %c2_i32, %c8_i32_53 : i32
    %200 = tpu.assume_multiple %199, 8 : i32
    %201 = arith.index_cast %200 : i32 to index
    %c0_54 = arith.constant 0 : index
    %202 = vector.load %arg13[%201, %c0_54] : memref<32x32xf32, #tpu.memory_space<vmem>>, vector<8x32xf32>
    tpu.vector_store %arg13[%201, %c0_54], %198 {strides = array<i32>} : memref<32x32xf32, #tpu.memory_space<vmem>>, vector<8x32xf32>,
    %c3_i32 = arith.constant 3 : i32
    %203 = arith.index_cast %c3_i32 : i32 to index
    %c0_55 = arith.constant 0 : index
    %c0_56 = arith.constant 0 : index
    %204 = vector.load %arg1[%203, %c0_55, %c0_56] : memref<4x8x16xf32, #tpu.memory_space<vmem>>, vector<1x8x16xf32>
    %205 = vector.shape_cast %204 : vector<1x8x16xf32> to vector<8x16xf32>
    %206 = tpu.concatenate %205, %162 in 1 : vector<8x16xf32>, vector<8x32xf32> -> vector<8x48xf32>
    %cst_57 = arith.constant dense<0.000000e+00> : vector<8x128xf32>
    %207 = tpu.matmul %206, %4, %cst_57 {dimension_numbers = #tpu.dot_dimension_numbers<[1], [0], [0], [1], [0, 0, 1, 1], [], []>} : vector<8x48xf32>, vector<48x128xf32>, vector<8x128xf32> -> vector<8x128xf32>
    %208 = arith.addf %207, %8 : vector<8x128xf32>
    %209 = arith.negf %208 : vector<8x128xf32>
    %210 = math.exp %209 : vector<8x128xf32>
    %cst_58 = arith.constant 1.000000e+00 : f32
    %211 = vector.broadcast %cst_58 : f32 to vector<8x128xf32>
    %212 = arith.addf %211, %210 : vector<8x128xf32>
    %213 = arith.divf %211, %212 : vector<8x128xf32>
    %214 = math.tanh %208 : vector<8x128xf32>
    %215 = vector.extract_strided_slice %213 {offsets = [0, 0], sizes = [8, 32], strides = [1, 1]} : vector<8x128xf32> to vector<8x32xf32>
    %216 = vector.extract_strided_slice %213 {offsets = [0, 32], sizes = [8, 32], strides = [1, 1]} : vector<8x128xf32> to vector<8x32xf32>
    %217 = vector.extract_strided_slice %214 {offsets = [0, 64], sizes = [8, 32], strides = [1, 1]} : vector<8x128xf32> to vector<8x32xf32>
    %218 = vector.extract_strided_slice %213 {offsets = [0, 96], sizes = [8, 32], strides = [1, 1]} : vector<8x128xf32> to vector<8x32xf32>
    %219 = arith.mulf %216, %160 : vector<8x32xf32>
    %220 = arith.mulf %215, %217 : vector<8x32xf32>
    %221 = arith.addf %219, %220 : vector<8x32xf32>
    %222 = math.tanh %221 : vector<8x32xf32>
    %223 = arith.mulf %218, %222 : vector<8x32xf32>
    %224 = vector.shape_cast %223 : vector<8x32xf32> to vector<8x1x32xf32>
    %225 = vector.broadcast %224 : vector<8x1x32xf32> to vector<8x10x32xf32>
    %226 = arith.mulf %3, %225 : vector<8x10x32xf32>
    %cst_59 = arith.constant dense<0.000000e+00> : vector<8x10xf32>
    %227 = vector.multi_reduction <add>, %226, %cst_59 [2] : vector<8x10x32xf32> to vector<8x10xf32>
    %cst_60 = arith.constant dense<0xFF800000> : vector<8xf32>
    %228 = vector.multi_reduction <maximumf>, %227, %cst_60 [1] : vector<8x10xf32> to vector<8xf32>
    %229 = vector.shape_cast %228 : vector<8xf32> to vector<8x1xf32>
    %230 = vector.broadcast %229 : vector<8x1xf32> to vector<8x10xf32>
    %231 = arith.subf %227, %230 : vector<8x10xf32>
    %232 = math.exp %231 : vector<8x10xf32>
    %cst_61 = arith.constant dense<0.000000e+00> : vector<8xf32>
    %233 = vector.multi_reduction <add>, %232, %cst_61 [1] : vector<8x10xf32> to vector<8xf32>
    %234 = vector.shape_cast %233 : vector<8xf32> to vector<8x1xf32>
    %235 = tpu.reciprocal %234 {approx = true} : vector<8x1xf32> -> vector<8x1xf32>
    %236 = vector.broadcast %235 : vector<8x1xf32> to vector<8x10xf32>
    %237 = arith.mulf %232, %236 : vector<8x10xf32>
    %238 = vector.shape_cast %237 : vector<8x10xf32> to vector<8x10x1xf32>
    %239 = vector.broadcast %238 : vector<8x10x1xf32> to vector<8x10x32xf32>
    %240 = arith.mulf %239, %3 : vector<8x10x32xf32>
    %cst_62 = arith.constant dense<0.000000e+00> : vector<8x32xf32>
    %241 = vector.multi_reduction <add>, %240, %cst_62 [1] : vector<8x10x32xf32> to vector<8x32xf32>
    %242 = tpu.concatenate %241, %198 in 1 : vector<8x32xf32>, vector<8x32xf32> -> vector<8x64xf32>
    %cst_63 = arith.constant dense<0.000000e+00> : vector<8x128xf32>
    %243 = tpu.matmul %242, %5, %cst_63 {dimension_numbers = #tpu.dot_dimension_numbers<[1], [0], [0], [1], [0, 0, 1, 1], [], []>} : vector<8x64xf32>, vector<64x128xf32>, vector<8x128xf32> -> vector<8x128xf32>
    %244 = arith.addf %243, %11 : vector<8x128xf32>
    %245 = arith.negf %244 : vector<8x128xf32>
    %246 = math.exp %245 : vector<8x128xf32>
    %cst_64 = arith.constant 1.000000e+00 : f32
    %247 = vector.broadcast %cst_64 : f32 to vector<8x128xf32>
    %248 = arith.addf %247, %246 : vector<8x128xf32>
    %249 = arith.divf %247, %248 : vector<8x128xf32>
    %250 = math.tanh %244 : vector<8x128xf32>
    %251 = vector.extract_strided_slice %249 {offsets = [0, 0], sizes = [8, 32], strides = [1, 1]} : vector<8x128xf32> to vector<8x32xf32>
    %252 = vector.extract_strided_slice %249 {offsets = [0, 32], sizes = [8, 32], strides = [1, 1]} : vector<8x128xf32> to vector<8x32xf32>
    %253 = vector.extract_strided_slice %250 {offsets = [0, 64], sizes = [8, 32], strides = [1, 1]} : vector<8x128xf32> to vector<8x32xf32>
    %254 = vector.extract_strided_slice %249 {offsets = [0, 96], sizes = [8, 32], strides = [1, 1]} : vector<8x128xf32> to vector<8x32xf32>
    %255 = arith.mulf %252, %196 : vector<8x32xf32>
    %256 = arith.mulf %251, %253 : vector<8x32xf32>
    %257 = arith.addf %255, %256 : vector<8x32xf32>
    %258 = math.tanh %257 : vector<8x32xf32>
    %259 = arith.mulf %254, %258 : vector<8x32xf32>
    %c8_i32_65 = arith.constant 8 : i32
    %260 = arith.muli %c3_i32, %c8_i32_65 : i32
    %261 = tpu.assume_multiple %260, 8 : i32
    %262 = arith.index_cast %261 : i32 to index
    %c0_66 = arith.constant 0 : index
    %263 = vector.load %arg13[%262, %c0_66] : memref<32x32xf32, #tpu.memory_space<vmem>>, vector<8x32xf32>
    tpu.vector_store %arg13[%262, %c0_66], %259 {strides = array<i32>} : memref<32x32xf32, #tpu.memory_space<vmem>>, vector<8x32xf32>,
    %c4_i32 = arith.constant 4 : i32
    %c0_67 = arith.constant 0 : index
    %c0_68 = arith.constant 0 : index
    %c0_69 = arith.constant 0 : index
    %264 = vector.load %arg12[%c0_67, %c0_68, %c0_69] : memref<4x8x32xf32, #tpu.memory_space<vmem>>, vector<1x8x32xf32>
    %265 = vector.shape_cast %264 : vector<1x8x32xf32> to vector<8x32xf32>
    %266 = vector.shape_cast %223 : vector<8x32xf32> to vector<1x8x32xf32>
    tpu.vector_store %arg12[%c0_67, %c0_68, %c0_69], %266 {strides = array<i32>} : memref<4x8x32xf32, #tpu.memory_space<vmem>>, vector<1x8x32xf32>,
    %c1_70 = arith.constant 1 : index
    %c0_71 = arith.constant 0 : index
    %c0_72 = arith.constant 0 : index
    %267 = vector.load %arg12[%c1_70, %c0_71, %c0_72] : memref<4x8x32xf32, #tpu.memory_space<vmem>>, vector<1x8x32xf32>
    %268 = vector.shape_cast %267 : vector<1x8x32xf32> to vector<8x32xf32>
    %269 = vector.shape_cast %221 : vector<8x32xf32> to vector<1x8x32xf32>
    tpu.vector_store %arg12[%c1_70, %c0_71, %c0_72], %269 {strides = array<i32>} : memref<4x8x32xf32, #tpu.memory_space<vmem>>, vector<1x8x32xf32>,
    %c2_73 = arith.constant 2 : index
    %c0_74 = arith.constant 0 : index
    %c0_75 = arith.constant 0 : index
    %270 = vector.load %arg12[%c2_73, %c0_74, %c0_75] : memref<4x8x32xf32, #tpu.memory_space<vmem>>, vector<1x8x32xf32>
    %271 = vector.shape_cast %270 : vector<1x8x32xf32> to vector<8x32xf32>
    %272 = vector.shape_cast %259 : vector<8x32xf32> to vector<1x8x32xf32>
    tpu.vector_store %arg12[%c2_73, %c0_74, %c0_75], %272 {strides = array<i32>} : memref<4x8x32xf32, #tpu.memory_space<vmem>>, vector<1x8x32xf32>,
    %c3_76 = arith.constant 3 : index
    %c0_77 = arith.constant 0 : index
    %c0_78 = arith.constant 0 : index
    %273 = vector.load %arg12[%c3_76, %c0_77, %c0_78] : memref<4x8x32xf32, #tpu.memory_space<vmem>>, vector<1x8x32xf32>
    %274 = vector.shape_cast %273 : vector<1x8x32xf32> to vector<8x32xf32>
    %275 = vector.shape_cast %257 : vector<8x32xf32> to vector<1x8x32xf32>
    tpu.vector_store %arg12[%c3_76, %c0_77, %c0_78], %275 {strides = array<i32>} : memref<4x8x32xf32, #tpu.memory_space<vmem>>, vector<1x8x32xf32>,
    %c0_79 = arith.constant 0 : index
    %c0_80 = arith.constant 0 : index
    %276 = vector.load %arg13[%c0_79, %c0_80] : memref<32x32xf32, #tpu.memory_space<vmem>>, vector<32x32xf32>
    %c0_81 = arith.constant 0 : index
    %c0_82 = arith.constant 0 : index
    %277 = vector.load %arg9[%c0_81, %c0_82] : memref<32x128xf32, #tpu.memory_space<vmem>>, vector<32x128xf32>
    %cst_83 = arith.constant dense<0.000000e+00> : vector<32x128xf32>
    %278 = tpu.matmul %276, %277, %cst_83 {dimension_numbers = #tpu.dot_dimension_numbers<[1], [0], [0], [1], [0, 0, 1, 1], [], []>} : vector<32x32xf32>, vector<32x128xf32>, vector<32x128xf32> -> vector<32x128xf32>
    %c0_84 = arith.constant 0 : index
    %c0_85 = arith.constant 0 : index
    %279 = vector.load %arg10[%c0_84, %c0_85] : memref<1x128xf32, #tpu.memory_space<vmem>>, vector<1x128xf32>
    %280 = vector.broadcast %279 : vector<1x128xf32> to vector<32x128xf32>
    %281 = arith.addf %278, %280 : vector<32x128xf32>
    %cst_86 = arith.constant dense<0xFF800000> : vector<32xf32>
    %282 = vector.multi_reduction <maximumf>, %281, %cst_86 [1] : vector<32x128xf32> to vector<32xf32>
    %283 = vector.shape_cast %282 : vector<32xf32> to vector<32x1xf32>
    %284 = vector.broadcast %283 : vector<32x1xf32> to vector<32x128xf32>
    %285 = arith.subf %281, %284 : vector<32x128xf32>
    %286 = math.exp %285 : vector<32x128xf32>
    %cst_87 = arith.constant dense<0.000000e+00> : vector<32xf32>
    %287 = vector.multi_reduction <add>, %286, %cst_87 [1] : vector<32x128xf32> to vector<32xf32>
    %288 = vector.shape_cast %287 : vector<32xf32> to vector<32x1xf32>
    %289 = tpu.reciprocal %288 : vector<32x1xf32> -> vector<32x1xf32>
    %290 = vector.broadcast %289 : vector<32x1xf32> to vector<32x128xf32>
    %291 = arith.mulf %286, %290 : vector<32x128xf32>
    %c0_88 = arith.constant 0 : index
    %c0_89 = arith.constant 0 : index
    %292 = vector.load %arg11[%c0_88, %c0_89] : memref<32x128xf32, #tpu.memory_space<vmem>>, vector<32x128xf32>
    tpu.vector_store %arg11[%c0_88, %c0_89], %291 {strides = array<i32>} : memref<32x128xf32, #tpu.memory_space<vmem>>, vector<32x128xf32>,
    return
  }
  func.func @transform_0(%arg0: i32) -> (i32, i32, i32) {
    %c0_i32 = arith.constant 0 : i32
    %c0_i32_0 = arith.constant 0 : i32
    %c0_i32_1 = arith.constant 0 : i32
    return %arg0, %c0_i32, %c0_i32_0 : i32, i32, i32
  }
  func.func @transform_1(%arg0: i32) -> (i32, i32, i32) {
    %c0_i32 = arith.constant 0 : i32
    %c0_i32_0 = arith.constant 0 : i32
    %c0_i32_1 = arith.constant 0 : i32
    %c0_i32_2 = arith.constant 0 : i32
    return %c0_i32, %c0_i32_0, %c0_i32_1 : i32, i32, i32
  }
  func.func @transform_2(%arg0: i32) -> (i32, i32, i32) {
    %c0_i32 = arith.constant 0 : i32
    %c0_i32_0 = arith.constant 0 : i32
    %c0_i32_1 = arith.constant 0 : i32
    %c0_i32_2 = arith.constant 0 : i32
    return %c0_i32, %c0_i32_0, %c0_i32_1 : i32, i32, i32
  }
  func.func @transform_3(%arg0: i32) -> (i32, i32, i32) {
    %c0_i32 = arith.constant 0 : i32
    %c0_i32_0 = arith.constant 0 : i32
    %c0_i32_1 = arith.constant 0 : i32
    %c0_i32_2 = arith.constant 0 : i32
    return %c0_i32, %c0_i32_0, %c0_i32_1 : i32, i32, i32
  }
  func.func @transform_4(%arg0: i32) -> (i32, i32) {
    %c0_i32 = arith.constant 0 : i32
    %c0_i32_0 = arith.constant 0 : i32
    %c0_i32_1 = arith.constant 0 : i32
    return %c0_i32, %c0_i32_0 : i32, i32
  }
  func.func @transform_5(%arg0: i32) -> (i32, i32) {
    %c0_i32 = arith.constant 0 : i32
    %c0_i32_0 = arith.constant 0 : i32
    %c0_i32_1 = arith.constant 0 : i32
    return %c0_i32, %c0_i32_0 : i32, i32
  }
  func.func @transform_6(%arg0: i32) -> (i32, i32) {
    %c0_i32 = arith.constant 0 : i32
    %c0_i32_0 = arith.constant 0 : i32
    %c0_i32_1 = arith.constant 0 : i32
    return %c0_i32, %c0_i32_0 : i32, i32
  }
  func.func @transform_7(%arg0: i32) -> (i32, i32) {
    %c0_i32 = arith.constant 0 : i32
    %c0_i32_0 = arith.constant 0 : i32
    %c0_i32_1 = arith.constant 0 : i32
    return %c0_i32, %c0_i32_0 : i32, i32
  }
  func.func @transform_8(%arg0: i32) -> (i32, i32) {
    %c0_i32 = arith.constant 0 : i32
    %c0_i32_0 = arith.constant 0 : i32
    %c0_i32_1 = arith.constant 0 : i32
    return %c0_i32, %c0_i32_0 : i32, i32
  }
  func.func @transform_9(%arg0: i32) -> (i32, i32) {
    %c0_i32 = arith.constant 0 : i32
    %c0_i32_0 = arith.constant 0 : i32
    %c0_i32_1 = arith.constant 0 : i32
    return %c0_i32, %c0_i32_0 : i32, i32
  }
  func.func @transform_10(%arg0: i32) -> (i32, i32) {
    %c0_i32 = arith.constant 0 : i32
    %c0_i32_0 = arith.constant 0 : i32
    return %arg0, %c0_i32 : i32, i32
  }
}

</mosaic_0001>

<llo_original>
// kernel: attention_speller.1
$region0: #{attention_speller.1}
  #allocation0 [shape = 'u32[]', space=smem, size = 0x4, offset = 0x4, fixed_abs, tag = 'smem constant byte address 0x4 - core index']
  #allocation1 [shape = 'u32[72,128]{1,0:T(1,128)}', space=vmem, size = 0x9000, scoped, tag = 'internal scratch']
  #allocation2 [shape = 'f32[4,8,32]{2,1,0:T(8,128)}', space=vmem, size = 0x4000, scoped, tag = 'scratch operand']
  #allocation3 [shape = 'f32[32,32]{1,0:T(8,128)}', space=vmem, size = 0x4000, scoped, tag = 'scratch operand']
  %s0 = inlined_call_operand.vmem [shape: f32[8,8,16], index: 0, kind: input, shape index: {}]
  %s1 = inlined_call_operand.vmem [shape: f32[2,8,32], index: 1, kind: input, shape index: {}]
  %s2 = inlined_call_operand.vmem [shape: f32[2,8,32], index: 2, kind: input, shape index: {}]
  %s3 = inlined_call_operand.vmem [shape: f32[8,10,32], index: 3, kind: input, shape index: {}]
  %s4 = inlined_call_operand.vmem [shape: f32[48,128], index: 4, kind: input, shape index: {}]
  %s5 = inlined_call_operand.vmem [shape: f32[1,128], index: 5, kind: input, shape index: {}]
  %s6 = inlined_call_operand.vmem [shape: f32[64,128], index: 6, kind: input, shape index: {}]
  %s7 = inlined_call_operand.vmem [shape: f32[1,128], index: 7, kind: input, shape index: {}]
  %s8 = inlined_call_operand.vmem [shape: f32[32,128], index: 8, kind: input, shape index: {}]
  %s9 = inlined_call_operand.vmem [shape: f32[1,128], index: 9, kind: input, shape index: {}]
  %s10 = inlined_call_operand.vmem [shape: f32[64,128], index: 10, kind: output, shape index: {}]
  %s11 = sld [smem:[#allocation0]]
  $region77: #{attention_speller.1} parent=0
    _
  %s13 = ssub.s32 1, %s11
  %s14 = scalar_select 0, %s13, %s11
  loop: start=0, step=1, limit=4
  $region2: #{attention_speller.1} parent=0 // loop_pre_header
    _
  $region3: #{attention_speller.1} parent=0 // loop_header
    %s16 = sphi 0, %s20
    %p17 = scmp.ge.s32.totalorder %s16, 4
    %s26 = sphi 0, %s28
    %s29 = sphi 0, %s26
    %s30 = sphi 0, %s29
    %s46 = sphi 0, %s30
    %s50 = sphi 0, %s50
    %s52 = sphi 0, %s50
    %s53 = sphi 0, %s52
    %s67 = sphi 0, %s53
    %s71 = sphi 0, %s71
    %s73 = sphi 0, %s71
    %s74 = sphi 0, %s73
    %s88 = sphi 0, %s74
    %s92 = sphi 0, %s92
    %s94 = sphi 0, %s92
    %s95 = sphi 0, %s94
    %s109 = sphi 0, %s95
    %s113 = sphi 0, %s113
    %s115 = sphi 0, %s113
    %s116 = sphi 0, %s115
    %s130 = sphi 0, %s116
    %s134 = sphi 0, %s134
    %s136 = sphi 0, %s134
    %s137 = sphi 0, %s136
    %s151 = sphi 0, %s137
    %s155 = sphi 0, %s155
    %s157 = sphi 0, %s155
    %s158 = sphi 0, %s157
    %s172 = sphi 0, %s158
    %s176 = sphi 0, %s176
    %s178 = sphi 0, %s176
    %s179 = sphi 0, %s178
    %s193 = sphi 0, %s179
    %s197 = sphi 0, %s197
    %s199 = sphi 0, %s197
    %s200 = sphi 0, %s199
    %s214 = sphi 0, %s200
    %s218 = sphi 0, %s218
    %s220 = sphi 0, %s218
    %s221 = sphi 0, %s220
    %s235 = sphi 0, %s221
    %s241 = sphi 0, %s243
    %s244 = sphi 0, %s241
    %s245 = sphi 0, %s244
    %s261 = sphi 0, %s245
  $region4: #{attention_speller.1} parent=0 // loop_header_branch
    %19 = sbr.rel (%p17) target = $region8
  $region5: #{attention_speller.1} parent=0 // loop_body
    %s21 = ssub.s32 %s16, 1
    %s22 = ssub.s32 %s16, 2
    %s23 = sadd.s32 %s16, 1
    %s24 = ssub.s32 %s16, %s23
    %p25 = scmp.eq.s32.totalorder %s24, 0
    %s27 = sadd.s32 %s26, 1
    %s28 = scalar_select %p25, %s26, %s27
    %p31 = pneg %p25
    %p32 = scmp.eq.s32.totalorder %s16, 1
    %p33 = por %p31, %p32
    %p34 = scmp.ne.s32.totalorder %s26, %s29
    %p35 = scmp.eq.s32.totalorder %s16, 0
    %p36 = por %p34, %p35
    %p37 = scmp.ne.s32.totalorder %s26, %s29
    %p38 = scmp.eq.s32.totalorder %s21, 1
    %p39 = por %p37, %p38
    %p40 = scmp.ne.s32.totalorder %s29, %s30
    %p41 = scmp.eq.s32.totalorder %s21, 0
    %p42 = por %p40, %p41
    %p43 = scmp.ne.s32.totalorder %s29, %s30
    %p44 = scmp.eq.s32.totalorder %s22, 1
    %p45 = por %p43, %p44
    %p47 = scmp.ne.s32.totalorder %s30, %s46
    %p48 = scmp.eq.s32.totalorder %s22, 0
    %p49 = por %p47, %p48
    %s51 = sadd.s32 %s50, 1
    %p54 = scmp.eq.s32.totalorder %s16, 1
    %p55 = scmp.ne.s32.totalorder %s50, %s52
    %p56 = scmp.eq.s32.totalorder %s16, 0
    %p57 = por %p55, %p56
    %p58 = scmp.ne.s32.totalorder %s50, %s52
    %p59 = scmp.eq.s32.totalorder %s21, 1
    %p60 = por %p58, %p59
    %p61 = scmp.ne.s32.totalorder %s52, %s53
    %p62 = scmp.eq.s32.totalorder %s21, 0
    %p63 = por %p61, %p62
    %p64 = scmp.ne.s32.totalorder %s52, %s53
    %p65 = scmp.eq.s32.totalorder %s22, 1
    %p66 = por %p64, %p65
    %p68 = scmp.ne.s32.totalorder %s53, %s67
    %p69 = scmp.eq.s32.totalorder %s22, 0
    %p70 = por %p68, %p69
    %s72 = sadd.s32 %s71, 1
    %p75 = scmp.eq.s32.totalorder %s16, 1
    %p76 = scmp.ne.s32.totalorder %s71, %s73
    %p77 = scmp.eq.s32.totalorder %s16, 0
    %p78 = por %p76, %p77
    %p79 = scmp.ne.s32.totalorder %s71, %s73
    %p80 = scmp.eq.s32.totalorder %s21, 1
    %p81 = por %p79, %p80
    %p82 = scmp.ne.s32.totalorder %s73, %s74
    %p83 = scmp.eq.s32.totalorder %s21, 0
    %p84 = por %p82, %p83
    %p85 = scmp.ne.s32.totalorder %s73, %s74
    %p86 = scmp.eq.s32.totalorder %s22, 1
    %p87 = por %p85, %p86
    %p89 = scmp.ne.s32.totalorder %s74, %s88
    %p90 = scmp.eq.s32.totalorder %s22, 0
    %p91 = por %p89, %p90
    %s93 = sadd.s32 %s92, 1
    %p96 = scmp.eq.s32.totalorder %s16, 1
    %p97 = scmp.ne.s32.totalorder %s92, %s94
    %p98 = scmp.eq.s32.totalorder %s16, 0
    %p99 = por %p97, %p98
    %p100 = scmp.ne.s32.totalorder %s92, %s94
    %p101 = scmp.eq.s32.totalorder %s21, 1
    %p102 = por %p100, %p101
    %p103 = scmp.ne.s32.totalorder %s94, %s95
    %p104 = scmp.eq.s32.totalorder %s21, 0
    %p105 = por %p103, %p104
    %p106 = scmp.ne.s32.totalorder %s94, %s95
    %p107 = scmp.eq.s32.totalorder %s22, 1
    %p108 = por %p106, %p107
    %p110 = scmp.ne.s32.totalorder %s95, %s109
    %p111 = scmp.eq.s32.totalorder %s22, 0
    %p112 = por %p110, %p111
    %s114 = sadd.s32 %s113, 1
    %p117 = scmp.eq.s32.totalorder %s16, 1
    %p118 = scmp.ne.s32.totalorder %s113, %s115
    %p119 = scmp.eq.s32.totalorder %s16, 0
    %p120 = por %p118, %p119
    %p121 = scmp.ne.s32.totalorder %s113, %s115
    %p122 = scmp.eq.s32.totalorder %s21, 1
    %p123 = por %p121, %p122
    %p124 = scmp.ne.s32.totalorder %s115, %s116
    %p125 = scmp.eq.s32.totalorder %s21, 0
    %p126 = por %p124, %p125
    %p127 = scmp.ne.s32.totalorder %s115, %s116
    %p128 = scmp.eq.s32.totalorder %s22, 1
    %p129 = por %p127, %p128
    %p131 = scmp.ne.s32.totalorder %s116, %s130
    %p132 = scmp.eq.s32.totalorder %s22, 0
    %p133 = por %p131, %p132
    %s135 = sadd.s32 %s134, 1
    %p138 = scmp.eq.s32.totalorder %s16, 1
    %p139 = scmp.ne.s32.totalorder %s134, %s136
    %p140 = scmp.eq.s32.totalorder %s16, 0
    %p141 = por %p139, %p140
    %p142 = scmp.ne.s32.totalorder %s134, %s136
    %p143 = scmp.eq.s32.totalorder %s21, 1
    %p144 = por %p142, %p143
    %p145 = scmp.ne.s32.totalorder %s136, %s137
    %p146 = scmp.eq.s32.totalorder %s21, 0
    %p147 = por %p145, %p146
    %p148 = scmp.ne.s32.totalorder %s136, %s137
    %p149 = scmp.eq.s32.totalorder %s22, 1
    %p150 = por %p148, %p149
    %p152 = scmp.ne.s32.totalorder %s137, %s151
    %p153 = scmp.eq.s32.totalorder %s22, 0
    %p154 = por %p152, %p153
    %s156 = sadd.s32 %s155, 1
    %p159 = scmp.eq.s32.totalorder %s16, 1
    %p160 = scmp.ne.s32.totalorder %s155, %s157
    %p161 = scmp.eq.s32.totalorder %s16, 0
    %p162 = por %p160, %p161
    %p163 = scmp.ne.s32.totalorder %s155, %s157
    %p164 = scmp.eq.s32.totalorder %s21, 1
    %p165 = por %p163, %p164
    %p166 = scmp.ne.s32.totalorder %s157, %s158
    %p167 = scmp.eq.s32.totalorder %s21, 0
    %p168 = por %p166, %p167
    %p169 = scmp.ne.s32.totalorder %s157, %s158
    %p170 = scmp.eq.s32.totalorder %s22, 1
    %p171 = por %p169, %p170
    %p173 = scmp.ne.s32.totalorder %s158, %s172
    %p174 = scmp.eq.s32.totalorder %s22, 0
    %p175 = por %p173, %p174
    %s177 = sadd.s32 %s176, 1
    %p180 = scmp.eq.s32.totalorder %s16, 1
    %p181 = scmp.ne.s32.totalorder %s176, %s178
    %p182 = scmp.eq.s32.totalorder %s16, 0
    %p183 = por %p181, %p182
    %p184 = scmp.ne.s32.totalorder %s176, %s178
    %p185 = scmp.eq.s32.totalorder %s21, 1
    %p186 = por %p184, %p185
    %p187 = scmp.ne.s32.totalorder %s178, %s179
    %p188 = scmp.eq.s32.totalorder %s21, 0
    %p189 = por %p187, %p188
    %p190 = scmp.ne.s32.totalorder %s178, %s179
    %p191 = scmp.eq.s32.totalorder %s22, 1
    %p192 = por %p190, %p191
    %p194 = scmp.ne.s32.totalorder %s179, %s193
    %p195 = scmp.eq.s32.totalorder %s22, 0
    %p196 = por %p194, %p195
    %s198 = sadd.s32 %s197, 1
    %p201 = scmp.eq.s32.totalorder %s16, 1
    %p202 = scmp.ne.s32.totalorder %s197, %s199
    %p203 = scmp.eq.s32.totalorder %s16, 0
    %p204 = por %p202, %p203
    %p205 = scmp.ne.s32.totalorder %s197, %s199
    %p206 = scmp.eq.s32.totalorder %s21, 1
    %p207 = por %p205, %p206
    %p208 = scmp.ne.s32.totalorder %s199, %s200
    %p209 = scmp.eq.s32.totalorder %s21, 0
    %p210 = por %p208, %p209
    %p211 = scmp.ne.s32.totalorder %s199, %s200
    %p212 = scmp.eq.s32.totalorder %s22, 1
    %p213 = por %p211, %p212
    %p215 = scmp.ne.s32.totalorder %s200, %s214
    %p216 = scmp.eq.s32.totalorder %s22, 0
    %p217 = por %p215, %p216
    %s219 = sadd.s32 %s218, 1
    %p222 = scmp.eq.s32.totalorder %s16, 1
    %p223 = scmp.ne.s32.totalorder %s218, %s220
    %p224 = scmp.eq.s32.totalorder %s16, 0
    %p225 = por %p223, %p224
    %p226 = scmp.ne.s32.totalorder %s218, %s220
    %p227 = scmp.eq.s32.totalorder %s21, 1
    %p228 = por %p226, %p227
    %p229 = scmp.ne.s32.totalorder %s220, %s221
    %p230 = scmp.eq.s32.totalorder %s21, 0
    %p231 = por %p229, %p230
    %p232 = scmp.ne.s32.totalorder %s220, %s221
    %p233 = scmp.eq.s32.totalorder %s22, 1
    %p234 = por %p232, %p233
    %p236 = scmp.ne.s32.totalorder %s221, %s235
    %p237 = scmp.eq.s32.totalorder %s22, 0
    %p238 = por %p236, %p237
    %s239 = ssub.s32 %s16, %s23
    %p240 = scmp.eq.s32.totalorder %s239, 0
    %s242 = sadd.s32 %s241, 1
    %s243 = scalar_select %p240, %s241, %s242
    %p246 = pneg %p240
    %p247 = scmp.eq.s32.totalorder %s16, 1
    %p248 = por %p246, %p247
    %p249 = scmp.ne.s32.totalorder %s241, %s244
    %p250 = scmp.eq.s32.totalorder %s16, 0
    %p251 = por %p249, %p250
    %p252 = scmp.ne.s32.totalorder %s241, %s244
    %p253 = scmp.eq.s32.totalorder %s21, 1
    %p254 = por %p252, %p253
    %p255 = scmp.ne.s32.totalorder %s244, %s245
    %p256 = scmp.eq.s32.totalorder %s21, 0
    %p257 = por %p255, %p256
    %p258 = scmp.ne.s32.totalorder %s244, %s245
    %p259 = scmp.eq.s32.totalorder %s22, 1
    %p260 = por %p258, %p259
    %p262 = scmp.ne.s32.totalorder %s245, %s261
    %p263 = scmp.eq.s32.totalorder %s22, 0
    %p264 = por %p262, %p263
    %p265 = scmp.le.s32.totalorder 1, %s16
    %p266 = scmp.lt.s32.totalorder %s16, 3
    %p267 = pnand %p265, %p266
    %p268 = pneg %p267
    // Predicated region
    $region9: #{attention_speller.1} parent=5 // pred_check
      _
    $region10: #{attention_speller.1} parent=5 // pred_check_branch
      %270 = sbr.rel (%p267) target = $region12
    $region11: #{attention_speller.1} parent=5 // pred_region
      %s271 = ssub.s32 %s16, 1
      // Predicated region
      $region13: #{attention_speller.1} parent=11 // pred_check
        %p272 = pneg %p63
      $region14: #{attention_speller.1} parent=11 // pred_check_branch
        %274 = sbr.rel (%p272) target = $region16
      $region15: #{attention_speller.1} parent=11 // pred_region
        _
      $region16: #{attention_speller.1} parent=11 // pred_fallthru
        _
      // Predicated region
      $region17: #{attention_speller.1} parent=11 // pred_check
        %p275 = pneg %p84
      $region18: #{attention_speller.1} parent=11 // pred_check_branch
        %277 = sbr.rel (%p275) target = $region20
      $region19: #{attention_speller.1} parent=11 // pred_region
        _
      $region20: #{attention_speller.1} parent=11 // pred_fallthru
        _
      // Predicated region
      $region21: #{attention_speller.1} parent=11 // pred_check
        %p278 = pneg %p105
      $region22: #{attention_speller.1} parent=11 // pred_check_branch
        %280 = sbr.rel (%p278) target = $region24
      $region23: #{attention_speller.1} parent=11 // pred_region
        _
      $region24: #{attention_speller.1} parent=11 // pred_fallthru
        _
      // Predicated region
      $region25: #{attention_speller.1} parent=11 // pred_check
        %p281 = pneg %p126
      $region26: #{attention_speller.1} parent=11 // pred_check_branch
        %283 = sbr.rel (%p281) target = $region28
      $region27: #{attention_speller.1} parent=11 // pred_region
        _
      $region28: #{attention_speller.1} parent=11 // pred_fallthru
        _
      // Predicated region
      $region29: #{attention_speller.1} parent=11 // pred_check
        %p284 = pneg %p147
      $region30: #{attention_speller.1} parent=11 // pred_check_branch
        %286 = sbr.rel (%p284) target = $region32
      $region31: #{attention_speller.1} parent=11 // pred_region
        _
      $region32: #{attention_speller.1} parent=11 // pred_fallthru
        _
      // Predicated region
      $region33: #{attention_speller.1} parent=11 // pred_check
        %p287 = pneg %p168
      $region34: #{attention_speller.1} parent=11 // pred_check_branch
        %289 = sbr.rel (%p287) target = $region36
      $region35: #{attention_speller.1} parent=11 // pred_region
        _
      $region36: #{attention_speller.1} parent=11 // pred_fallthru
        _
      // Predicated region
      $region37: #{attention_speller.1} parent=11 // pred_check
        %p290 = pneg %p189
      $region38: #{attention_speller.1} parent=11 // pred_check_branch
        %292 = sbr.rel (%p290) target = $region40
      $region39: #{attention_speller.1} parent=11 // pred_region
        _
      $region40: #{attention_speller.1} parent=11 // pred_fallthru
        _
      // Predicated region
      $region41: #{attention_speller.1} parent=11 // pred_check
        %p293 = pneg %p210
      $region42: #{attention_speller.1} parent=11 // pred_check_branch
        %295 = sbr.rel (%p293) target = $region44
      $region43: #{attention_speller.1} parent=11 // pred_region
        _
      $region44: #{attention_speller.1} parent=11 // pred_fallthru
        _
      // Predicated region
      $region45: #{attention_speller.1} parent=11 // pred_check
        %p296 = pneg %p231
      $region46: #{attention_speller.1} parent=11 // pred_check_branch
        %298 = sbr.rel (%p296) target = $region48
      $region47: #{attention_speller.1} parent=11 // pred_region
        _
      $region48: #{attention_speller.1} parent=11 // pred_fallthru
        _
    $region12: #{attention_speller.1} parent=5 // pred_fallthru
      _
    %p299 = scmp.lt.s32.totalorder %s16, 2
    // Predicated region
    $region49: #{attention_speller.1} parent=5 // pred_check
      %p300 = pneg %p299
    $region50: #{attention_speller.1} parent=5 // pred_check_branch
      %302 = sbr.rel (%p300) target = $region52
    $region51: #{attention_speller.1} parent=5 // pred_region
      // Predicated region
      $region53: #{attention_speller.1} parent=51 // pred_check
        %p303 = pneg %p36
      $region54: #{attention_speller.1} parent=51 // pred_check_branch
        %305 = sbr.rel (%p303) target = $region56
      $region55: #{attention_speller.1} parent=51 // pred_region
        %s306 = smul.u32 4, %s16
        %p307 = scmp.lt.s32.totalorder %s306, 7
        %s308 = scalar_select %p307, %s306, 7
        %s309 = smul.addr %s308, 8
        %s310 = scalar_lea.vmem %s0, %s309
        %s311 = smul.u32 4, %s16
      $region56: #{attention_speller.1} parent=51 // pred_fallthru
        _
    $region52: #{attention_speller.1} parent=5 // pred_fallthru
      _
    %p312 = scmp.le.s32.totalorder 1, %s16
    %p313 = scmp.lt.s32.totalorder %s16, 3
    %p314 = pnand %p312, %p313
    %p315 = pneg %p314
    // Predicated region
    $region57: #{attention_speller.1} parent=5 // pred_check
      _
    $region58: #{attention_speller.1} parent=5 // pred_check_branch
      %317 = sbr.rel (%p314) target = $region60
    $region59: #{attention_speller.1} parent=5 // pred_region
      %s318 = ssub.s32 %s16, 1
      %s319 = smul.u32 4, %s21
      %p320 = scmp.lt.s32.totalorder %s319, 7
      %s321 = scalar_select %p320, %s319, 7
      %s322 = smul.addr %s321, 8
      %s323 = scalar_lea.vmem %s0, %s322
      %p324 = pneg %p42
      %p325 = pneg %p39
      %p326 = pneg %p63
      %p327 = pneg %p60
      %p328 = pneg %p84
      %p329 = pneg %p81
      %p330 = pneg %p105
      %p331 = pneg %p102
      %p332 = pneg %p126
      %p333 = pneg %p123
      %p334 = pneg %p147
      %p335 = pneg %p144
      %p336 = pneg %p168
      %p337 = pneg %p165
      %p338 = pneg %p189
      %p339 = pneg %p186
      %p340 = pneg %p210
      %p341 = pneg %p207
      %p342 = pneg %p231
      %p343 = pneg %p228
      %p344 = pneg %p257
      %p345 = pneg %p254
      %s346 = smul.u32 4, %s21
      %p347 = scmp.lt.s32.totalorder %s346, 7
      %s348 = scalar_select %p347, %s346, 7
      %s349 = smul.addr %s348, 8
      %s350 = scalar_lea.vmem %s10, %s349
      %s351 = smul.u32 4, %s21
      %p352 = scmp.lt.s32.totalorder %s351, 7
      %s353 = scalar_select %p352, %s351, 7
      %s354 = smul.addr %s353, 8
      %s355 = scalar_lea.vmem %s0, %s354
      %s356 = smul.u32 4, %s21
      %s357 = smul.u32 4, %s21
      %p358 = scmp.lt.s32.totalorder %s357, 7
      %s359 = scalar_select %p358, %s357, 7
      %s360 = smul.addr %s359, 8
      %s361 = scalar_lea.vmem %s10, %s360
      %s362 = smul.u32 4, %s21
      %p363 = scmp.eq.s32.totalorder %s21, 0
      // Predicated region
      $region61: #{attention_speller.1} parent=59 // pred_check
        %p364 = pneg %p363
      $region62: #{attention_speller.1} parent=59 // pred_check_branch
        %366 = sbr.rel (%p364) target = $region64
      $region63: #{attention_speller.1} parent=59 // pred_region
        %v367 = vld [vmem:[%s1] sm:$0xff]
        %vm368 = vcmask 261120
        %369 = vst.msk [vmem:[#allocation2] sm:$0xff] %vm368, %v367
        %v370 = vld [vmem:[%s2] sm:$0xff]
        %s371 = scalar_lea.vmem [#allocation2], 8
        %372 = vst.msk [vmem:[%s371] sm:$0xff] %vm368, %v370
        %s373 = scalar_lea.vmem %s1, 8
        %v374 = vld [vmem:[%s373] sm:$0xff]
        %s375 = scalar_lea.vmem [#allocation2], 16
        %376 = vst.msk [vmem:[%s375] sm:$0xff] %vm368, %v374
        %s377 = scalar_lea.vmem %s2, 8
        %v378 = vld [vmem:[%s377] sm:$0xff]
        %s379 = scalar_lea.vmem [#allocation2], 24
        %380 = vst.msk [vmem:[%s379] sm:$0xff] %vm368, %v378
      $region64: #{attention_speller.1} parent=59 // pred_fallthru
        _
      %v381 = vld [vmem:[%s3] sm:$0xff]
      %v382 = vld [vmem:[%s3 + $0x8] sm:$0x3]
      %v383 = vld [vmem:[%s3 + $0x10] sm:$0xff]
      %v384 = vld [vmem:[%s3 + $0x18] sm:$0x3]
      %v385 = vld [vmem:[%s3 + $0x20] sm:$0xff]
      %v386 = vld [vmem:[%s3 + $0x28] sm:$0x3]
      %v387 = vld [vmem:[%s3 + $0x30] sm:$0xff]
      %v388 = vld [vmem:[%s3 + $0x38] sm:$0x3]
      %v389 = vld [vmem:[%s3 + $0x40] sm:$0xff]
      %v390 = vld [vmem:[%s3 + $0x48] sm:$0x3]
      %v391 = vld [vmem:[%s3 + $0x50] sm:$0xff]
      %v392 = vld [vmem:[%s3 + $0x58] sm:$0x3]
      %v393 = vld [vmem:[%s3 + $0x60] sm:$0xff]
      %v394 = vld [vmem:[%s3 + $0x68] sm:$0x3]
      %v395 = vld [vmem:[%s3 + $0x70] sm:$0xff]
      %v396 = vld [vmem:[%s3 + $0x78] sm:$0x3]
      %v397 = vld [vmem:[%s4] sm:$0xff]
      %v398 = vld [vmem:[%s4 + $0x8] sm:$0xff]
      %v399 = vld [vmem:[%s4 + $0x10] sm:$0xff]
      %v400 = vld [vmem:[%s4 + $0x18] sm:$0xff]
      %v401 = vld [vmem:[%s4 + $0x20] sm:$0xff]
      %v402 = vld [vmem:[%s4 + $0x28] sm:$0xff]
      %v403 = vld [vmem:[%s6] sm:$0xff]
      %v404 = vld [vmem:[%s6 + $0x8] sm:$0xff]
      %v405 = vld [vmem:[%s6 + $0x10] sm:$0xff]
      %v406 = vld [vmem:[%s6 + $0x18] sm:$0xff]
      %v407 = vld [vmem:[%s6 + $0x20] sm:$0xff]
      %v408 = vld [vmem:[%s6 + $0x28] sm:$0xff]
      %v409 = vld [vmem:[%s6 + $0x30] sm:$0xff]
      %v410 = vld [vmem:[%s6 + $0x38] sm:$0xff]
      %v411 = vld [vmem:[%s5] sm:$0x1]
      %v413 = vperm.slane %v411, 0
      %v415 = vld [vmem:[%s7] sm:$0x1]
      %v417 = vperm.slane %v415, 0
      %v419 = vld [vmem:[#allocation2] sm:$0xff]
      %s420 = scalar_lea.vmem [#allocation2], 8
      %v421 = vld [vmem:[%s420] sm:$0xff]
      %s422 = scalar_lea.vmem [#allocation2], 16
      %v423 = vld [vmem:[%s422] sm:$0xff]
      %s424 = scalar_lea.vmem [#allocation2], 24
      %v425 = vld [vmem:[%s424] sm:$0xff]
      %v426 = vld [vmem:[%s355] sm:$0xff]
      %428 = vrot.lane.b32.xlu0 %v419, 16
      %v429 = vpop.permute.xlu0 %428
      %vm431 = vcmask 130048
      %v432 = vsel %vm431, %v426, %v429
      %vm433 = vcmask 392192
      %v435 = vsel %vm433, %v432, 0
      %437 = vmatpush.msra.mxu0 0.0
      %438 = vmatpush.msra.mxu0 0.0
      %439 = vmatpush.msra.mxu0 0.0
      %440 = vmatpush.msra.mxu0 0.0
      %441 = vmatpush.msra.mxu0 0.0
      %442 = vmatpush.msra.mxu0 0.0
      %443 = vmatpush.msra.mxu0 0.0
      %444 = vmatpush.msra.mxu0 0.0
      %445 = vmatpush.msra.mxu0 0.0
      %446 = vmatpush.msra.mxu0 0.0
      %447 = vmatpush.msra.mxu0 %v402
      %448 = vmatpush.msra.mxu0 %v401
      %449 = vmatpush.msra.mxu0 %v400
      %450 = vmatpush.msra.mxu0 %v399
      %451 = vmatpush.msra.mxu0 %v398
      %452 = vmatpush.msra.mxu0 %v397
      %453 = vmatmul.f32.gmra.mxu0 %v435
      %v454 = vpop.f32.mrf.mxu0
      %v455 = vadd.f32 %v413, %v454
      %456 = vdwg.mxu0
      %v457 = vxor.u32 %v455, 2147483648
      %v458 = vmul.f32 %v457, 1.442695
      %v459 = vpow.pop %v458
      %v460 = vadd.f32 %v459, 1.0
      %v461 = vrcp.pop %v460
      %v462 = vmul.f32 %v460, %v461
      %v463 = vsub.f32 1.0, %v462
      %v464 = vmul.f32 %v461, %v463
      %v465 = vadd.f32 %v461, %v464
      %vm466 = vweird.f32 %v460
      %vm467 = vweird.f32 %v461
      %vm468 = vmor %vm466, %vm467
      %v469 = vsel %vm468, %v461, %v465
      %v470 = vand.u32 2147483647, %v460
      %vm471 = vcmp.eq.f32.partialorder %v470, 8.507059e+37
      %v472 = vand.u32 %v460, 2147483648
      %v473 = vor.u32 1.1754944e-38, %v472
      %v474 = vsel %vm471, %v473, %v469
      %v475 = vmul.f32 1.0, %v474
      %v476 = vtanh.pop %v455
      %478 = vrot.lane.b32.xlu0 %v421, 32
      %v479 = vpop.permute.xlu0 %478
      %v481 = vmul.f32 %v475, %v479
      %483 = vrot.lane.b32.xlu0 %v476, 64
      %v484 = vpop.permute.xlu0 %483
      %v486 = vmul.f32 %v475, %v484
      %488 = vrot.lane.b32.xlu0 %v486, 32
      %v489 = vpop.permute.xlu0 %488
      %v491 = vadd.f32 %v481, %v489
      %v492 = vtanh.pop %v491
      %494 = vrot.lane.b32.xlu0 %v492, 64
      %v495 = vpop.permute.xlu0 %494
      %v497 = vmul.f32 %v475, %v495
      %v499 = vrot.slane %v497, 1
      %v500 = vrot.slane %v497, 2
      %v501 = vrot.slane %v497, 3
      %v502 = vrot.slane %v497, 4
      %v503 = vrot.slane %v497, 5
      %v504 = vrot.slane %v497, 6
      %v505 = vrot.slane %v497, 7
      %v506 = vperm.slane %v497, 0
      %v507 = vperm.slane %v499, 0
      %v508 = vperm.slane %v500, 0
      %v509 = vperm.slane %v501, 0
      %v510 = vperm.slane %v502, 0
      %v511 = vperm.slane %v503, 0
      %v512 = vperm.slane %v504, 0
      %v513 = vperm.slane %v505, 0
      %514 = vrot.lane.b32.xlu0 %v506, 32
      %v515 = vpop.permute.xlu0 %514
      %516 = vrot.lane.b32.xlu0 %v507, 32
      %v517 = vpop.permute.xlu0 %516
      %518 = vrot.lane.b32.xlu0 %v508, 32
      %v519 = vpop.permute.xlu0 %518
      %520 = vrot.lane.b32.xlu0 %v509, 32
      %v521 = vpop.permute.xlu0 %520
      %522 = vrot.lane.b32.xlu0 %v510, 32
      %v523 = vpop.permute.xlu0 %522
      %524 = vrot.lane.b32.xlu0 %v511, 32
      %v525 = vpop.permute.xlu0 %524
      %526 = vrot.lane.b32.xlu0 %v512, 32
      %v527 = vpop.permute.xlu0 %526
      %528 = vrot.lane.b32.xlu0 %v513, 32
      %v529 = vpop.permute.xlu0 %528
      %v538 = vmul.f32 %v381, %v515
      %v539 = vmul.f32 %v382, %v515
      %v540 = vmul.f32 %v383, %v517
      %v541 = vmul.f32 %v384, %v517
      %v542 = vmul.f32 %v385, %v519
      %v543 = vmul.f32 %v386, %v519
      %v544 = vmul.f32 %v387, %v521
      %v545 = vmul.f32 %v388, %v521
      %v546 = vmul.f32 %v389, %v523
      %v547 = vmul.f32 %v390, %v523
      %v548 = vmul.f32 %v391, %v525
      %v549 = vmul.f32 %v392, %v525
      %v550 = vmul.f32 %v393, %v527
      %v551 = vmul.f32 %v394, %v527
      %v552 = vmul.f32 %v395, %v529
      %v553 = vmul.f32 %v396, %v529
      %vm554 = vcmask 261120
      %v555 = vsel %vm554, %v538, 0.0
      %556 = vadd.xlane.f32.xlu0 %v555
      %v557 = vpop.xlane.xlu0 %556
      %vm558 = vcmask 254976
      %v559 = vsel %vm558, %v539, 0.0
      %560 = vadd.xlane.f32.xlu0 %v559
      %v561 = vpop.xlane.xlu0 %560
      %v562 = vsel %vm554, %v540, 0.0
      %563 = vadd.xlane.f32.xlu0 %v562
      %v564 = vpop.xlane.xlu0 %563
      %v565 = vsel %vm558, %v541, 0.0
      %566 = vadd.xlane.f32.xlu0 %v565
      %v567 = vpop.xlane.xlu0 %566
      %v568 = vsel %vm554, %v542, 0.0
      %569 = vadd.xlane.f32.xlu0 %v568
      %v570 = vpop.xlane.xlu0 %569
      %v571 = vsel %vm558, %v543, 0.0
      %572 = vadd.xlane.f32.xlu0 %v571
      %v573 = vpop.xlane.xlu0 %572
      %v574 = vsel %vm554, %v544, 0.0
      %575 = vadd.xlane.f32.xlu0 %v574
      %v576 = vpop.xlane.xlu0 %575
      %v577 = vsel %vm558, %v545, 0.0
      %578 = vadd.xlane.f32.xlu0 %v577
      %v579 = vpop.xlane.xlu0 %578
      %v580 = vsel %vm554, %v546, 0.0
      %581 = vadd.xlane.f32.xlu0 %v580
      %v582 = vpop.xlane.xlu0 %581
      %v583 = vsel %vm558, %v547, 0.0
      %584 = vadd.xlane.f32.xlu0 %v583
      %v585 = vpop.xlane.xlu0 %584
      %v586 = vsel %vm554, %v548, 0.0
      %587 = vadd.xlane.f32.xlu0 %v586
      %v588 = vpop.xlane.xlu0 %587
      %v589 = vsel %vm558, %v549, 0.0
      %590 = vadd.xlane.f32.xlu0 %v589
      %v591 = vpop.xlane.xlu0 %590
      %v592 = vsel %vm554, %v550, 0.0
      %593 = vadd.xlane.f32.xlu0 %v592
      %v594 = vpop.xlane.xlu0 %593
      %v595 = vsel %vm558, %v551, 0.0
      %596 = vadd.xlane.f32.xlu0 %v595
      %v597 = vpop.xlane.xlu0 %596
      %v598 = vsel %vm554, %v552, 0.0
      %599 = vadd.xlane.f32.xlu0 %v598
      %v600 = vpop.xlane.xlu0 %599
      %v601 = vsel %vm558, %v553, 0.0
      %602 = vadd.xlane.f32.xlu0 %v601
      %v603 = vpop.xlane.xlu0 %602
      %v620 = vlaneseq
      %v621 = vand.u32 %v620, 127
      %v622 = vperm.slane %v557, %v621
      %v623 = vadd.s32 %v621, 4294967288
      %v624 = vperm.slane %v561, %v623
      %vm625 = vcmask 130112
      %v626 = vsel %vm625, %v624, %v622
      %v627 = vperm.slane %v564, %v621
      %v628 = vperm.slane %v567, %v623
      %v629 = vsel %vm625, %v628, %v627
      %v630 = vperm.slane %v570, %v621
      %v631 = vperm.slane %v573, %v623
      %v632 = vsel %vm625, %v631, %v630
      %v633 = vperm.slane %v576, %v621
      %v634 = vperm.slane %v579, %v623
      %v635 = vsel %vm625, %v634, %v633
      %v636 = vperm.slane %v582, %v621
      %v637 = vperm.slane %v585, %v623
      %v638 = vsel %vm625, %v637, %v636
      %v639 = vperm.slane %v588, %v621
      %v640 = vperm.slane %v591, %v623
      %v641 = vsel %vm625, %v640, %v639
      %v642 = vperm.slane %v594, %v621
      %v643 = vperm.slane %v597, %v623
      %v644 = vsel %vm625, %v643, %v642
      %v645 = vperm.slane %v600, %v621
      %v646 = vperm.slane %v603, %v623
      %v647 = vsel %vm625, %v646, %v645
      %vm648 = vcmask 1041409
      %v649 = vsel %vm648, %v629, %v626
      %vm650 = vcmask 1042434
      %v651 = vsel %vm650, %v632, %v649
      %vm652 = vcmask 1043459
      %v653 = vsel %vm652, %v635, %v651
      %vm654 = vcmask 1044484
      %v655 = vsel %vm654, %v638, %v653
      %vm656 = vcmask 1045509
      %v657 = vsel %vm656, %v641, %v655
      %vm658 = vcmask 1046534
      %v659 = vsel %vm658, %v644, %v657
      %vm660 = vcmask 1047559
      %v661 = vsel %vm660, %v647, %v659
      %vm663 = vcmask 80896
      %v664 = vsel %vm663, %v661, -inf
      %665 = vmax.xlane.f32.xlu0 %v664
      %v666 = vpop.xlane.xlu0 %665
      %v668 = vperm.slane %v666, 0
      %v669 = vperm.slane %v666, 1
      %v670 = vperm.slane %v666, 2
      %v671 = vperm.slane %v666, 3
      %v672 = vperm.slane %v666, 4
      %v673 = vperm.slane %v666, 5
      %v674 = vperm.slane %v666, 6
      %v675 = vperm.slane %v666, 7
      %v684 = vsub.f32 %v557, %v668
      %v685 = vsub.f32 %v561, %v668
      %v686 = vsub.f32 %v564, %v669
      %v687 = vsub.f32 %v567, %v669
      %v688 = vsub.f32 %v570, %v670
      %v689 = vsub.f32 %v573, %v670
      %v690 = vsub.f32 %v576, %v671
      %v691 = vsub.f32 %v579, %v671
      %v692 = vsub.f32 %v582, %v672
      %v693 = vsub.f32 %v585, %v672
      %v694 = vsub.f32 %v588, %v673
      %v695 = vsub.f32 %v591, %v673
      %v696 = vsub.f32 %v594, %v674
      %v697 = vsub.f32 %v597, %v674
      %v698 = vsub.f32 %v600, %v675
      %v699 = vsub.f32 %v603, %v675
      %v700 = vmul.f32 %v684, 1.442695
      %v701 = vpow.pop %v700
      %v702 = vmul.f32 %v685, 1.442695
      %v703 = vpow.pop %v702
      %v704 = vmul.f32 %v686, 1.442695
      %v705 = vpow.pop %v704
      %v706 = vmul.f32 %v687, 1.442695
      %v707 = vpow.pop %v706
      %v708 = vmul.f32 %v688, 1.442695
      %v709 = vpow.pop %v708
      %v710 = vmul.f32 %v689, 1.442695
      %v711 = vpow.pop %v710
      %v712 = vmul.f32 %v690, 1.442695
      %v713 = vpow.pop %v712
      %v714 = vmul.f32 %v691, 1.442695
      %v715 = vpow.pop %v714
      %v716 = vmul.f32 %v692, 1.442695
      %v717 = vpow.pop %v716
      %v718 = vmul.f32 %v693, 1.442695
      %v719 = vpow.pop %v718
      %v720 = vmul.f32 %v694, 1.442695
      %v721 = vpow.pop %v720
      %v722 = vmul.f32 %v695, 1.442695
      %v723 = vpow.pop %v722
      %v724 = vmul.f32 %v696, 1.442695
      %v725 = vpow.pop %v724
      %v726 = vmul.f32 %v697, 1.442695
      %v727 = vpow.pop %v726
      %v728 = vmul.f32 %v698, 1.442695
      %v729 = vpow.pop %v728
      %v730 = vmul.f32 %v699, 1.442695
      %v731 = vpow.pop %v730
      %748 = vset.pattern.permute.xlu0 0
      %749 = vperm.xlu0 %748, %v701
      %v750 = vpop.permute.xlu0 %749
      %751 = vset.pattern.permute.xlu0 0
      %752 = vperm.xlu0 %751, %v703
      %v753 = vpop.permute.xlu0 %752
      %754 = vset.pattern.permute.xlu0 0
      %755 = vperm.xlu0 %754, %v705
      %v756 = vpop.permute.xlu0 %755
      %757 = vset.pattern.permute.xlu0 0
      %758 = vperm.xlu0 %757, %v707
      %v759 = vpop.permute.xlu0 %758
      %760 = vset.pattern.permute.xlu0 0
      %761 = vperm.xlu0 %760, %v709
      %v762 = vpop.permute.xlu0 %761
      %763 = vset.pattern.permute.xlu0 0
      %764 = vperm.xlu0 %763, %v711
      %v765 = vpop.permute.xlu0 %764
      %766 = vset.pattern.permute.xlu0 0
      %767 = vperm.xlu0 %766, %v713
      %v768 = vpop.permute.xlu0 %767
      %769 = vset.pattern.permute.xlu0 0
      %770 = vperm.xlu0 %769, %v715
      %v771 = vpop.permute.xlu0 %770
      %772 = vset.pattern.permute.xlu0 0
      %773 = vperm.xlu0 %772, %v717
      %v774 = vpop.permute.xlu0 %773
      %775 = vset.pattern.permute.xlu0 0
      %776 = vperm.xlu0 %775, %v719
      %v777 = vpop.permute.xlu0 %776
      %778 = vset.pattern.permute.xlu0 0
      %779 = vperm.xlu0 %778, %v721
      %v780 = vpop.permute.xlu0 %779
      %781 = vset.pattern.permute.xlu0 0
      %782 = vperm.xlu0 %781, %v723
      %v783 = vpop.permute.xlu0 %782
      %784 = vset.pattern.permute.xlu0 0
      %785 = vperm.xlu0 %784, %v725
      %v786 = vpop.permute.xlu0 %785
      %787 = vset.pattern.permute.xlu0 0
      %788 = vperm.xlu0 %787, %v727
      %v789 = vpop.permute.xlu0 %788
      %790 = vset.pattern.permute.xlu0 0
      %791 = vperm.xlu0 %790, %v729
      %v792 = vpop.permute.xlu0 %791
      %793 = vset.pattern.permute.xlu0 0
      %794 = vperm.xlu0 %793, %v731
      %v795 = vpop.permute.xlu0 %794
      %v796 = vperm.slane %v750, %v621
      %v797 = vperm.slane %v753, %v623
      %v798 = vsel %vm625, %v797, %v796
      %v799 = vperm.slane %v756, %v621
      %v800 = vperm.slane %v759, %v623
      %v801 = vsel %vm625, %v800, %v799
      %v802 = vperm.slane %v762, %v621
      %v803 = vperm.slane %v765, %v623
      %v804 = vsel %vm625, %v803, %v802
      %v805 = vperm.slane %v768, %v621
      %v806 = vperm.slane %v771, %v623
      %v807 = vsel %vm625, %v806, %v805
      %v808 = vperm.slane %v774, %v621
      %v809 = vperm.slane %v777, %v623
      %v810 = vsel %vm625, %v809, %v808
      %v811 = vperm.slane %v780, %v621
      %v812 = vperm.slane %v783, %v623
      %v813 = vsel %vm625, %v812, %v811
      %v814 = vperm.slane %v786, %v621
      %v815 = vperm.slane %v789, %v623
      %v816 = vsel %vm625, %v815, %v814
      %v817 = vperm.slane %v792, %v621
      %v818 = vperm.slane %v795, %v623
      %v819 = vsel %vm625, %v818, %v817
      %v820 = vsel %vm648, %v801, %v798
      %v821 = vsel %vm650, %v804, %v820
      %v822 = vsel %vm652, %v807, %v821
      %v823 = vsel %vm654, %v810, %v822
      %v824 = vsel %vm656, %v813, %v823
      %v825 = vsel %vm658, %v816, %v824
      %v826 = vsel %vm660, %v819, %v825
      %v828 = vsel %vm663, %v826, 0.0
      %829 = vadd.xlane.f32.xlu0 %v828
      %v830 = vpop.xlane.xlu0 %829
      %v831 = vrcp.pop %v830
      %v833 = vperm.slane %v831, 0
      %v834 = vperm.slane %v831, 1
      %v835 = vperm.slane %v831, 2
      %v836 = vperm.slane %v831, 3
      %v837 = vperm.slane %v831, 4
      %v838 = vperm.slane %v831, 5
      %v839 = vperm.slane %v831, 6
      %v840 = vperm.slane %v831, 7
      %v849 = vmul.f32 %v701, %v833
      %v850 = vmul.f32 %v703, %v833
      %v851 = vmul.f32 %v705, %v834
      %v852 = vmul.f32 %v707, %v834
      %v853 = vmul.f32 %v709, %v835
      %v854 = vmul.f32 %v711, %v835
      %v855 = vmul.f32 %v713, %v836
      %v856 = vmul.f32 %v715, %v836
      %v857 = vmul.f32 %v717, %v837
      %v858 = vmul.f32 %v719, %v837
      %v859 = vmul.f32 %v721, %v838
      %v860 = vmul.f32 %v723, %v838
      %v861 = vmul.f32 %v725, %v839
      %v862 = vmul.f32 %v727, %v839
      %v863 = vmul.f32 %v729, %v840
      %v864 = vmul.f32 %v731, %v840
      %866 = vset.pattern.permute.xlu0 0
      %867 = vperm.xlu0 %866, %v849
      %v868 = vpop.permute.xlu0 %867
      %871 = vset.pattern.permute.xlu0 0
      %872 = vperm.xlu0 %871, %v850
      %v873 = vpop.permute.xlu0 %872
      %876 = vset.pattern.permute.xlu0 0
      %877 = vperm.xlu0 %876, %v851
      %v878 = vpop.permute.xlu0 %877
      %881 = vset.pattern.permute.xlu0 0
      %882 = vperm.xlu0 %881, %v852
      %v883 = vpop.permute.xlu0 %882
      %886 = vset.pattern.permute.xlu0 0
      %887 = vperm.xlu0 %886, %v853
      %v888 = vpop.permute.xlu0 %887
      %891 = vset.pattern.permute.xlu0 0
      %892 = vperm.xlu0 %891, %v854
      %v893 = vpop.permute.xlu0 %892
      %896 = vset.pattern.permute.xlu0 0
      %897 = vperm.xlu0 %896, %v855
      %v898 = vpop.permute.xlu0 %897
      %901 = vset.pattern.permute.xlu0 0
      %902 = vperm.xlu0 %901, %v856
      %v903 = vpop.permute.xlu0 %902
      %906 = vset.pattern.permute.xlu0 0
      %907 = vperm.xlu0 %906, %v857
      %v908 = vpop.permute.xlu0 %907
      %911 = vset.pattern.permute.xlu0 0
      %912 = vperm.xlu0 %911, %v858
      %v913 = vpop.permute.xlu0 %912
      %916 = vset.pattern.permute.xlu0 0
      %917 = vperm.xlu0 %916, %v859
      %v918 = vpop.permute.xlu0 %917
      %921 = vset.pattern.permute.xlu0 0
      %922 = vperm.xlu0 %921, %v860
      %v923 = vpop.permute.xlu0 %922
      %926 = vset.pattern.permute.xlu0 0
      %927 = vperm.xlu0 %926, %v861
      %v928 = vpop.permute.xlu0 %927
      %931 = vset.pattern.permute.xlu0 0
      %932 = vperm.xlu0 %931, %v862
      %v933 = vpop.permute.xlu0 %932
      %936 = vset.pattern.permute.xlu0 0
      %937 = vperm.xlu0 %936, %v863
      %v938 = vpop.permute.xlu0 %937
      %941 = vset.pattern.permute.xlu0 0
      %942 = vperm.xlu0 %941, %v864
      %v943 = vpop.permute.xlu0 %942
      %v945 = vmul.f32 %v868, %v381
      %v946 = vmul.f32 %v873, %v382
      %v947 = vmul.f32 %v878, %v383
      %v948 = vmul.f32 %v883, %v384
      %v949 = vmul.f32 %v888, %v385
      %v950 = vmul.f32 %v893, %v386
      %v951 = vmul.f32 %v898, %v387
      %v952 = vmul.f32 %v903, %v388
      %v953 = vmul.f32 %v908, %v389
      %v954 = vmul.f32 %v913, %v390
      %v955 = vmul.f32 %v918, %v391
      %v956 = vmul.f32 %v923, %v392
      %v957 = vmul.f32 %v928, %v393
      %v958 = vmul.f32 %v933, %v394
      %v959 = vmul.f32 %v938, %v395
      %v960 = vmul.f32 %v943, %v396
      %v961 = vsel %vm554, %v945, 0.0
      %v962 = vsel %vm558, %v946, 0.0
      %v963 = vadd.f32 %v961, %v962
      %v964 = vrot.slane %v963, 4
      %v965 = vadd.f32 %v963, %v964
      %v966 = vrot.slane %v965, 2
      %v967 = vadd.f32 %v965, %v966
      %v968 = vrot.slane %v967, 1
      %v969 = vadd.f32 %v967, %v968
      %v970 = vsel %vm554, %v947, 0.0
      %v971 = vsel %vm558, %v948, 0.0
      %v972 = vadd.f32 %v970, %v971
      %v973 = vrot.slane %v972, 4
      %v974 = vadd.f32 %v972, %v973
      %v975 = vrot.slane %v974, 2
      %v976 = vadd.f32 %v974, %v975
      %v977 = vrot.slane %v976, 1
      %v978 = vadd.f32 %v976, %v977
      %v979 = vsel %vm554, %v949, 0.0
      %v980 = vsel %vm558, %v950, 0.0
      %v981 = vadd.f32 %v979, %v980
      %v982 = vrot.slane %v981, 4
      %v983 = vadd.f32 %v981, %v982
      %v984 = vrot.slane %v983, 2
      %v985 = vadd.f32 %v983, %v984
      %v986 = vrot.slane %v985, 1
      %v987 = vadd.f32 %v985, %v986
      %v988 = vsel %vm554, %v951, 0.0
      %v989 = vsel %vm558, %v952, 0.0
      %v990 = vadd.f32 %v988, %v989
      %v991 = vrot.slane %v990, 4
      %v992 = vadd.f32 %v990, %v991
      %v993 = vrot.slane %v992, 2
      %v994 = vadd.f32 %v992, %v993
      %v995 = vrot.slane %v994, 1
      %v996 = vadd.f32 %v994, %v995
      %v997 = vsel %vm554, %v953, 0.0
      %v998 = vsel %vm558, %v954, 0.0
      %v999 = vadd.f32 %v997, %v998
      %v1000 = vrot.slane %v999, 4
      %v1001 = vadd.f32 %v999, %v1000
      %v1002 = vrot.slane %v1001, 2
      %v1003 = vadd.f32 %v1001, %v1002
      %v1004 = vrot.slane %v1003, 1
      %v1005 = vadd.f32 %v1003, %v1004
      %v1006 = vsel %vm554, %v955, 0.0
      %v1007 = vsel %vm558, %v956, 0.0
      %v1008 = vadd.f32 %v1006, %v1007
      %v1009 = vrot.slane %v1008, 4
      %v1010 = vadd.f32 %v1008, %v1009
      %v1011 = vrot.slane %v1010, 2
      %v1012 = vadd.f32 %v1010, %v1011
      %v1013 = vrot.slane %v1012, 1
      %v1014 = vadd.f32 %v1012, %v1013
      %v1015 = vsel %vm554, %v957, 0.0
      %v1016 = vsel %vm558, %v958, 0.0
      %v1017 = vadd.f32 %v1015, %v1016
      %v1018 = vrot.slane %v1017, 4
      %v1019 = vadd.f32 %v1017, %v1018
      %v1020 = vrot.slane %v1019, 2
      %v1021 = vadd.f32 %v1019, %v1020
      %v1022 = vrot.slane %v1021, 1
      %v1023 = vadd.f32 %v1021, %v1022
      %v1024 = vsel %vm554, %v959, 0.0
      %v1025 = vsel %vm558, %v960, 0.0
      %v1026 = vadd.f32 %v1024, %v1025
      %v1027 = vrot.slane %v1026, 4
      %v1028 = vadd.f32 %v1026, %v1027
      %v1029 = vrot.slane %v1028, 2
      %v1030 = vadd.f32 %v1028, %v1029
      %v1031 = vrot.slane %v1030, 1
      %v1032 = vadd.f32 %v1030, %v1031
      %v1041 = vsel %vm648, %v978, %v969
      %v1042 = vsel %vm650, %v987, %v1041
      %v1043 = vsel %vm652, %v996, %v1042
      %v1044 = vsel %vm654, %v1005, %v1043
      %v1045 = vsel %vm656, %v1014, %v1044
      %v1046 = vsel %vm658, %v1023, %v1045
      %v1047 = vsel %vm660, %v1032, %v1046
      %1050 = vrot.lane.b32.xlu0 %v423, 32
      %v1051 = vpop.permute.xlu0 %1050
      %v1053 = vsel %vm554, %v1047, %v1051
      %vm1054 = vcmask 523264
      %v1056 = vsel %vm1054, %v1053, 0
      %1058 = vmatpush.msra.mxu0 0.0
      %1059 = vmatpush.msra.mxu0 0.0
      %1060 = vmatpush.msra.mxu0 0.0
      %1061 = vmatpush.msra.mxu0 0.0
      %1062 = vmatpush.msra.mxu0 0.0
      %1063 = vmatpush.msra.mxu0 0.0
      %1064 = vmatpush.msra.mxu0 0.0
      %1065 = vmatpush.msra.mxu0 0.0
      %1066 = vmatpush.msra.mxu0 %v410
      %1067 = vmatpush.msra.mxu0 %v409
      %1068 = vmatpush.msra.mxu0 %v408
      %1069 = vmatpush.msra.mxu0 %v407
      %1070 = vmatpush.msra.mxu0 %v406
      %1071 = vmatpush.msra.mxu0 %v405
      %1072 = vmatpush.msra.mxu0 %v404
      %1073 = vmatpush.msra.mxu0 %v403
      %1074 = vmatmul.f32.gmra.mxu0 %v1056
      %v1075 = vpop.f32.mrf.mxu0
      %v1076 = vadd.f32 %v417, %v1075
      %1077 = vdwg.mxu0
      %v1078 = vxor.u32 %v1076, 2147483648
      %v1079 = vmul.f32 %v1078, 1.442695
      %v1080 = vpow.pop %v1079
      %v1081 = vadd.f32 %v1080, 1.0
      %v1082 = vrcp.pop %v1081
      %v1083 = vmul.f32 %v1081, %v1082
      %v1084 = vsub.f32 1.0, %v1083
      %v1085 = vmul.f32 %v1082, %v1084
      %v1086 = vadd.f32 %v1082, %v1085
      %vm1087 = vweird.f32 %v1081
      %vm1088 = vweird.f32 %v1082
      %vm1089 = vmor %vm1087, %vm1088
      %v1090 = vsel %vm1089, %v1082, %v1086
      %v1091 = vand.u32 2147483647, %v1081
      %vm1092 = vcmp.eq.f32.partialorder %v1091, 8.507059e+37
      %v1093 = vand.u32 %v1081, 2147483648
      %v1094 = vor.u32 1.1754944e-38, %v1093
      %v1095 = vsel %vm1092, %v1094, %v1090
      %v1096 = vmul.f32 1.0, %v1095
      %v1097 = vtanh.pop %v1076
      %1099 = vrot.lane.b32.xlu0 %v425, 32
      %v1100 = vpop.permute.xlu0 %1099
      %v1102 = vmul.f32 %v1096, %v1100
      %1104 = vrot.lane.b32.xlu0 %v1097, 64
      %v1105 = vpop.permute.xlu0 %1104
      %v1107 = vmul.f32 %v1096, %v1105
      %1109 = vrot.lane.b32.xlu0 %v1107, 32
      %v1110 = vpop.permute.xlu0 %1109
      %v1112 = vadd.f32 %v1102, %v1110
      %v1113 = vtanh.pop %v1112
      %1115 = vrot.lane.b32.xlu0 %v1113, 64
      %v1116 = vpop.permute.xlu0 %1115
      %v1118 = vmul.f32 %v1096, %v1116
      %1120 = vrot.lane.b32.xlu0 %v1118, 32
      %v1121 = vpop.permute.xlu0 %1120
      %1123 = vst.msk [vmem:[#allocation3] sm:$0xff] %vm554, %v1121
      %s1124 = scalar_lea.vmem %s355, 8
      %v1125 = vld [vmem:[%s1124] sm:$0xff]
      %1126 = vrot.lane.b32.xlu0 %v497, 48
      %v1127 = vpop.permute.xlu0 %1126
      %v1129 = vsel %vm431, %v1125, %v1127
      %v1131 = vsel %vm433, %v1129, 0
      %1133 = vmatpush.msra.mxu0 0.0
      %1134 = vmatpush.msra.mxu0 0.0
      %1135 = vmatpush.msra.mxu0 0.0
      %1136 = vmatpush.msra.mxu0 0.0
      %1137 = vmatpush.msra.mxu0 0.0
      %1138 = vmatpush.msra.mxu0 0.0
      %1139 = vmatpush.msra.mxu0 0.0
      %1140 = vmatpush.msra.mxu0 0.0
      %1141 = vmatpush.msra.mxu0 0.0
      %1142 = vmatpush.msra.mxu0 0.0
      %1143 = vmatpush.msra.mxu0 %v402
      %1144 = vmatpush.msra.mxu0 %v401
      %1145 = vmatpush.msra.mxu0 %v400
      %1146 = vmatpush.msra.mxu0 %v399
      %1147 = vmatpush.msra.mxu0 %v398
      %1148 = vmatpush.msra.mxu0 %v397
      %1149 = vmatmul.f32.gmra.mxu0 %v1131
      %v1150 = vpop.f32.mrf.mxu0
      %v1151 = vadd.f32 %v413, %v1150
      %1152 = vdwg.mxu0
      %v1153 = vxor.u32 %v1151, 2147483648
      %v1154 = vmul.f32 %v1153, 1.442695
      %v1155 = vpow.pop %v1154
      %v1156 = vadd.f32 %v1155, 1.0
      %v1157 = vrcp.pop %v1156
      %v1158 = vmul.f32 %v1156, %v1157
      %v1159 = vsub.f32 1.0, %v1158
      %v1160 = vmul.f32 %v1157, %v1159
      %v1161 = vadd.f32 %v1157, %v1160
      %vm1162 = vweird.f32 %v1156
      %vm1163 = vweird.f32 %v1157
      %vm1164 = vmor %vm1162, %vm1163
      %v1165 = vsel %vm1164, %v1157, %v1161
      %v1166 = vand.u32 2147483647, %v1156
      %vm1167 = vcmp.eq.f32.partialorder %v1166, 8.507059e+37
      %v1168 = vand.u32 %v1156, 2147483648
      %v1169 = vor.u32 1.1754944e-38, %v1168
      %v1170 = vsel %vm1167, %v1169, %v1165
      %v1171 = vmul.f32 1.0, %v1170
      %v1172 = vtanh.pop %v1151
      %v1173 = vmul.f32 %v1171, %v491
      %1175 = vrot.lane.b32.xlu0 %v1172, 64
      %v1176 = vpop.permute.xlu0 %1175
      %v1178 = vmul.f32 %v1171, %v1176
      %1180 = vrot.lane.b32.xlu0 %v1178, 32
      %v1181 = vpop.permute.xlu0 %1180
      %v1183 = vadd.f32 %v1173, %v1181
      %v1184 = vtanh.pop %v1183
      %1186 = vrot.lane.b32.xlu0 %v1184, 64
      %v1187 = vpop.permute.xlu0 %1186
      %v1189 = vmul.f32 %v1171, %v1187
      %v1191 = vrot.slane %v1189, 1
      %v1192 = vrot.slane %v1189, 2
      %v1193 = vrot.slane %v1189, 3
      %v1194 = vrot.slane %v1189, 4
      %v1195 = vrot.slane %v1189, 5
      %v1196 = vrot.slane %v1189, 6
      %v1197 = vrot.slane %v1189, 7
      %v1198 = vperm.slane %v1189, 0
      %v1199 = vperm.slane %v1191, 0
      %v1200 = vperm.slane %v1192, 0
      %v1201 = vperm.slane %v1193, 0
      %v1202 = vperm.slane %v1194, 0
      %v1203 = vperm.slane %v1195, 0
      %v1204 = vperm.slane %v1196, 0
      %v1205 = vperm.slane %v1197, 0
      %1206 = vrot.lane.b32.xlu0 %v1198, 32
      %v1207 = vpop.permute.xlu0 %1206
      %1208 = vrot.lane.b32.xlu0 %v1199, 32
      %v1209 = vpop.permute.xlu0 %1208
      %1210 = vrot.lane.b32.xlu0 %v1200, 32
      %v1211 = vpop.permute.xlu0 %1210
      %1212 = vrot.lane.b32.xlu0 %v1201, 32
      %v1213 = vpop.permute.xlu0 %1212
      %1214 = vrot.lane.b32.xlu0 %v1202, 32
      %v1215 = vpop.permute.xlu0 %1214
      %1216 = vrot.lane.b32.xlu0 %v1203, 32
      %v1217 = vpop.permute.xlu0 %1216
      %1218 = vrot.lane.b32.xlu0 %v1204, 32
      %v1219 = vpop.permute.xlu0 %1218
      %1220 = vrot.lane.b32.xlu0 %v1205, 32
      %v1221 = vpop.permute.xlu0 %1220
      %v1230 = vmul.f32 %v381, %v1207
      %v1231 = vmul.f32 %v382, %v1207
      %v1232 = vmul.f32 %v383, %v1209
      %v1233 = vmul.f32 %v384, %v1209
      %v1234 = vmul.f32 %v385, %v1211
      %v1235 = vmul.f32 %v386, %v1211
      %v1236 = vmul.f32 %v387, %v1213
      %v1237 = vmul.f32 %v388, %v1213
      %v1238 = vmul.f32 %v389, %v1215
      %v1239 = vmul.f32 %v390, %v1215
      %v1240 = vmul.f32 %v391, %v1217
      %v1241 = vmul.f32 %v392, %v1217
      %v1242 = vmul.f32 %v393, %v1219
      %v1243 = vmul.f32 %v394, %v1219
      %v1244 = vmul.f32 %v395, %v1221
      %v1245 = vmul.f32 %v396, %v1221
      %v1246 = vsel %vm554, %v1230, 0.0
      %1247 = vadd.xlane.f32.xlu0 %v1246
      %v1248 = vpop.xlane.xlu0 %1247
      %v1249 = vsel %vm558, %v1231, 0.0
      %1250 = vadd.xlane.f32.xlu0 %v1249
      %v1251 = vpop.xlane.xlu0 %1250
      %v1252 = vsel %vm554, %v1232, 0.0
      %1253 = vadd.xlane.f32.xlu0 %v1252
      %v1254 = vpop.xlane.xlu0 %1253
      %v1255 = vsel %vm558, %v1233, 0.0
      %1256 = vadd.xlane.f32.xlu0 %v1255
      %v1257 = vpop.xlane.xlu0 %1256
      %v1258 = vsel %vm554, %v1234, 0.0
      %1259 = vadd.xlane.f32.xlu0 %v1258
      %v1260 = vpop.xlane.xlu0 %1259
      %v1261 = vsel %vm558, %v1235, 0.0
      %1262 = vadd.xlane.f32.xlu0 %v1261
      %v1263 = vpop.xlane.xlu0 %1262
      %v1264 = vsel %vm554, %v1236, 0.0
      %1265 = vadd.xlane.f32.xlu0 %v1264
      %v1266 = vpop.xlane.xlu0 %1265
      %v1267 = vsel %vm558, %v1237, 0.0
      %1268 = vadd.xlane.f32.xlu0 %v1267
      %v1269 = vpop.xlane.xlu0 %1268
      %v1270 = vsel %vm554, %v1238, 0.0
      %1271 = vadd.xlane.f32.xlu0 %v1270
      %v1272 = vpop.xlane.xlu0 %1271
      %v1273 = vsel %vm558, %v1239, 0.0
      %1274 = vadd.xlane.f32.xlu0 %v1273
      %v1275 = vpop.xlane.xlu0 %1274
      %v1276 = vsel %vm554, %v1240, 0.0
      %1277 = vadd.xlane.f32.xlu0 %v1276
      %v1278 = vpop.xlane.xlu0 %1277
      %v1279 = vsel %vm558, %v1241, 0.0
      %1280 = vadd.xlane.f32.xlu0 %v1279
      %v1281 = vpop.xlane.xlu0 %1280
      %v1282 = vsel %vm554, %v1242, 0.0
      %1283 = vadd.xlane.f32.xlu0 %v1282
      %v1284 = vpop.xlane.xlu0 %1283
      %v1285 = vsel %vm558, %v1243, 0.0
      %1286 = vadd.xlane.f32.xlu0 %v1285
      %v1287 = vpop.xlane.xlu0 %1286
      %v1288 = vsel %vm554, %v1244, 0.0
      %1289 = vadd.xlane.f32.xlu0 %v1288
      %v1290 = vpop.xlane.xlu0 %1289
      %v1291 = vsel %vm558, %v1245, 0.0
      %1292 = vadd.xlane.f32.xlu0 %v1291
      %v1293 = vpop.xlane.xlu0 %1292
      %v1310 = vperm.slane %v1248, %v621
      %v1311 = vperm.slane %v1251, %v623
      %v1312 = vsel %vm625, %v1311, %v1310
      %v1313 = vperm.slane %v1254, %v621
      %v1314 = vperm.slane %v1257, %v623
      %v1315 = vsel %vm625, %v1314, %v1313
      %v1316 = vperm.slane %v1260, %v621
      %v1317 = vperm.slane %v1263, %v623
      %v1318 = vsel %vm625, %v1317, %v1316
      %v1319 = vperm.slane %v1266, %v621
      %v1320 = vperm.slane %v1269, %v623
      %v1321 = vsel %vm625, %v1320, %v1319
      %v1322 = vperm.slane %v1272, %v621
      %v1323 = vperm.slane %v1275, %v623
      %v1324 = vsel %vm625, %v1323, %v1322
      %v1325 = vperm.slane %v1278, %v621
      %v1326 = vperm.slane %v1281, %v623
      %v1327 = vsel %vm625, %v1326, %v1325
      %v1328 = vperm.slane %v1284, %v621
      %v1329 = vperm.slane %v1287, %v623
      %v1330 = vsel %vm625, %v1329, %v1328
      %v1331 = vperm.slane %v1290, %v621
      %v1332 = vperm.slane %v1293, %v623
      %v1333 = vsel %vm625, %v1332, %v1331
      %v1334 = vsel %vm648, %v1315, %v1312
      %v1335 = vsel %vm650, %v1318, %v1334
      %v1336 = vsel %vm652, %v1321, %v1335
      %v1337 = vsel %vm654, %v1324, %v1336
      %v1338 = vsel %vm656, %v1327, %v1337
      %v1339 = vsel %vm658, %v1330, %v1338
      %v1340 = vsel %vm660, %v1333, %v1339
      %v1342 = vsel %vm663, %v1340, -inf
      %1343 = vmax.xlane.f32.xlu0 %v1342
      %v1344 = vpop.xlane.xlu0 %1343
      %v1346 = vperm.slane %v1344, 0
      %v1347 = vperm.slane %v1344, 1
      %v1348 = vperm.slane %v1344, 2
      %v1349 = vperm.slane %v1344, 3
      %v1350 = vperm.slane %v1344, 4
      %v1351 = vperm.slane %v1344, 5
      %v1352 = vperm.slane %v1344, 6
      %v1353 = vperm.slane %v1344, 7
      %v1362 = vsub.f32 %v1248, %v1346
      %v1363 = vsub.f32 %v1251, %v1346
      %v1364 = vsub.f32 %v1254, %v1347
      %v1365 = vsub.f32 %v1257, %v1347
      %v1366 = vsub.f32 %v1260, %v1348
      %v1367 = vsub.f32 %v1263, %v1348
      %v1368 = vsub.f32 %v1266, %v1349
      %v1369 = vsub.f32 %v1269, %v1349
      %v1370 = vsub.f32 %v1272, %v1350
      %v1371 = vsub.f32 %v1275, %v1350
      %v1372 = vsub.f32 %v1278, %v1351
      %v1373 = vsub.f32 %v1281, %v1351
      %v1374 = vsub.f32 %v1284, %v1352
      %v1375 = vsub.f32 %v1287, %v1352
      %v1376 = vsub.f32 %v1290, %v1353
      %v1377 = vsub.f32 %v1293, %v1353
      %v1378 = vmul.f32 %v1362, 1.442695
      %v1379 = vpow.pop %v1378
      %v1380 = vmul.f32 %v1363, 1.442695
      %v1381 = vpow.pop %v1380
      %v1382 = vmul.f32 %v1364, 1.442695
      %v1383 = vpow.pop %v1382
      %v1384 = vmul.f32 %v1365, 1.442695
      %v1385 = vpow.pop %v1384
      %v1386 = vmul.f32 %v1366, 1.442695
      %v1387 = vpow.pop %v1386
      %v1388 = vmul.f32 %v1367, 1.442695
      %v1389 = vpow.pop %v1388
      %v1390 = vmul.f32 %v1368, 1.442695
      %v1391 = vpow.pop %v1390
      %v1392 = vmul.f32 %v1369, 1.442695
      %v1393 = vpow.pop %v1392
      %v1394 = vmul.f32 %v1370, 1.442695
      %v1395 = vpow.pop %v1394
      %v1396 = vmul.f32 %v1371, 1.442695
      %v1397 = vpow.pop %v1396
      %v1398 = vmul.f32 %v1372, 1.442695
      %v1399 = vpow.pop %v1398
      %v1400 = vmul.f32 %v1373, 1.442695
      %v1401 = vpow.pop %v1400
      %v1402 = vmul.f32 %v1374, 1.442695
      %v1403 = vpow.pop %v1402
      %v1404 = vmul.f32 %v1375, 1.442695
      %v1405 = vpow.pop %v1404
      %v1406 = vmul.f32 %v1376, 1.442695
      %v1407 = vpow.pop %v1406
      %v1408 = vmul.f32 %v1377, 1.442695
      %v1409 = vpow.pop %v1408
      %1426 = vset.pattern.permute.xlu0 0
      %1427 = vperm.xlu0 %1426, %v1379
      %v1428 = vpop.permute.xlu0 %1427
      %1429 = vset.pattern.permute.xlu0 0
      %1430 = vperm.xlu0 %1429, %v1381
      %v1431 = vpop.permute.xlu0 %1430
      %1432 = vset.pattern.permute.xlu0 0
      %1433 = vperm.xlu0 %1432, %v1383
      %v1434 = vpop.permute.xlu0 %1433
      %1435 = vset.pattern.permute.xlu0 0
      %1436 = vperm.xlu0 %1435, %v1385
      %v1437 = vpop.permute.xlu0 %1436
      %1438 = vset.pattern.permute.xlu0 0
      %1439 = vperm.xlu0 %1438, %v1387
      %v1440 = vpop.permute.xlu0 %1439
      %1441 = vset.pattern.permute.xlu0 0
      %1442 = vperm.xlu0 %1441, %v1389
      %v1443 = vpop.permute.xlu0 %1442
      %1444 = vset.pattern.permute.xlu0 0
      %1445 = vperm.xlu0 %1444, %v1391
      %v1446 = vpop.permute.xlu0 %1445
      %1447 = vset.pattern.permute.xlu0 0
      %1448 = vperm.xlu0 %1447, %v1393
      %v1449 = vpop.permute.xlu0 %1448
      %1450 = vset.pattern.permute.xlu0 0
      %1451 = vperm.xlu0 %1450, %v1395
      %v1452 = vpop.permute.xlu0 %1451
      %1453 = vset.pattern.permute.xlu0 0
      %1454 = vperm.xlu0 %1453, %v1397
      %v1455 = vpop.permute.xlu0 %1454
      %1456 = vset.pattern.permute.xlu0 0
      %1457 = vperm.xlu0 %1456, %v1399
      %v1458 = vpop.permute.xlu0 %1457
      %1459 = vset.pattern.permute.xlu0 0
      %1460 = vperm.xlu0 %1459, %v1401
      %v1461 = vpop.permute.xlu0 %1460
      %1462 = vset.pattern.permute.xlu0 0
      %1463 = vperm.xlu0 %1462, %v1403
      %v1464 = vpop.permute.xlu0 %1463
      %1465 = vset.pattern.permute.xlu0 0
      %1466 = vperm.xlu0 %1465, %v1405
      %v1467 = vpop.permute.xlu0 %1466
      %1468 = vset.pattern.permute.xlu0 0
      %1469 = vperm.xlu0 %1468, %v1407
      %v1470 = vpop.permute.xlu0 %1469
      %1471 = vset.pattern.permute.xlu0 0
      %1472 = vperm.xlu0 %1471, %v1409
      %v1473 = vpop.permute.xlu0 %1472
      %v1474 = vperm.slane %v1428, %v621
      %v1475 = vperm.slane %v1431, %v623
      %v1476 = vsel %vm625, %v1475, %v1474
      %v1477 = vperm.slane %v1434, %v621
      %v1478 = vperm.slane %v1437, %v623
      %v1479 = vsel %vm625, %v1478, %v1477
      %v1480 = vperm.slane %v1440, %v621
      %v1481 = vperm.slane %v1443, %v623
      %v1482 = vsel %vm625, %v1481, %v1480
      %v1483 = vperm.slane %v1446, %v621
      %v1484 = vperm.slane %v1449, %v623
      %v1485 = vsel %vm625, %v1484, %v1483
      %v1486 = vperm.slane %v1452, %v621
      %v1487 = vperm.slane %v1455, %v623
      %v1488 = vsel %vm625, %v1487, %v1486
      %v1489 = vperm.slane %v1458, %v621
      %v1490 = vperm.slane %v1461, %v623
      %v1491 = vsel %vm625, %v1490, %v1489
      %v1492 = vperm.slane %v1464, %v621
      %v1493 = vperm.slane %v1467, %v623
      %v1494 = vsel %vm625, %v1493, %v1492
      %v1495 = vperm.slane %v1470, %v621
      %v1496 = vperm.slane %v1473, %v623
      %v1497 = vsel %vm625, %v1496, %v1495
      %v1498 = vsel %vm648, %v1479, %v1476
      %v1499 = vsel %vm650, %v1482, %v1498
      %v1500 = vsel %vm652, %v1485, %v1499
      %v1501 = vsel %vm654, %v1488, %v1500
      %v1502 = vsel %vm656, %v1491, %v1501
      %v1503 = vsel %vm658, %v1494, %v1502
      %v1504 = vsel %vm660, %v1497, %v1503
      %v1506 = vsel %vm663, %v1504, 0.0
      %1507 = vadd.xlane.f32.xlu0 %v1506
      %v1508 = vpop.xlane.xlu0 %1507
      %v1509 = vrcp.pop %v1508
      %v1511 = vperm.slane %v1509, 0
      %v1512 = vperm.slane %v1509, 1
      %v1513 = vperm.slane %v1509, 2
      %v1514 = vperm.slane %v1509, 3
      %v1515 = vperm.slane %v1509, 4
      %v1516 = vperm.slane %v1509, 5
      %v1517 = vperm.slane %v1509, 6
      %v1518 = vperm.slane %v1509, 7
      %v1527 = vmul.f32 %v1379, %v1511
      %v1528 = vmul.f32 %v1381, %v1511
      %v1529 = vmul.f32 %v1383, %v1512
      %v1530 = vmul.f32 %v1385, %v1512
      %v1531 = vmul.f32 %v1387, %v1513
      %v1532 = vmul.f32 %v1389, %v1513
      %v1533 = vmul.f32 %v1391, %v1514
      %v1534 = vmul.f32 %v1393, %v1514
      %v1535 = vmul.f32 %v1395, %v1515
      %v1536 = vmul.f32 %v1397, %v1515
      %v1537 = vmul.f32 %v1399, %v1516
      %v1538 = vmul.f32 %v1401, %v1516
      %v1539 = vmul.f32 %v1403, %v1517
      %v1540 = vmul.f32 %v1405, %v1517
      %v1541 = vmul.f32 %v1407, %v1518
      %v1542 = vmul.f32 %v1409, %v1518
      %1544 = vset.pattern.permute.xlu0 0
      %1545 = vperm.xlu0 %1544, %v1527
      %v1546 = vpop.permute.xlu0 %1545
      %1549 = vset.pattern.permute.xlu0 0
      %1550 = vperm.xlu0 %1549, %v1528
      %v1551 = vpop.permute.xlu0 %1550
      %1554 = vset.pattern.permute.xlu0 0
      %1555 = vperm.xlu0 %1554, %v1529
      %v1556 = vpop.permute.xlu0 %1555
      %1559 = vset.pattern.permute.xlu0 0
      %1560 = vperm.xlu0 %1559, %v1530
      %v1561 = vpop.permute.xlu0 %1560
      %1564 = vset.pattern.permute.xlu0 0
      %1565 = vperm.xlu0 %1564, %v1531
      %v1566 = vpop.permute.xlu0 %1565
      %1569 = vset.pattern.permute.xlu0 0
      %1570 = vperm.xlu0 %1569, %v1532
      %v1571 = vpop.permute.xlu0 %1570
      %1574 = vset.pattern.permute.xlu0 0
      %1575 = vperm.xlu0 %1574, %v1533
      %v1576 = vpop.permute.xlu0 %1575
      %1579 = vset.pattern.permute.xlu0 0
      %1580 = vperm.xlu0 %1579, %v1534
      %v1581 = vpop.permute.xlu0 %1580
      %1584 = vset.pattern.permute.xlu0 0
      %1585 = vperm.xlu0 %1584, %v1535
      %v1586 = vpop.permute.xlu0 %1585
      %1589 = vset.pattern.permute.xlu0 0
      %1590 = vperm.xlu0 %1589, %v1536
      %v1591 = vpop.permute.xlu0 %1590
      %1594 = vset.pattern.permute.xlu0 0
      %1595 = vperm.xlu0 %1594, %v1537
      %v1596 = vpop.permute.xlu0 %1595
      %1599 = vset.pattern.permute.xlu0 0
      %1600 = vperm.xlu0 %1599, %v1538
      %v1601 = vpop.permute.xlu0 %1600
      %1604 = vset.pattern.permute.xlu0 0
      %1605 = vperm.xlu0 %1604, %v1539
      %v1606 = vpop.permute.xlu0 %1605
      %1609 = vset.pattern.permute.xlu0 0
      %1610 = vperm.xlu0 %1609, %v1540
      %v1611 = vpop.permute.xlu0 %1610
      %1614 = vset.pattern.permute.xlu0 0
      %1615 = vperm.xlu0 %1614, %v1541
      %v1616 = vpop.permute.xlu0 %1615
      %1619 = vset.pattern.permute.xlu0 0
      %1620 = vperm.xlu0 %1619, %v1542
      %v1621 = vpop.permute.xlu0 %1620
      %v1623 = vmul.f32 %v1546, %v381
      %v1624 = vmul.f32 %v1551, %v382
      %v1625 = vmul.f32 %v1556, %v383
      %v1626 = vmul.f32 %v1561, %v384
      %v1627 = vmul.f32 %v1566, %v385
      %v1628 = vmul.f32 %v1571, %v386
      %v1629 = vmul.f32 %v1576, %v387
      %v1630 = vmul.f32 %v1581, %v388
      %v1631 = vmul.f32 %v1586, %v389
      %v1632 = vmul.f32 %v1591, %v390
      %v1633 = vmul.f32 %v1596, %v391
      %v1634 = vmul.f32 %v1601, %v392
      %v1635 = vmul.f32 %v1606, %v393
      %v1636 = vmul.f32 %v1611, %v394
      %v1637 = vmul.f32 %v1616, %v395
      %v1638 = vmul.f32 %v1621, %v396
      %v1639 = vsel %vm554, %v1623, 0.0
      %v1640 = vsel %vm558, %v1624, 0.0
      %v1641 = vadd.f32 %v1639, %v1640
      %v1642 = vrot.slane %v1641, 4
      %v1643 = vadd.f32 %v1641, %v1642
      %v1644 = vrot.slane %v1643, 2
      %v1645 = vadd.f32 %v1643, %v1644
      %v1646 = vrot.slane %v1645, 1
      %v1647 = vadd.f32 %v1645, %v1646
      %v1648 = vsel %vm554, %v1625, 0.0
      %v1649 = vsel %vm558, %v1626, 0.0
      %v1650 = vadd.f32 %v1648, %v1649
      %v1651 = vrot.slane %v1650, 4
      %v1652 = vadd.f32 %v1650, %v1651
      %v1653 = vrot.slane %v1652, 2
      %v1654 = vadd.f32 %v1652, %v1653
      %v1655 = vrot.slane %v1654, 1
      %v1656 = vadd.f32 %v1654, %v1655
      %v1657 = vsel %vm554, %v1627, 0.0
      %v1658 = vsel %vm558, %v1628, 0.0
      %v1659 = vadd.f32 %v1657, %v1658
      %v1660 = vrot.slane %v1659, 4
      %v1661 = vadd.f32 %v1659, %v1660
      %v1662 = vrot.slane %v1661, 2
      %v1663 = vadd.f32 %v1661, %v1662
      %v1664 = vrot.slane %v1663, 1
      %v1665 = vadd.f32 %v1663, %v1664
      %v1666 = vsel %vm554, %v1629, 0.0
      %v1667 = vsel %vm558, %v1630, 0.0
      %v1668 = vadd.f32 %v1666, %v1667
      %v1669 = vrot.slane %v1668, 4
      %v1670 = vadd.f32 %v1668, %v1669
      %v1671 = vrot.slane %v1670, 2
      %v1672 = vadd.f32 %v1670, %v1671
      %v1673 = vrot.slane %v1672, 1
      %v1674 = vadd.f32 %v1672, %v1673
      %v1675 = vsel %vm554, %v1631, 0.0
      %v1676 = vsel %vm558, %v1632, 0.0
      %v1677 = vadd.f32 %v1675, %v1676
      %v1678 = vrot.slane %v1677, 4
      %v1679 = vadd.f32 %v1677, %v1678
      %v1680 = vrot.slane %v1679, 2
      %v1681 = vadd.f32 %v1679, %v1680
      %v1682 = vrot.slane %v1681, 1
      %v1683 = vadd.f32 %v1681, %v1682
      %v1684 = vsel %vm554, %v1633, 0.0
      %v1685 = vsel %vm558, %v1634, 0.0
      %v1686 = vadd.f32 %v1684, %v1685
      %v1687 = vrot.slane %v1686, 4
      %v1688 = vadd.f32 %v1686, %v1687
      %v1689 = vrot.slane %v1688, 2
      %v1690 = vadd.f32 %v1688, %v1689
      %v1691 = vrot.slane %v1690, 1
      %v1692 = vadd.f32 %v1690, %v1691
      %v1693 = vsel %vm554, %v1635, 0.0
      %v1694 = vsel %vm558, %v1636, 0.0
      %v1695 = vadd.f32 %v1693, %v1694
      %v1696 = vrot.slane %v1695, 4
      %v1697 = vadd.f32 %v1695, %v1696
      %v1698 = vrot.slane %v1697, 2
      %v1699 = vadd.f32 %v1697, %v1698
      %v1700 = vrot.slane %v1699, 1
      %v1701 = vadd.f32 %v1699, %v1700
      %v1702 = vsel %vm554, %v1637, 0.0
      %v1703 = vsel %vm558, %v1638, 0.0
      %v1704 = vadd.f32 %v1702, %v1703
      %v1705 = vrot.slane %v1704, 4
      %v1706 = vadd.f32 %v1704, %v1705
      %v1707 = vrot.slane %v1706, 2
      %v1708 = vadd.f32 %v1706, %v1707
      %v1709 = vrot.slane %v1708, 1
      %v1710 = vadd.f32 %v1708, %v1709
      %v1719 = vsel %vm648, %v1656, %v1647
      %v1720 = vsel %vm650, %v1665, %v1719
      %v1721 = vsel %vm652, %v1674, %v1720
      %v1722 = vsel %vm654, %v1683, %v1721
      %v1723 = vsel %vm656, %v1692, %v1722
      %v1724 = vsel %vm658, %v1701, %v1723
      %v1725 = vsel %vm660, %v1710, %v1724
      %1727 = vrot.lane.b32.xlu0 %v1118, 64
      %v1728 = vpop.permute.xlu0 %1727
      %v1730 = vsel %vm554, %v1725, %v1728
      %v1732 = vsel %vm1054, %v1730, 0
      %1734 = vmatpush.msra.mxu0 0.0
      %1735 = vmatpush.msra.mxu0 0.0
      %1736 = vmatpush.msra.mxu0 0.0
      %1737 = vmatpush.msra.mxu0 0.0
      %1738 = vmatpush.msra.mxu0 0.0
      %1739 = vmatpush.msra.mxu0 0.0
      %1740 = vmatpush.msra.mxu0 0.0
      %1741 = vmatpush.msra.mxu0 0.0
      %1742 = vmatpush.msra.mxu0 %v410
      %1743 = vmatpush.msra.mxu0 %v409
      %1744 = vmatpush.msra.mxu0 %v408
      %1745 = vmatpush.msra.mxu0 %v407
      %1746 = vmatpush.msra.mxu0 %v406
      %1747 = vmatpush.msra.mxu0 %v405
      %1748 = vmatpush.msra.mxu0 %v404
      %1749 = vmatpush.msra.mxu0 %v403
      %1750 = vmatmul.f32.gmra.mxu0 %v1732
      %v1751 = vpop.f32.mrf.mxu0
      %v1752 = vadd.f32 %v417, %v1751
      %1753 = vdwg.mxu0
      %v1754 = vxor.u32 %v1752, 2147483648
      %v1755 = vmul.f32 %v1754, 1.442695
      %v1756 = vpow.pop %v1755
      %v1757 = vadd.f32 %v1756, 1.0
      %v1758 = vrcp.pop %v1757
      %v1759 = vmul.f32 %v1757, %v1758
      %v1760 = vsub.f32 1.0, %v1759
      %v1761 = vmul.f32 %v1758, %v1760
      %v1762 = vadd.f32 %v1758, %v1761
      %vm1763 = vweird.f32 %v1757
      %vm1764 = vweird.f32 %v1758
      %vm1765 = vmor %vm1763, %vm1764
      %v1766 = vsel %vm1765, %v1758, %v1762
      %v1767 = vand.u32 2147483647, %v1757
      %vm1768 = vcmp.eq.f32.partialorder %v1767, 8.507059e+37
      %v1769 = vand.u32 %v1757, 2147483648
      %v1770 = vor.u32 1.1754944e-38, %v1769
      %v1771 = vsel %vm1768, %v1770, %v1766
      %v1772 = vmul.f32 1.0, %v1771
      %v1773 = vtanh.pop %v1752
      %v1774 = vmul.f32 %v1772, %v1112
      %1776 = vrot.lane.b32.xlu0 %v1773, 64
      %v1777 = vpop.permute.xlu0 %1776
      %v1779 = vmul.f32 %v1772, %v1777
      %1781 = vrot.lane.b32.xlu0 %v1779, 32
      %v1782 = vpop.permute.xlu0 %1781
      %v1784 = vadd.f32 %v1774, %v1782
      %v1785 = vtanh.pop %v1784
      %1787 = vrot.lane.b32.xlu0 %v1785, 64
      %v1788 = vpop.permute.xlu0 %1787
      %v1790 = vmul.f32 %v1772, %v1788
      %1792 = vrot.lane.b32.xlu0 %v1790, 32
      %v1793 = vpop.permute.xlu0 %1792
      %s1795 = scalar_lea.vmem [#allocation3], 8
      %1796 = vst.msk [vmem:[%s1795] sm:$0xff] %vm554, %v1793
      %s1797 = scalar_lea.vmem %s355, 16
      %v1798 = vld [vmem:[%s1797] sm:$0xff]
      %1799 = vrot.lane.b32.xlu0 %v1189, 48
      %v1800 = vpop.permute.xlu0 %1799
      %v1802 = vsel %vm431, %v1798, %v1800
      %v1804 = vsel %vm433, %v1802, 0
      %1806 = vmatpush.msra.mxu0 0.0
      %1807 = vmatpush.msra.mxu0 0.0
      %1808 = vmatpush.msra.mxu0 0.0
      %1809 = vmatpush.msra.mxu0 0.0
      %1810 = vmatpush.msra.mxu0 0.0
      %1811 = vmatpush.msra.mxu0 0.0
      %1812 = vmatpush.msra.mxu0 0.0
      %1813 = vmatpush.msra.mxu0 0.0
      %1814 = vmatpush.msra.mxu0 0.0
      %1815 = vmatpush.msra.mxu0 0.0
      %1816 = vmatpush.msra.mxu0 %v402
      %1817 = vmatpush.msra.mxu0 %v401
      %1818 = vmatpush.msra.mxu0 %v400
      %1819 = vmatpush.msra.mxu0 %v399
      %1820 = vmatpush.msra.mxu0 %v398
      %1821 = vmatpush.msra.mxu0 %v397
      %1822 = vmatmul.f32.gmra.mxu0 %v1804
      %v1823 = vpop.f32.mrf.mxu0
      %v1824 = vadd.f32 %v413, %v1823
      %1825 = vdwg.mxu0
      %v1826 = vxor.u32 %v1824, 2147483648
      %v1827 = vmul.f32 %v1826, 1.442695
      %v1828 = vpow.pop %v1827
      %v1829 = vadd.f32 %v1828, 1.0
      %v1830 = vrcp.pop %v1829
      %v1831 = vmul.f32 %v1829, %v1830
      %v1832 = vsub.f32 1.0, %v1831
      %v1833 = vmul.f32 %v1830, %v1832
      %v1834 = vadd.f32 %v1830, %v1833
      %vm1835 = vweird.f32 %v1829
      %vm1836 = vweird.f32 %v1830
      %vm1837 = vmor %vm1835, %vm1836
      %v1838 = vsel %vm1837, %v1830, %v1834
      %v1839 = vand.u32 2147483647, %v1829
      %vm1840 = vcmp.eq.f32.partialorder %v1839, 8.507059e+37
      %v1841 = vand.u32 %v1829, 2147483648
      %v1842 = vor.u32 1.1754944e-38, %v1841
      %v1843 = vsel %vm1840, %v1842, %v1838
      %v1844 = vmul.f32 1.0, %v1843
      %v1845 = vtanh.pop %v1824
      %v1846 = vmul.f32 %v1844, %v1183
      %1848 = vrot.lane.b32.xlu0 %v1845, 64
      %v1849 = vpop.permute.xlu0 %1848
      %v1851 = vmul.f32 %v1844, %v1849
      %1853 = vrot.lane.b32.xlu0 %v1851, 32
      %v1854 = vpop.permute.xlu0 %1853
      %v1856 = vadd.f32 %v1846, %v1854
      %v1857 = vtanh.pop %v1856
      %1859 = vrot.lane.b32.xlu0 %v1857, 64
      %v1860 = vpop.permute.xlu0 %1859
      %v1862 = vmul.f32 %v1844, %v1860
      %v1864 = vrot.slane %v1862, 1
      %v1865 = vrot.slane %v1862, 2
      %v1866 = vrot.slane %v1862, 3
      %v1867 = vrot.slane %v1862, 4
      %v1868 = vrot.slane %v1862, 5
      %v1869 = vrot.slane %v1862, 6
      %v1870 = vrot.slane %v1862, 7
      %v1871 = vperm.slane %v1862, 0
      %v1872 = vperm.slane %v1864, 0
      %v1873 = vperm.slane %v1865, 0
      %v1874 = vperm.slane %v1866, 0
      %v1875 = vperm.slane %v1867, 0
      %v1876 = vperm.slane %v1868, 0
      %v1877 = vperm.slane %v1869, 0
      %v1878 = vperm.slane %v1870, 0
      %1879 = vrot.lane.b32.xlu0 %v1871, 32
      %v1880 = vpop.permute.xlu0 %1879
      %1881 = vrot.lane.b32.xlu0 %v1872, 32
      %v1882 = vpop.permute.xlu0 %1881
      %1883 = vrot.lane.b32.xlu0 %v1873, 32
      %v1884 = vpop.permute.xlu0 %1883
      %1885 = vrot.lane.b32.xlu0 %v1874, 32
      %v1886 = vpop.permute.xlu0 %1885
      %1887 = vrot.lane.b32.xlu0 %v1875, 32
      %v1888 = vpop.permute.xlu0 %1887
      %1889 = vrot.lane.b32.xlu0 %v1876, 32
      %v1890 = vpop.permute.xlu0 %1889
      %1891 = vrot.lane.b32.xlu0 %v1877, 32
      %v1892 = vpop.permute.xlu0 %1891
      %1893 = vrot.lane.b32.xlu0 %v1878, 32
      %v1894 = vpop.permute.xlu0 %1893
      %v1903 = vmul.f32 %v381, %v1880
      %v1904 = vmul.f32 %v382, %v1880
      %v1905 = vmul.f32 %v383, %v1882
      %v1906 = vmul.f32 %v384, %v1882
      %v1907 = vmul.f32 %v385, %v1884
      %v1908 = vmul.f32 %v386, %v1884
      %v1909 = vmul.f32 %v387, %v1886
      %v1910 = vmul.f32 %v388, %v1886
      %v1911 = vmul.f32 %v389, %v1888
      %v1912 = vmul.f32 %v390, %v1888
      %v1913 = vmul.f32 %v391, %v1890
      %v1914 = vmul.f32 %v392, %v1890
      %v1915 = vmul.f32 %v393, %v1892
      %v1916 = vmul.f32 %v394, %v1892
      %v1917 = vmul.f32 %v395, %v1894
      %v1918 = vmul.f32 %v396, %v1894
      %v1919 = vsel %vm554, %v1903, 0.0
      %1920 = vadd.xlane.f32.xlu0 %v1919
      %v1921 = vpop.xlane.xlu0 %1920
      %v1922 = vsel %vm558, %v1904, 0.0
      %1923 = vadd.xlane.f32.xlu0 %v1922
      %v1924 = vpop.xlane.xlu0 %1923
      %v1925 = vsel %vm554, %v1905, 0.0
      %1926 = vadd.xlane.f32.xlu0 %v1925
      %v1927 = vpop.xlane.xlu0 %1926
      %v1928 = vsel %vm558, %v1906, 0.0
      %1929 = vadd.xlane.f32.xlu0 %v1928
      %v1930 = vpop.xlane.xlu0 %1929
      %v1931 = vsel %vm554, %v1907, 0.0
      %1932 = vadd.xlane.f32.xlu0 %v1931
      %v1933 = vpop.xlane.xlu0 %1932
      %v1934 = vsel %vm558, %v1908, 0.0
      %1935 = vadd.xlane.f32.xlu0 %v1934
      %v1936 = vpop.xlane.xlu0 %1935
      %v1937 = vsel %vm554, %v1909, 0.0
      %1938 = vadd.xlane.f32.xlu0 %v1937
      %v1939 = vpop.xlane.xlu0 %1938
      %v1940 = vsel %vm558, %v1910, 0.0
      %1941 = vadd.xlane.f32.xlu0 %v1940
      %v1942 = vpop.xlane.xlu0 %1941
      %v1943 = vsel %vm554, %v1911, 0.0
      %1944 = vadd.xlane.f32.xlu0 %v1943
      %v1945 = vpop.xlane.xlu0 %1944
      %v1946 = vsel %vm558, %v1912, 0.0
      %1947 = vadd.xlane.f32.xlu0 %v1946
      %v1948 = vpop.xlane.xlu0 %1947
      %v1949 = vsel %vm554, %v1913, 0.0
      %1950 = vadd.xlane.f32.xlu0 %v1949
      %v1951 = vpop.xlane.xlu0 %1950
      %v1952 = vsel %vm558, %v1914, 0.0
      %1953 = vadd.xlane.f32.xlu0 %v1952
      %v1954 = vpop.xlane.xlu0 %1953
      %v1955 = vsel %vm554, %v1915, 0.0
      %1956 = vadd.xlane.f32.xlu0 %v1955
      %v1957 = vpop.xlane.xlu0 %1956
      %v1958 = vsel %vm558, %v1916, 0.0
      %1959 = vadd.xlane.f32.xlu0 %v1958
      %v1960 = vpop.xlane.xlu0 %1959
      %v1961 = vsel %vm554, %v1917, 0.0
      %1962 = vadd.xlane.f32.xlu0 %v1961
      %v1963 = vpop.xlane.xlu0 %1962
      %v1964 = vsel %vm558, %v1918, 0.0
      %1965 = vadd.xlane.f32.xlu0 %v1964
      %v1966 = vpop.xlane.xlu0 %1965
      %v1983 = vperm.slane %v1921, %v621
      %v1984 = vperm.slane %v1924, %v623
      %v1985 = vsel %vm625, %v1984, %v1983
      %v1986 = vperm.slane %v1927, %v621
      %v1987 = vperm.slane %v1930, %v623
      %v1988 = vsel %vm625, %v1987, %v1986
      %v1989 = vperm.slane %v1933, %v621
      %v1990 = vperm.slane %v1936, %v623
      %v1991 = vsel %vm625, %v1990, %v1989
      %v1992 = vperm.slane %v1939, %v621
      %v1993 = vperm.slane %v1942, %v623
      %v1994 = vsel %vm625, %v1993, %v1992
      %v1995 = vperm.slane %v1945, %v621
      %v1996 = vperm.slane %v1948, %v623
      %v1997 = vsel %vm625, %v1996, %v1995
      %v1998 = vperm.slane %v1951, %v621
      %v1999 = vperm.slane %v1954, %v623
      %v2000 = vsel %vm625, %v1999, %v1998
      %v2001 = vperm.slane %v1957, %v621
      %v2002 = vperm.slane %v1960, %v623
      %v2003 = vsel %vm625, %v2002, %v2001
      %v2004 = vperm.slane %v1963, %v621
      %v2005 = vperm.slane %v1966, %v623
      %v2006 = vsel %vm625, %v2005, %v2004
      %v2007 = vsel %vm648, %v1988, %v1985
      %v2008 = vsel %vm650, %v1991, %v2007
      %v2009 = vsel %vm652, %v1994, %v2008
      %v2010 = vsel %vm654, %v1997, %v2009
      %v2011 = vsel %vm656, %v2000, %v2010
      %v2012 = vsel %vm658, %v2003, %v2011
      %v2013 = vsel %vm660, %v2006, %v2012
      %v2015 = vsel %vm663, %v2013, -inf
      %2016 = vmax.xlane.f32.xlu0 %v2015
      %v2017 = vpop.xlane.xlu0 %2016
      %v2019 = vperm.slane %v2017, 0
      %v2020 = vperm.slane %v2017, 1
      %v2021 = vperm.slane %v2017, 2
      %v2022 = vperm.slane %v2017, 3
      %v2023 = vperm.slane %v2017, 4
      %v2024 = vperm.slane %v2017, 5
      %v2025 = vperm.slane %v2017, 6
      %v2026 = vperm.slane %v2017, 7
      %v2035 = vsub.f32 %v1921, %v2019
      %v2036 = vsub.f32 %v1924, %v2019
      %v2037 = vsub.f32 %v1927, %v2020
      %v2038 = vsub.f32 %v1930, %v2020
      %v2039 = vsub.f32 %v1933, %v2021
      %v2040 = vsub.f32 %v1936, %v2021
      %v2041 = vsub.f32 %v1939, %v2022
      %v2042 = vsub.f32 %v1942, %v2022
      %v2043 = vsub.f32 %v1945, %v2023
      %v2044 = vsub.f32 %v1948, %v2023
      %v2045 = vsub.f32 %v1951, %v2024
      %v2046 = vsub.f32 %v1954, %v2024
      %v2047 = vsub.f32 %v1957, %v2025
      %v2048 = vsub.f32 %v1960, %v2025
      %v2049 = vsub.f32 %v1963, %v2026
      %v2050 = vsub.f32 %v1966, %v2026
      %v2051 = vmul.f32 %v2035, 1.442695
      %v2052 = vpow.pop %v2051
      %v2053 = vmul.f32 %v2036, 1.442695
      %v2054 = vpow.pop %v2053
      %v2055 = vmul.f32 %v2037, 1.442695
      %v2056 = vpow.pop %v2055
      %v2057 = vmul.f32 %v2038, 1.442695
      %v2058 = vpow.pop %v2057
      %v2059 = vmul.f32 %v2039, 1.442695
      %v2060 = vpow.pop %v2059
      %v2061 = vmul.f32 %v2040, 1.442695
      %v2062 = vpow.pop %v2061
      %v2063 = vmul.f32 %v2041, 1.442695
      %v2064 = vpow.pop %v2063
      %v2065 = vmul.f32 %v2042, 1.442695
      %v2066 = vpow.pop %v2065
      %v2067 = vmul.f32 %v2043, 1.442695
      %v2068 = vpow.pop %v2067
      %v2069 = vmul.f32 %v2044, 1.442695
      %v2070 = vpow.pop %v2069
      %v2071 = vmul.f32 %v2045, 1.442695
      %v2072 = vpow.pop %v2071
      %v2073 = vmul.f32 %v2046, 1.442695
      %v2074 = vpow.pop %v2073
      %v2075 = vmul.f32 %v2047, 1.442695
      %v2076 = vpow.pop %v2075
      %v2077 = vmul.f32 %v2048, 1.442695
      %v2078 = vpow.pop %v2077
      %v2079 = vmul.f32 %v2049, 1.442695
      %v2080 = vpow.pop %v2079
      %v2081 = vmul.f32 %v2050, 1.442695
      %v2082 = vpow.pop %v2081
      %2099 = vset.pattern.permute.xlu0 0
      %2100 = vperm.xlu0 %2099, %v2052
      %v2101 = vpop.permute.xlu0 %2100
      %2102 = vset.pattern.permute.xlu0 0
      %2103 = vperm.xlu0 %2102, %v2054
      %v2104 = vpop.permute.xlu0 %2103
      %2105 = vset.pattern.permute.xlu0 0
      %2106 = vperm.xlu0 %2105, %v2056
      %v2107 = vpop.permute.xlu0 %2106
      %2108 = vset.pattern.permute.xlu0 0
      %2109 = vperm.xlu0 %2108, %v2058
      %v2110 = vpop.permute.xlu0 %2109
      %2111 = vset.pattern.permute.xlu0 0
      %2112 = vperm.xlu0 %2111, %v2060
      %v2113 = vpop.permute.xlu0 %2112
      %2114 = vset.pattern.permute.xlu0 0
      %2115 = vperm.xlu0 %2114, %v2062
      %v2116 = vpop.permute.xlu0 %2115
      %2117 = vset.pattern.permute.xlu0 0
      %2118 = vperm.xlu0 %2117, %v2064
      %v2119 = vpop.permute.xlu0 %2118
      %2120 = vset.pattern.permute.xlu0 0
      %2121 = vperm.xlu0 %2120, %v2066
      %v2122 = vpop.permute.xlu0 %2121
      %2123 = vset.pattern.permute.xlu0 0
      %2124 = vperm.xlu0 %2123, %v2068
      %v2125 = vpop.permute.xlu0 %2124
      %2126 = vset.pattern.permute.xlu0 0
      %2127 = vperm.xlu0 %2126, %v2070
      %v2128 = vpop.permute.xlu0 %2127
      %2129 = vset.pattern.permute.xlu0 0
      %2130 = vperm.xlu0 %2129, %v2072
      %v2131 = vpop.permute.xlu0 %2130
      %2132 = vset.pattern.permute.xlu0 0
      %2133 = vperm.xlu0 %2132, %v2074
      %v2134 = vpop.permute.xlu0 %2133
      %2135 = vset.pattern.permute.xlu0 0
      %2136 = vperm.xlu0 %2135, %v2076
      %v2137 = vpop.permute.xlu0 %2136
      %2138 = vset.pattern.permute.xlu0 0
      %2139 = vperm.xlu0 %2138, %v2078
      %v2140 = vpop.permute.xlu0 %2139
      %2141 = vset.pattern.permute.xlu0 0
      %2142 = vperm.xlu0 %2141, %v2080
      %v2143 = vpop.permute.xlu0 %2142
      %2144 = vset.pattern.permute.xlu0 0
      %2145 = vperm.xlu0 %2144, %v2082
      %v2146 = vpop.permute.xlu0 %2145
      %v2147 = vperm.slane %v2101, %v621
      %v2148 = vperm.slane %v2104, %v623
      %v2149 = vsel %vm625, %v2148, %v2147
      %v2150 = vperm.slane %v2107, %v621
      %v2151 = vperm.slane %v2110, %v623
      %v2152 = vsel %vm625, %v2151, %v2150
      %v2153 = vperm.slane %v2113, %v621
      %v2154 = vperm.slane %v2116, %v623
      %v2155 = vsel %vm625, %v2154, %v2153
      %v2156 = vperm.slane %v2119, %v621
      %v2157 = vperm.slane %v2122, %v623
      %v2158 = vsel %vm625, %v2157, %v2156
      %v2159 = vperm.slane %v2125, %v621
      %v2160 = vperm.slane %v2128, %v623
      %v2161 = vsel %vm625, %v2160, %v2159
      %v2162 = vperm.slane %v2131, %v621
      %v2163 = vperm.slane %v2134, %v623
      %v2164 = vsel %vm625, %v2163, %v2162
      %v2165 = vperm.slane %v2137, %v621
      %v2166 = vperm.slane %v2140, %v623
      %v2167 = vsel %vm625, %v2166, %v2165
      %v2168 = vperm.slane %v2143, %v621
      %v2169 = vperm.slane %v2146, %v623
      %v2170 = vsel %vm625, %v2169, %v2168
      %v2171 = vsel %vm648, %v2152, %v2149
      %v2172 = vsel %vm650, %v2155, %v2171
      %v2173 = vsel %vm652, %v2158, %v2172
      %v2174 = vsel %vm654, %v2161, %v2173
      %v2175 = vsel %vm656, %v2164, %v2174
      %v2176 = vsel %vm658, %v2167, %v2175
      %v2177 = vsel %vm660, %v2170, %v2176
      %v2179 = vsel %vm663, %v2177, 0.0
      %2180 = vadd.xlane.f32.xlu0 %v2179
      %v2181 = vpop.xlane.xlu0 %2180
      %v2182 = vrcp.pop %v2181
      %v2184 = vperm.slane %v2182, 0
      %v2185 = vperm.slane %v2182, 1
      %v2186 = vperm.slane %v2182, 2
      %v2187 = vperm.slane %v2182, 3
      %v2188 = vperm.slane %v2182, 4
      %v2189 = vperm.slane %v2182, 5
      %v2190 = vperm.slane %v2182, 6
      %v2191 = vperm.slane %v2182, 7
      %v2200 = vmul.f32 %v2052, %v2184
      %v2201 = vmul.f32 %v2054, %v2184
      %v2202 = vmul.f32 %v2056, %v2185
      %v2203 = vmul.f32 %v2058, %v2185
      %v2204 = vmul.f32 %v2060, %v2186
      %v2205 = vmul.f32 %v2062, %v2186
      %v2206 = vmul.f32 %v2064, %v2187
      %v2207 = vmul.f32 %v2066, %v2187
      %v2208 = vmul.f32 %v2068, %v2188
      %v2209 = vmul.f32 %v2070, %v2188
      %v2210 = vmul.f32 %v2072, %v2189
      %v2211 = vmul.f32 %v2074, %v2189
      %v2212 = vmul.f32 %v2076, %v2190
      %v2213 = vmul.f32 %v2078, %v2190
      %v2214 = vmul.f32 %v2080, %v2191
      %v2215 = vmul.f32 %v2082, %v2191
      %2217 = vset.pattern.permute.xlu0 0
      %2218 = vperm.xlu0 %2217, %v2200
      %v2219 = vpop.permute.xlu0 %2218
      %2222 = vset.pattern.permute.xlu0 0
      %2223 = vperm.xlu0 %2222, %v2201
      %v2224 = vpop.permute.xlu0 %2223
      %2227 = vset.pattern.permute.xlu0 0
      %2228 = vperm.xlu0 %2227, %v2202
      %v2229 = vpop.permute.xlu0 %2228
      %2232 = vset.pattern.permute.xlu0 0
      %2233 = vperm.xlu0 %2232, %v2203
      %v2234 = vpop.permute.xlu0 %2233
      %2237 = vset.pattern.permute.xlu0 0
      %2238 = vperm.xlu0 %2237, %v2204
      %v2239 = vpop.permute.xlu0 %2238
      %2242 = vset.pattern.permute.xlu0 0
      %2243 = vperm.xlu0 %2242, %v2205
      %v2244 = vpop.permute.xlu0 %2243
      %2247 = vset.pattern.permute.xlu0 0
      %2248 = vperm.xlu0 %2247, %v2206
      %v2249 = vpop.permute.xlu0 %2248
      %2252 = vset.pattern.permute.xlu0 0
      %2253 = vperm.xlu0 %2252, %v2207
      %v2254 = vpop.permute.xlu0 %2253
      %2257 = vset.pattern.permute.xlu0 0
      %2258 = vperm.xlu0 %2257, %v2208
      %v2259 = vpop.permute.xlu0 %2258
      %2262 = vset.pattern.permute.xlu0 0
      %2263 = vperm.xlu0 %2262, %v2209
      %v2264 = vpop.permute.xlu0 %2263
      %2267 = vset.pattern.permute.xlu0 0
      %2268 = vperm.xlu0 %2267, %v2210
      %v2269 = vpop.permute.xlu0 %2268
      %2272 = vset.pattern.permute.xlu0 0
      %2273 = vperm.xlu0 %2272, %v2211
      %v2274 = vpop.permute.xlu0 %2273
      %2277 = vset.pattern.permute.xlu0 0
      %2278 = vperm.xlu0 %2277, %v2212
      %v2279 = vpop.permute.xlu0 %2278
      %2282 = vset.pattern.permute.xlu0 0
      %2283 = vperm.xlu0 %2282, %v2213
      %v2284 = vpop.permute.xlu0 %2283
      %2287 = vset.pattern.permute.xlu0 0
      %2288 = vperm.xlu0 %2287, %v2214
      %v2289 = vpop.permute.xlu0 %2288
      %2292 = vset.pattern.permute.xlu0 0
      %2293 = vperm.xlu0 %2292, %v2215
      %v2294 = vpop.permute.xlu0 %2293
      %v2296 = vmul.f32 %v2219, %v381
      %v2297 = vmul.f32 %v2224, %v382
      %v2298 = vmul.f32 %v2229, %v383
      %v2299 = vmul.f32 %v2234, %v384
      %v2300 = vmul.f32 %v2239, %v385
      %v2301 = vmul.f32 %v2244, %v386
      %v2302 = vmul.f32 %v2249, %v387
      %v2303 = vmul.f32 %v2254, %v388
      %v2304 = vmul.f32 %v2259, %v389
      %v2305 = vmul.f32 %v2264, %v390
      %v2306 = vmul.f32 %v2269, %v391
      %v2307 = vmul.f32 %v2274, %v392
      %v2308 = vmul.f32 %v2279, %v393
      %v2309 = vmul.f32 %v2284, %v394
      %v2310 = vmul.f32 %v2289, %v395
      %v2311 = vmul.f32 %v2294, %v396
      %v2312 = vsel %vm554, %v2296, 0.0
      %v2313 = vsel %vm558, %v2297, 0.0
      %v2314 = vadd.f32 %v2312, %v2313
      %v2315 = vrot.slane %v2314, 4
      %v2316 = vadd.f32 %v2314, %v2315
      %v2317 = vrot.slane %v2316, 2
      %v2318 = vadd.f32 %v2316, %v2317
      %v2319 = vrot.slane %v2318, 1
      %v2320 = vadd.f32 %v2318, %v2319
      %v2321 = vsel %vm554, %v2298, 0.0
      %v2322 = vsel %vm558, %v2299, 0.0
      %v2323 = vadd.f32 %v2321, %v2322
      %v2324 = vrot.slane %v2323, 4
      %v2325 = vadd.f32 %v2323, %v2324
      %v2326 = vrot.slane %v2325, 2
      %v2327 = vadd.f32 %v2325, %v2326
      %v2328 = vrot.slane %v2327, 1
      %v2329 = vadd.f32 %v2327, %v2328
      %v2330 = vsel %vm554, %v2300, 0.0
      %v2331 = vsel %vm558, %v2301, 0.0
      %v2332 = vadd.f32 %v2330, %v2331
      %v2333 = vrot.slane %v2332, 4
      %v2334 = vadd.f32 %v2332, %v2333
      %v2335 = vrot.slane %v2334, 2
      %v2336 = vadd.f32 %v2334, %v2335
      %v2337 = vrot.slane %v2336, 1
      %v2338 = vadd.f32 %v2336, %v2337
      %v2339 = vsel %vm554, %v2302, 0.0
      %v2340 = vsel %vm558, %v2303, 0.0
      %v2341 = vadd.f32 %v2339, %v2340
      %v2342 = vrot.slane %v2341, 4
      %v2343 = vadd.f32 %v2341, %v2342
      %v2344 = vrot.slane %v2343, 2
      %v2345 = vadd.f32 %v2343, %v2344
      %v2346 = vrot.slane %v2345, 1
      %v2347 = vadd.f32 %v2345, %v2346
      %v2348 = vsel %vm554, %v2304, 0.0
      %v2349 = vsel %vm558, %v2305, 0.0
      %v2350 = vadd.f32 %v2348, %v2349
      %v2351 = vrot.slane %v2350, 4
      %v2352 = vadd.f32 %v2350, %v2351
      %v2353 = vrot.slane %v2352, 2
      %v2354 = vadd.f32 %v2352, %v2353
      %v2355 = vrot.slane %v2354, 1
      %v2356 = vadd.f32 %v2354, %v2355
      %v2357 = vsel %vm554, %v2306, 0.0
      %v2358 = vsel %vm558, %v2307, 0.0
      %v2359 = vadd.f32 %v2357, %v2358
      %v2360 = vrot.slane %v2359, 4
      %v2361 = vadd.f32 %v2359, %v2360
      %v2362 = vrot.slane %v2361, 2
      %v2363 = vadd.f32 %v2361, %v2362
      %v2364 = vrot.slane %v2363, 1
      %v2365 = vadd.f32 %v2363, %v2364
      %v2366 = vsel %vm554, %v2308, 0.0
      %v2367 = vsel %vm558, %v2309, 0.0
      %v2368 = vadd.f32 %v2366, %v2367
      %v2369 = vrot.slane %v2368, 4
      %v2370 = vadd.f32 %v2368, %v2369
      %v2371 = vrot.slane %v2370, 2
      %v2372 = vadd.f32 %v2370, %v2371
      %v2373 = vrot.slane %v2372, 1
      %v2374 = vadd.f32 %v2372, %v2373
      %v2375 = vsel %vm554, %v2310, 0.0
      %v2376 = vsel %vm558, %v2311, 0.0
      %v2377 = vadd.f32 %v2375, %v2376
      %v2378 = vrot.slane %v2377, 4
      %v2379 = vadd.f32 %v2377, %v2378
      %v2380 = vrot.slane %v2379, 2
      %v2381 = vadd.f32 %v2379, %v2380
      %v2382 = vrot.slane %v2381, 1
      %v2383 = vadd.f32 %v2381, %v2382
      %v2392 = vsel %vm648, %v2329, %v2320
      %v2393 = vsel %vm650, %v2338, %v2392
      %v2394 = vsel %vm652, %v2347, %v2393
      %v2395 = vsel %vm654, %v2356, %v2394
      %v2396 = vsel %vm656, %v2365, %v2395
      %v2397 = vsel %vm658, %v2374, %v2396
      %v2398 = vsel %vm660, %v2383, %v2397
      %2400 = vrot.lane.b32.xlu0 %v1790, 64
      %v2401 = vpop.permute.xlu0 %2400
      %v2403 = vsel %vm554, %v2398, %v2401
      %v2405 = vsel %vm1054, %v2403, 0
      %2407 = vmatpush.msra.mxu0 0.0
      %2408 = vmatpush.msra.mxu0 0.0
      %2409 = vmatpush.msra.mxu0 0.0
      %2410 = vmatpush.msra.mxu0 0.0
      %2411 = vmatpush.msra.mxu0 0.0
      %2412 = vmatpush.msra.mxu0 0.0
      %2413 = vmatpush.msra.mxu0 0.0
      %2414 = vmatpush.msra.mxu0 0.0
      %2415 = vmatpush.msra.mxu0 %v410
      %2416 = vmatpush.msra.mxu0 %v409
      %2417 = vmatpush.msra.mxu0 %v408
      %2418 = vmatpush.msra.mxu0 %v407
      %2419 = vmatpush.msra.mxu0 %v406
      %2420 = vmatpush.msra.mxu0 %v405
      %2421 = vmatpush.msra.mxu0 %v404
      %2422 = vmatpush.msra.mxu0 %v403
      %2423 = vmatmul.f32.gmra.mxu0 %v2405
      %v2424 = vpop.f32.mrf.mxu0
      %v2425 = vadd.f32 %v417, %v2424
      %2426 = vdwg.mxu0
      %v2427 = vxor.u32 %v2425, 2147483648
      %v2428 = vmul.f32 %v2427, 1.442695
      %v2429 = vpow.pop %v2428
      %v2430 = vadd.f32 %v2429, 1.0
      %v2431 = vrcp.pop %v2430
      %v2432 = vmul.f32 %v2430, %v2431
      %v2433 = vsub.f32 1.0, %v2432
      %v2434 = vmul.f32 %v2431, %v2433
      %v2435 = vadd.f32 %v2431, %v2434
      %vm2436 = vweird.f32 %v2430
      %vm2437 = vweird.f32 %v2431
      %vm2438 = vmor %vm2436, %vm2437
      %v2439 = vsel %vm2438, %v2431, %v2435
      %v2440 = vand.u32 2147483647, %v2430
      %vm2441 = vcmp.eq.f32.partialorder %v2440, 8.507059e+37
      %v2442 = vand.u32 %v2430, 2147483648
      %v2443 = vor.u32 1.1754944e-38, %v2442
      %v2444 = vsel %vm2441, %v2443, %v2439
      %v2445 = vmul.f32 1.0, %v2444
      %v2446 = vtanh.pop %v2425
      %v2447 = vmul.f32 %v2445, %v1784
      %2449 = vrot.lane.b32.xlu0 %v2446, 64
      %v2450 = vpop.permute.xlu0 %2449
      %v2452 = vmul.f32 %v2445, %v2450
      %2454 = vrot.lane.b32.xlu0 %v2452, 32
      %v2455 = vpop.permute.xlu0 %2454
      %v2457 = vadd.f32 %v2447, %v2455
      %v2458 = vtanh.pop %v2457
      %2460 = vrot.lane.b32.xlu0 %v2458, 64
      %v2461 = vpop.permute.xlu0 %2460
      %v2463 = vmul.f32 %v2445, %v2461
      %2465 = vrot.lane.b32.xlu0 %v2463, 32
      %v2466 = vpop.permute.xlu0 %2465
      %s2468 = scalar_lea.vmem [#allocation3], 16
      %2469 = vst.msk [vmem:[%s2468] sm:$0xff] %vm554, %v2466
      %s2470 = scalar_lea.vmem %s355, 24
      %v2471 = vld [vmem:[%s2470] sm:$0xff]
      %2472 = vrot.lane.b32.xlu0 %v1862, 48
      %v2473 = vpop.permute.xlu0 %2472
      %v2475 = vsel %vm431, %v2471, %v2473
      %v2477 = vsel %vm433, %v2475, 0
      %2479 = vmatpush.msra.mxu0 0.0
      %2480 = vmatpush.msra.mxu0 0.0
      %2481 = vmatpush.msra.mxu0 0.0
      %2482 = vmatpush.msra.mxu0 0.0
      %2483 = vmatpush.msra.mxu0 0.0
      %2484 = vmatpush.msra.mxu0 0.0
      %2485 = vmatpush.msra.mxu0 0.0
      %2486 = vmatpush.msra.mxu0 0.0
      %2487 = vmatpush.msra.mxu0 0.0
      %2488 = vmatpush.msra.mxu0 0.0
      %2489 = vmatpush.msra.mxu0 %v402
      %2490 = vmatpush.msra.mxu0 %v401
      %2491 = vmatpush.msra.mxu0 %v400
      %2492 = vmatpush.msra.mxu0 %v399
      %2493 = vmatpush.msra.mxu0 %v398
      %2494 = vmatpush.msra.mxu0 %v397
      %2495 = vmatmul.f32.gmra.mxu0 %v2477
      %v2496 = vpop.f32.mrf.mxu0
      %v2497 = vadd.f32 %v413, %v2496
      %2498 = vdwg.mxu0
      %v2499 = vxor.u32 %v2497, 2147483648
      %v2500 = vmul.f32 %v2499, 1.442695
      %v2501 = vpow.pop %v2500
      %v2502 = vadd.f32 %v2501, 1.0
      %v2503 = vrcp.pop %v2502
      %v2504 = vmul.f32 %v2502, %v2503
      %v2505 = vsub.f32 1.0, %v2504
      %v2506 = vmul.f32 %v2503, %v2505
      %v2507 = vadd.f32 %v2503, %v2506
      %vm2508 = vweird.f32 %v2502
      %vm2509 = vweird.f32 %v2503
      %vm2510 = vmor %vm2508, %vm2509
      %v2511 = vsel %vm2510, %v2503, %v2507
      %v2512 = vand.u32 2147483647, %v2502
      %vm2513 = vcmp.eq.f32.partialorder %v2512, 8.507059e+37
      %v2514 = vand.u32 %v2502, 2147483648
      %v2515 = vor.u32 1.1754944e-38, %v2514
      %v2516 = vsel %vm2513, %v2515, %v2511
      %v2517 = vmul.f32 1.0, %v2516
      %v2518 = vtanh.pop %v2497
      %v2519 = vmul.f32 %v2517, %v1856
      %2521 = vrot.lane.b32.xlu0 %v2518, 64
      %v2522 = vpop.permute.xlu0 %2521
      %v2524 = vmul.f32 %v2517, %v2522
      %2526 = vrot.lane.b32.xlu0 %v2524, 32
      %v2527 = vpop.permute.xlu0 %2526
      %v2529 = vadd.f32 %v2519, %v2527
      %v2530 = vtanh.pop %v2529
      %2532 = vrot.lane.b32.xlu0 %v2530, 64
      %v2533 = vpop.permute.xlu0 %2532
      %v2535 = vmul.f32 %v2517, %v2533
      %v2537 = vrot.slane %v2535, 1
      %v2538 = vrot.slane %v2535, 2
      %v2539 = vrot.slane %v2535, 3
      %v2540 = vrot.slane %v2535, 4
      %v2541 = vrot.slane %v2535, 5
      %v2542 = vrot.slane %v2535, 6
      %v2543 = vrot.slane %v2535, 7
      %v2544 = vperm.slane %v2535, 0
      %v2545 = vperm.slane %v2537, 0
      %v2546 = vperm.slane %v2538, 0
      %v2547 = vperm.slane %v2539, 0
      %v2548 = vperm.slane %v2540, 0
      %v2549 = vperm.slane %v2541, 0
      %v2550 = vperm.slane %v2542, 0
      %v2551 = vperm.slane %v2543, 0
      %2552 = vrot.lane.b32.xlu0 %v2544, 32
      %v2553 = vpop.permute.xlu0 %2552
      %2554 = vrot.lane.b32.xlu0 %v2545, 32
      %v2555 = vpop.permute.xlu0 %2554
      %2556 = vrot.lane.b32.xlu0 %v2546, 32
      %v2557 = vpop.permute.xlu0 %2556
      %2558 = vrot.lane.b32.xlu0 %v2547, 32
      %v2559 = vpop.permute.xlu0 %2558
      %2560 = vrot.lane.b32.xlu0 %v2548, 32
      %v2561 = vpop.permute.xlu0 %2560
      %2562 = vrot.lane.b32.xlu0 %v2549, 32
      %v2563 = vpop.permute.xlu0 %2562
      %2564 = vrot.lane.b32.xlu0 %v2550, 32
      %v2565 = vpop.permute.xlu0 %2564
      %2566 = vrot.lane.b32.xlu0 %v2551, 32
      %v2567 = vpop.permute.xlu0 %2566
      %v2576 = vmul.f32 %v381, %v2553
      %v2577 = vmul.f32 %v382, %v2553
      %v2578 = vmul.f32 %v383, %v2555
      %v2579 = vmul.f32 %v384, %v2555
      %v2580 = vmul.f32 %v385, %v2557
      %v2581 = vmul.f32 %v386, %v2557
      %v2582 = vmul.f32 %v387, %v2559
      %v2583 = vmul.f32 %v388, %v2559
      %v2584 = vmul.f32 %v389, %v2561
      %v2585 = vmul.f32 %v390, %v2561
      %v2586 = vmul.f32 %v391, %v2563
      %v2587 = vmul.f32 %v392, %v2563
      %v2588 = vmul.f32 %v393, %v2565
      %v2589 = vmul.f32 %v394, %v2565
      %v2590 = vmul.f32 %v395, %v2567
      %v2591 = vmul.f32 %v396, %v2567
      %v2592 = vsel %vm554, %v2576, 0.0
      %2593 = vadd.xlane.f32.xlu0 %v2592
      %v2594 = vpop.xlane.xlu0 %2593
      %v2595 = vsel %vm558, %v2577, 0.0
      %2596 = vadd.xlane.f32.xlu0 %v2595
      %v2597 = vpop.xlane.xlu0 %2596
      %v2598 = vsel %vm554, %v2578, 0.0
      %2599 = vadd.xlane.f32.xlu0 %v2598
      %v2600 = vpop.xlane.xlu0 %2599
      %v2601 = vsel %vm558, %v2579, 0.0
      %2602 = vadd.xlane.f32.xlu0 %v2601
      %v2603 = vpop.xlane.xlu0 %2602
      %v2604 = vsel %vm554, %v2580, 0.0
      %2605 = vadd.xlane.f32.xlu0 %v2604
      %v2606 = vpop.xlane.xlu0 %2605
      %v2607 = vsel %vm558, %v2581, 0.0
      %2608 = vadd.xlane.f32.xlu0 %v2607
      %v2609 = vpop.xlane.xlu0 %2608
      %v2610 = vsel %vm554, %v2582, 0.0
      %2611 = vadd.xlane.f32.xlu0 %v2610
      %v2612 = vpop.xlane.xlu0 %2611
      %v2613 = vsel %vm558, %v2583, 0.0
      %2614 = vadd.xlane.f32.xlu0 %v2613
      %v2615 = vpop.xlane.xlu0 %2614
      %v2616 = vsel %vm554, %v2584, 0.0
      %2617 = vadd.xlane.f32.xlu0 %v2616
      %v2618 = vpop.xlane.xlu0 %2617
      %v2619 = vsel %vm558, %v2585, 0.0
      %2620 = vadd.xlane.f32.xlu0 %v2619
      %v2621 = vpop.xlane.xlu0 %2620
      %v2622 = vsel %vm554, %v2586, 0.0
      %2623 = vadd.xlane.f32.xlu0 %v2622
      %v2624 = vpop.xlane.xlu0 %2623
      %v2625 = vsel %vm558, %v2587, 0.0
      %2626 = vadd.xlane.f32.xlu0 %v2625
      %v2627 = vpop.xlane.xlu0 %2626
      %v2628 = vsel %vm554, %v2588, 0.0
      %2629 = vadd.xlane.f32.xlu0 %v2628
      %v2630 = vpop.xlane.xlu0 %2629
      %v2631 = vsel %vm558, %v2589, 0.0
      %2632 = vadd.xlane.f32.xlu0 %v2631
      %v2633 = vpop.xlane.xlu0 %2632
      %v2634 = vsel %vm554, %v2590, 0.0
      %2635 = vadd.xlane.f32.xlu0 %v2634
      %v2636 = vpop.xlane.xlu0 %2635
      %v2637 = vsel %vm558, %v2591, 0.0
      %2638 = vadd.xlane.f32.xlu0 %v2637
      %v2639 = vpop.xlane.xlu0 %2638
      %v2656 = vperm.slane %v2594, %v621
      %v2657 = vperm.slane %v2597, %v623
      %v2658 = vsel %vm625, %v2657, %v2656
      %v2659 = vperm.slane %v2600, %v621
      %v2660 = vperm.slane %v2603, %v623
      %v2661 = vsel %vm625, %v2660, %v2659
      %v2662 = vperm.slane %v2606, %v621
      %v2663 = vperm.slane %v2609, %v623
      %v2664 = vsel %vm625, %v2663, %v2662
      %v2665 = vperm.slane %v2612, %v621
      %v2666 = vperm.slane %v2615, %v623
      %v2667 = vsel %vm625, %v2666, %v2665
      %v2668 = vperm.slane %v2618, %v621
      %v2669 = vperm.slane %v2621, %v623
      %v2670 = vsel %vm625, %v2669, %v2668
      %v2671 = vperm.slane %v2624, %v621
      %v2672 = vperm.slane %v2627, %v623
      %v2673 = vsel %vm625, %v2672, %v2671
      %v2674 = vperm.slane %v2630, %v621
      %v2675 = vperm.slane %v2633, %v623
      %v2676 = vsel %vm625, %v2675, %v2674
      %v2677 = vperm.slane %v2636, %v621
      %v2678 = vperm.slane %v2639, %v623
      %v2679 = vsel %vm625, %v2678, %v2677
      %v2680 = vsel %vm648, %v2661, %v2658
      %v2681 = vsel %vm650, %v2664, %v2680
      %v2682 = vsel %vm652, %v2667, %v2681
      %v2683 = vsel %vm654, %v2670, %v2682
      %v2684 = vsel %vm656, %v2673, %v2683
      %v2685 = vsel %vm658, %v2676, %v2684
      %v2686 = vsel %vm660, %v2679, %v2685
      %v2688 = vsel %vm663, %v2686, -inf
      %2689 = vmax.xlane.f32.xlu0 %v2688
      %v2690 = vpop.xlane.xlu0 %2689
      %v2692 = vperm.slane %v2690, 0
      %v2693 = vperm.slane %v2690, 1
      %v2694 = vperm.slane %v2690, 2
      %v2695 = vperm.slane %v2690, 3
      %v2696 = vperm.slane %v2690, 4
      %v2697 = vperm.slane %v2690, 5
      %v2698 = vperm.slane %v2690, 6
      %v2699 = vperm.slane %v2690, 7
      %v2708 = vsub.f32 %v2594, %v2692
      %v2709 = vsub.f32 %v2597, %v2692
      %v2710 = vsub.f32 %v2600, %v2693
      %v2711 = vsub.f32 %v2603, %v2693
      %v2712 = vsub.f32 %v2606, %v2694
      %v2713 = vsub.f32 %v2609, %v2694
      %v2714 = vsub.f32 %v2612, %v2695
      %v2715 = vsub.f32 %v2615, %v2695
      %v2716 = vsub.f32 %v2618, %v2696
      %v2717 = vsub.f32 %v2621, %v2696
      %v2718 = vsub.f32 %v2624, %v2697
      %v2719 = vsub.f32 %v2627, %v2697
      %v2720 = vsub.f32 %v2630, %v2698
      %v2721 = vsub.f32 %v2633, %v2698
      %v2722 = vsub.f32 %v2636, %v2699
      %v2723 = vsub.f32 %v2639, %v2699
      %v2724 = vmul.f32 %v2708, 1.442695
      %v2725 = vpow.pop %v2724
      %v2726 = vmul.f32 %v2709, 1.442695
      %v2727 = vpow.pop %v2726
      %v2728 = vmul.f32 %v2710, 1.442695
      %v2729 = vpow.pop %v2728
      %v2730 = vmul.f32 %v2711, 1.442695
      %v2731 = vpow.pop %v2730
      %v2732 = vmul.f32 %v2712, 1.442695
      %v2733 = vpow.pop %v2732
      %v2734 = vmul.f32 %v2713, 1.442695
      %v2735 = vpow.pop %v2734
      %v2736 = vmul.f32 %v2714, 1.442695
      %v2737 = vpow.pop %v2736
      %v2738 = vmul.f32 %v2715, 1.442695
      %v2739 = vpow.pop %v2738
      %v2740 = vmul.f32 %v2716, 1.442695
      %v2741 = vpow.pop %v2740
      %v2742 = vmul.f32 %v2717, 1.442695
      %v2743 = vpow.pop %v2742
      %v2744 = vmul.f32 %v2718, 1.442695
      %v2745 = vpow.pop %v2744
      %v2746 = vmul.f32 %v2719, 1.442695
      %v2747 = vpow.pop %v2746
      %v2748 = vmul.f32 %v2720, 1.442695
      %v2749 = vpow.pop %v2748
      %v2750 = vmul.f32 %v2721, 1.442695
      %v2751 = vpow.pop %v2750
      %v2752 = vmul.f32 %v2722, 1.442695
      %v2753 = vpow.pop %v2752
      %v2754 = vmul.f32 %v2723, 1.442695
      %v2755 = vpow.pop %v2754
      %2772 = vset.pattern.permute.xlu0 0
      %2773 = vperm.xlu0 %2772, %v2725
      %v2774 = vpop.permute.xlu0 %2773
      %2775 = vset.pattern.permute.xlu0 0
      %2776 = vperm.xlu0 %2775, %v2727
      %v2777 = vpop.permute.xlu0 %2776
      %2778 = vset.pattern.permute.xlu0 0
      %2779 = vperm.xlu0 %2778, %v2729
      %v2780 = vpop.permute.xlu0 %2779
      %2781 = vset.pattern.permute.xlu0 0
      %2782 = vperm.xlu0 %2781, %v2731
      %v2783 = vpop.permute.xlu0 %2782
      %2784 = vset.pattern.permute.xlu0 0
      %2785 = vperm.xlu0 %2784, %v2733
      %v2786 = vpop.permute.xlu0 %2785
      %2787 = vset.pattern.permute.xlu0 0
      %2788 = vperm.xlu0 %2787, %v2735
      %v2789 = vpop.permute.xlu0 %2788
      %2790 = vset.pattern.permute.xlu0 0
      %2791 = vperm.xlu0 %2790, %v2737
      %v2792 = vpop.permute.xlu0 %2791
      %2793 = vset.pattern.permute.xlu0 0
      %2794 = vperm.xlu0 %2793, %v2739
      %v2795 = vpop.permute.xlu0 %2794
      %2796 = vset.pattern.permute.xlu0 0
      %2797 = vperm.xlu0 %2796, %v2741
      %v2798 = vpop.permute.xlu0 %2797
      %2799 = vset.pattern.permute.xlu0 0
      %2800 = vperm.xlu0 %2799, %v2743
      %v2801 = vpop.permute.xlu0 %2800
      %2802 = vset.pattern.permute.xlu0 0
      %2803 = vperm.xlu0 %2802, %v2745
      %v2804 = vpop.permute.xlu0 %2803
      %2805 = vset.pattern.permute.xlu0 0
      %2806 = vperm.xlu0 %2805, %v2747
      %v2807 = vpop.permute.xlu0 %2806
      %2808 = vset.pattern.permute.xlu0 0
      %2809 = vperm.xlu0 %2808, %v2749
      %v2810 = vpop.permute.xlu0 %2809
      %2811 = vset.pattern.permute.xlu0 0
      %2812 = vperm.xlu0 %2811, %v2751
      %v2813 = vpop.permute.xlu0 %2812
      %2814 = vset.pattern.permute.xlu0 0
      %2815 = vperm.xlu0 %2814, %v2753
      %v2816 = vpop.permute.xlu0 %2815
      %2817 = vset.pattern.permute.xlu0 0
      %2818 = vperm.xlu0 %2817, %v2755
      %v2819 = vpop.permute.xlu0 %2818
      %v2820 = vperm.slane %v2774, %v621
      %v2821 = vperm.slane %v2777, %v623
      %v2822 = vsel %vm625, %v2821, %v2820
      %v2823 = vperm.slane %v2780, %v621
      %v2824 = vperm.slane %v2783, %v623
      %v2825 = vsel %vm625, %v2824, %v2823
      %v2826 = vperm.slane %v2786, %v621
      %v2827 = vperm.slane %v2789, %v623
      %v2828 = vsel %vm625, %v2827, %v2826
      %v2829 = vperm.slane %v2792, %v621
      %v2830 = vperm.slane %v2795, %v623
      %v2831 = vsel %vm625, %v2830, %v2829
      %v2832 = vperm.slane %v2798, %v621
      %v2833 = vperm.slane %v2801, %v623
      %v2834 = vsel %vm625, %v2833, %v2832
      %v2835 = vperm.slane %v2804, %v621
      %v2836 = vperm.slane %v2807, %v623
      %v2837 = vsel %vm625, %v2836, %v2835
      %v2838 = vperm.slane %v2810, %v621
      %v2839 = vperm.slane %v2813, %v623
      %v2840 = vsel %vm625, %v2839, %v2838
      %v2841 = vperm.slane %v2816, %v621
      %v2842 = vperm.slane %v2819, %v623
      %v2843 = vsel %vm625, %v2842, %v2841
      %v2844 = vsel %vm648, %v2825, %v2822
      %v2845 = vsel %vm650, %v2828, %v2844
      %v2846 = vsel %vm652, %v2831, %v2845
      %v2847 = vsel %vm654, %v2834, %v2846
      %v2848 = vsel %vm656, %v2837, %v2847
      %v2849 = vsel %vm658, %v2840, %v2848
      %v2850 = vsel %vm660, %v2843, %v2849
      %v2852 = vsel %vm663, %v2850, 0.0
      %2853 = vadd.xlane.f32.xlu0 %v2852
      %v2854 = vpop.xlane.xlu0 %2853
      %v2855 = vrcp.pop %v2854
      %v2857 = vperm.slane %v2855, 0
      %v2858 = vperm.slane %v2855, 1
      %v2859 = vperm.slane %v2855, 2
      %v2860 = vperm.slane %v2855, 3
      %v2861 = vperm.slane %v2855, 4
      %v2862 = vperm.slane %v2855, 5
      %v2863 = vperm.slane %v2855, 6
      %v2864 = vperm.slane %v2855, 7
      %v2873 = vmul.f32 %v2725, %v2857
      %v2874 = vmul.f32 %v2727, %v2857
      %v2875 = vmul.f32 %v2729, %v2858
      %v2876 = vmul.f32 %v2731, %v2858
      %v2877 = vmul.f32 %v2733, %v2859
      %v2878 = vmul.f32 %v2735, %v2859
      %v2879 = vmul.f32 %v2737, %v2860
      %v2880 = vmul.f32 %v2739, %v2860
      %v2881 = vmul.f32 %v2741, %v2861
      %v2882 = vmul.f32 %v2743, %v2861
      %v2883 = vmul.f32 %v2745, %v2862
      %v2884 = vmul.f32 %v2747, %v2862
      %v2885 = vmul.f32 %v2749, %v2863
      %v2886 = vmul.f32 %v2751, %v2863
      %v2887 = vmul.f32 %v2753, %v2864
      %v2888 = vmul.f32 %v2755, %v2864
      %2890 = vset.pattern.permute.xlu0 0
      %2891 = vperm.xlu0 %2890, %v2873
      %v2892 = vpop.permute.xlu0 %2891
      %2895 = vset.pattern.permute.xlu0 0
      %2896 = vperm.xlu0 %2895, %v2874
      %v2897 = vpop.permute.xlu0 %2896
      %2900 = vset.pattern.permute.xlu0 0
      %2901 = vperm.xlu0 %2900, %v2875
      %v2902 = vpop.permute.xlu0 %2901
      %2905 = vset.pattern.permute.xlu0 0
      %2906 = vperm.xlu0 %2905, %v2876
      %v2907 = vpop.permute.xlu0 %2906
      %2910 = vset.pattern.permute.xlu0 0
      %2911 = vperm.xlu0 %2910, %v2877
      %v2912 = vpop.permute.xlu0 %2911
      %2915 = vset.pattern.permute.xlu0 0
      %2916 = vperm.xlu0 %2915, %v2878
      %v2917 = vpop.permute.xlu0 %2916
      %2920 = vset.pattern.permute.xlu0 0
      %2921 = vperm.xlu0 %2920, %v2879
      %v2922 = vpop.permute.xlu0 %2921
      %2925 = vset.pattern.permute.xlu0 0
      %2926 = vperm.xlu0 %2925, %v2880
      %v2927 = vpop.permute.xlu0 %2926
      %2930 = vset.pattern.permute.xlu0 0
      %2931 = vperm.xlu0 %2930, %v2881
      %v2932 = vpop.permute.xlu0 %2931
      %2935 = vset.pattern.permute.xlu0 0
      %2936 = vperm.xlu0 %2935, %v2882
      %v2937 = vpop.permute.xlu0 %2936
      %2940 = vset.pattern.permute.xlu0 0
      %2941 = vperm.xlu0 %2940, %v2883
      %v2942 = vpop.permute.xlu0 %2941
      %2945 = vset.pattern.permute.xlu0 0
      %2946 = vperm.xlu0 %2945, %v2884
      %v2947 = vpop.permute.xlu0 %2946
      %2950 = vset.pattern.permute.xlu0 0
      %2951 = vperm.xlu0 %2950, %v2885
      %v2952 = vpop.permute.xlu0 %2951
      %2955 = vset.pattern.permute.xlu0 0
      %2956 = vperm.xlu0 %2955, %v2886
      %v2957 = vpop.permute.xlu0 %2956
      %2960 = vset.pattern.permute.xlu0 0
      %2961 = vperm.xlu0 %2960, %v2887
      %v2962 = vpop.permute.xlu0 %2961
      %2965 = vset.pattern.permute.xlu0 0
      %2966 = vperm.xlu0 %2965, %v2888
      %v2967 = vpop.permute.xlu0 %2966
      %v2969 = vmul.f32 %v2892, %v381
      %v2970 = vmul.f32 %v2897, %v382
      %v2971 = vmul.f32 %v2902, %v383
      %v2972 = vmul.f32 %v2907, %v384
      %v2973 = vmul.f32 %v2912, %v385
      %v2974 = vmul.f32 %v2917, %v386
      %v2975 = vmul.f32 %v2922, %v387
      %v2976 = vmul.f32 %v2927, %v388
      %v2977 = vmul.f32 %v2932, %v389
      %v2978 = vmul.f32 %v2937, %v390
      %v2979 = vmul.f32 %v2942, %v391
      %v2980 = vmul.f32 %v2947, %v392
      %v2981 = vmul.f32 %v2952, %v393
      %v2982 = vmul.f32 %v2957, %v394
      %v2983 = vmul.f32 %v2962, %v395
      %v2984 = vmul.f32 %v2967, %v396
      %v2985 = vsel %vm554, %v2969, 0.0
      %v2986 = vsel %vm558, %v2970, 0.0
      %v2987 = vadd.f32 %v2985, %v2986
      %v2988 = vrot.slane %v2987, 4
      %v2989 = vadd.f32 %v2987, %v2988
      %v2990 = vrot.slane %v2989, 2
      %v2991 = vadd.f32 %v2989, %v2990
      %v2992 = vrot.slane %v2991, 1
      %v2993 = vadd.f32 %v2991, %v2992
      %v2994 = vsel %vm554, %v2971, 0.0
      %v2995 = vsel %vm558, %v2972, 0.0
      %v2996 = vadd.f32 %v2994, %v2995
      %v2997 = vrot.slane %v2996, 4
      %v2998 = vadd.f32 %v2996, %v2997
      %v2999 = vrot.slane %v2998, 2
      %v3000 = vadd.f32 %v2998, %v2999
      %v3001 = vrot.slane %v3000, 1
      %v3002 = vadd.f32 %v3000, %v3001
      %v3003 = vsel %vm554, %v2973, 0.0
      %v3004 = vsel %vm558, %v2974, 0.0
      %v3005 = vadd.f32 %v3003, %v3004
      %v3006 = vrot.slane %v3005, 4
      %v3007 = vadd.f32 %v3005, %v3006
      %v3008 = vrot.slane %v3007, 2
      %v3009 = vadd.f32 %v3007, %v3008
      %v3010 = vrot.slane %v3009, 1
      %v3011 = vadd.f32 %v3009, %v3010
      %v3012 = vsel %vm554, %v2975, 0.0
      %v3013 = vsel %vm558, %v2976, 0.0
      %v3014 = vadd.f32 %v3012, %v3013
      %v3015 = vrot.slane %v3014, 4
      %v3016 = vadd.f32 %v3014, %v3015
      %v3017 = vrot.slane %v3016, 2
      %v3018 = vadd.f32 %v3016, %v3017
      %v3019 = vrot.slane %v3018, 1
      %v3020 = vadd.f32 %v3018, %v3019
      %v3021 = vsel %vm554, %v2977, 0.0
      %v3022 = vsel %vm558, %v2978, 0.0
      %v3023 = vadd.f32 %v3021, %v3022
      %v3024 = vrot.slane %v3023, 4
      %v3025 = vadd.f32 %v3023, %v3024
      %v3026 = vrot.slane %v3025, 2
      %v3027 = vadd.f32 %v3025, %v3026
      %v3028 = vrot.slane %v3027, 1
      %v3029 = vadd.f32 %v3027, %v3028
      %v3030 = vsel %vm554, %v2979, 0.0
      %v3031 = vsel %vm558, %v2980, 0.0
      %v3032 = vadd.f32 %v3030, %v3031
      %v3033 = vrot.slane %v3032, 4
      %v3034 = vadd.f32 %v3032, %v3033
      %v3035 = vrot.slane %v3034, 2
      %v3036 = vadd.f32 %v3034, %v3035
      %v3037 = vrot.slane %v3036, 1
      %v3038 = vadd.f32 %v3036, %v3037
      %v3039 = vsel %vm554, %v2981, 0.0
      %v3040 = vsel %vm558, %v2982, 0.0
      %v3041 = vadd.f32 %v3039, %v3040
      %v3042 = vrot.slane %v3041, 4
      %v3043 = vadd.f32 %v3041, %v3042
      %v3044 = vrot.slane %v3043, 2
      %v3045 = vadd.f32 %v3043, %v3044
      %v3046 = vrot.slane %v3045, 1
      %v3047 = vadd.f32 %v3045, %v3046
      %v3048 = vsel %vm554, %v2983, 0.0
      %v3049 = vsel %vm558, %v2984, 0.0
      %v3050 = vadd.f32 %v3048, %v3049
      %v3051 = vrot.slane %v3050, 4
      %v3052 = vadd.f32 %v3050, %v3051
      %v3053 = vrot.slane %v3052, 2
      %v3054 = vadd.f32 %v3052, %v3053
      %v3055 = vrot.slane %v3054, 1
      %v3056 = vadd.f32 %v3054, %v3055
      %v3065 = vsel %vm648, %v3002, %v2993
      %v3066 = vsel %vm650, %v3011, %v3065
      %v3067 = vsel %vm652, %v3020, %v3066
      %v3068 = vsel %vm654, %v3029, %v3067
      %v3069 = vsel %vm656, %v3038, %v3068
      %v3070 = vsel %vm658, %v3047, %v3069
      %v3071 = vsel %vm660, %v3056, %v3070
      %3073 = vrot.lane.b32.xlu0 %v2463, 64
      %v3074 = vpop.permute.xlu0 %3073
      %v3076 = vsel %vm554, %v3071, %v3074
      %v3078 = vsel %vm1054, %v3076, 0
      %3080 = vmatpush.msra.mxu0 0.0
      %3081 = vmatpush.msra.mxu0 0.0
      %3082 = vmatpush.msra.mxu0 0.0
      %3083 = vmatpush.msra.mxu0 0.0
      %3084 = vmatpush.msra.mxu0 0.0
      %3085 = vmatpush.msra.mxu0 0.0
      %3086 = vmatpush.msra.mxu0 0.0
      %3087 = vmatpush.msra.mxu0 0.0
      %3088 = vmatpush.msra.mxu0 %v410
      %3089 = vmatpush.msra.mxu0 %v409
      %3090 = vmatpush.msra.mxu0 %v408
      %3091 = vmatpush.msra.mxu0 %v407
      %3092 = vmatpush.msra.mxu0 %v406
      %3093 = vmatpush.msra.mxu0 %v405
      %3094 = vmatpush.msra.mxu0 %v404
      %3095 = vmatpush.msra.mxu0 %v403
      %3096 = vmatmul.f32.gmra.mxu0 %v3078
      %v3097 = vpop.f32.mrf.mxu0
      %v3098 = vadd.f32 %v417, %v3097
      %3099 = vdwg.mxu0
      %v3100 = vxor.u32 %v3098, 2147483648
      %v3101 = vmul.f32 %v3100, 1.442695
      %v3102 = vpow.pop %v3101
      %v3103 = vadd.f32 %v3102, 1.0
      %v3104 = vrcp.pop %v3103
      %v3105 = vmul.f32 %v3103, %v3104
      %v3106 = vsub.f32 1.0, %v3105
      %v3107 = vmul.f32 %v3104, %v3106
      %v3108 = vadd.f32 %v3104, %v3107
      %vm3109 = vweird.f32 %v3103
      %vm3110 = vweird.f32 %v3104
      %vm3111 = vmor %vm3109, %vm3110
      %v3112 = vsel %vm3111, %v3104, %v3108
      %v3113 = vand.u32 2147483647, %v3103
      %vm3114 = vcmp.eq.f32.partialorder %v3113, 8.507059e+37
      %v3115 = vand.u32 %v3103, 2147483648
      %v3116 = vor.u32 1.1754944e-38, %v3115
      %v3117 = vsel %vm3114, %v3116, %v3112
      %v3118 = vmul.f32 1.0, %v3117
      %v3119 = vtanh.pop %v3098
      %v3120 = vmul.f32 %v3118, %v2457
      %3122 = vrot.lane.b32.xlu0 %v3119, 64
      %v3123 = vpop.permute.xlu0 %3122
      %v3125 = vmul.f32 %v3118, %v3123
      %3127 = vrot.lane.b32.xlu0 %v3125, 32
      %v3128 = vpop.permute.xlu0 %3127
      %v3130 = vadd.f32 %v3120, %v3128
      %v3131 = vtanh.pop %v3130
      %3133 = vrot.lane.b32.xlu0 %v3131, 64
      %v3134 = vpop.permute.xlu0 %3133
      %v3136 = vmul.f32 %v3118, %v3134
      %3138 = vrot.lane.b32.xlu0 %v3136, 32
      %v3139 = vpop.permute.xlu0 %3138
      %s3141 = scalar_lea.vmem [#allocation3], 24
      %3142 = vst.msk [vmem:[%s3141] sm:$0xff] %vm554, %v3139
      %3143 = vrot.lane.b32.xlu0 %v2535, 32
      %v3144 = vpop.permute.xlu0 %3143
      %3146 = vst.msk [vmem:[#allocation2] sm:$0xff] %vm554, %v3144
      %3148 = vrot.lane.b32.xlu0 %v2529, 96
      %v3149 = vpop.permute.xlu0 %3148
      %3151 = vst.msk [vmem:[%s420] sm:$0xff] %vm554, %v3149
      %3152 = vst.msk [vmem:[%s422] sm:$0xff] %vm554, %v3139
      %3154 = vrot.lane.b32.xlu0 %v3130, 96
      %v3155 = vpop.permute.xlu0 %3154
      %3157 = vst.msk [vmem:[%s424] sm:$0xff] %vm554, %v3155
      %v3158 = vld [vmem:[#allocation3] sm:$0xff]
      %v3159 = vld [vmem:[#allocation3 + $0x8] sm:$0xff]
      %v3160 = vld [vmem:[#allocation3 + $0x10] sm:$0xff]
      %v3161 = vld [vmem:[#allocation3 + $0x18] sm:$0xff]
      %v3162 = vld [vmem:[%s8] sm:$0xff]
      %v3163 = vld [vmem:[%s8 + $0x8] sm:$0xff]
      %v3164 = vld [vmem:[%s8 + $0x10] sm:$0xff]
      %v3165 = vld [vmem:[%s8 + $0x18] sm:$0xff]
      %v3166 = vld [vmem:[%s9] sm:$0x1]
      %v3168 = vperm.slane %v3166, 0
      %v3171 = vsel %vm554, %v3158, 0
      %v3174 = vsel %vm554, %v3159, 0
      %v3177 = vsel %vm554, %v3160, 0
      %v3180 = vsel %vm554, %v3161, 0
      %3182 = vmatpush.msra.mxu0 0.0
      %3183 = vmatpush.msra.mxu0 0.0
      %3184 = vmatpush.msra.mxu0 0.0
      %3185 = vmatpush.msra.mxu0 0.0
      %3186 = vmatpush.msra.mxu0 0.0
      %3187 = vmatpush.msra.mxu0 0.0
      %3188 = vmatpush.msra.mxu0 0.0
      %3189 = vmatpush.msra.mxu0 0.0
      %3190 = vmatpush.msra.mxu0 0.0
      %3191 = vmatpush.msra.mxu0 0.0
      %3192 = vmatpush.msra.mxu0 0.0
      %3193 = vmatpush.msra.mxu0 0.0
      %3194 = vmatpush.msra.mxu0 %v3165
      %3195 = vmatpush.msra.mxu0 %v3164
      %3196 = vmatpush.msra.mxu0 %v3163
      %3197 = vmatpush.msra.mxu0 %v3162
      %3198 = vmatmul.f32.gmra.mxu0 %v3171
      %v3199 = vpop.f32.mrf.mxu0
      %v3200 = vadd.f32 %v3168, %v3199
      %3201 = vmatmul.f32.gmra.mxu0 %v3174
      %v3202 = vpop.f32.mrf.mxu0
      %v3203 = vadd.f32 %v3168, %v3202
      %3204 = vmatmul.f32.gmra.mxu0 %v3177
      %v3205 = vpop.f32.mrf.mxu0
      %v3206 = vadd.f32 %v3168, %v3205
      %3207 = vmatmul.f32.gmra.mxu0 %v3180
      %v3208 = vpop.f32.mrf.mxu0
      %v3209 = vadd.f32 %v3168, %v3208
      %3210 = vdwg.mxu0
      %3211 = vmax.xlane.f32.xlu0 %v3200
      %v3212 = vpop.xlane.xlu0 %3211
      %3213 = vmax.xlane.f32.xlu0 %v3203
      %v3214 = vpop.xlane.xlu0 %3213
      %3215 = vmax.xlane.f32.xlu0 %v3206
      %v3216 = vpop.xlane.xlu0 %3215
      %3217 = vmax.xlane.f32.xlu0 %v3209
      %v3218 = vpop.xlane.xlu0 %3217
      %v3219 = vsub.f32 %v3200, %v3212
      %v3220 = vsub.f32 %v3203, %v3214
      %v3221 = vsub.f32 %v3206, %v3216
      %v3222 = vsub.f32 %v3209, %v3218
      %v3223 = vmul.f32 %v3219, 1.442695
      %v3224 = vpow.pop %v3223
      %v3225 = vmul.f32 %v3220, 1.442695
      %v3226 = vpow.pop %v3225
      %v3227 = vmul.f32 %v3221, 1.442695
      %v3228 = vpow.pop %v3227
      %v3229 = vmul.f32 %v3222, 1.442695
      %v3230 = vpow.pop %v3229
      %3231 = vadd.xlane.f32.xlu0 %v3224
      %v3232 = vpop.xlane.xlu0 %3231
      %3233 = vadd.xlane.f32.xlu0 %v3226
      %v3234 = vpop.xlane.xlu0 %3233
      %3235 = vadd.xlane.f32.xlu0 %v3228
      %v3236 = vpop.xlane.xlu0 %3235
      %3237 = vadd.xlane.f32.xlu0 %v3230
      %v3238 = vpop.xlane.xlu0 %3237
      %v3239 = vrcp.pop %v3232
      %v3240 = vmul.f32 %v3232, %v3239
      %v3241 = vsub.f32 1.0, %v3240
      %v3242 = vmul.f32 %v3239, %v3241
      %v3243 = vadd.f32 %v3239, %v3242
      %vm3244 = vweird.f32 %v3232
      %vm3245 = vweird.f32 %v3239
      %vm3246 = vmor %vm3244, %vm3245
      %v3247 = vsel %vm3246, %v3239, %v3243
      %v3248 = vand.u32 2147483647, %v3232
      %vm3249 = vcmp.eq.f32.partialorder %v3248, 8.507059e+37
      %v3250 = vand.u32 %v3232, 2147483648
      %v3251 = vor.u32 1.1754944e-38, %v3250
      %v3252 = vsel %vm3249, %v3251, %v3247
      %v3253 = vrcp.pop %v3234
      %v3254 = vmul.f32 %v3234, %v3253
      %v3255 = vsub.f32 1.0, %v3254
      %v3256 = vmul.f32 %v3253, %v3255
      %v3257 = vadd.f32 %v3253, %v3256
      %vm3258 = vweird.f32 %v3234
      %vm3259 = vweird.f32 %v3253
      %vm3260 = vmor %vm3258, %vm3259
      %v3261 = vsel %vm3260, %v3253, %v3257
      %v3262 = vand.u32 2147483647, %v3234
      %vm3263 = vcmp.eq.f32.partialorder %v3262, 8.507059e+37
      %v3264 = vand.u32 %v3234, 2147483648
      %v3265 = vor.u32 1.1754944e-38, %v3264
      %v3266 = vsel %vm3263, %v3265, %v3261
      %v3267 = vrcp.pop %v3236
      %v3268 = vmul.f32 %v3236, %v3267
      %v3269 = vsub.f32 1.0, %v3268
      %v3270 = vmul.f32 %v3267, %v3269
      %v3271 = vadd.f32 %v3267, %v3270
      %vm3272 = vweird.f32 %v3236
      %vm3273 = vweird.f32 %v3267
      %vm3274 = vmor %vm3272, %vm3273
      %v3275 = vsel %vm3274, %v3267, %v3271
      %v3276 = vand.u32 2147483647, %v3236
      %vm3277 = vcmp.eq.f32.partialorder %v3276, 8.507059e+37
      %v3278 = vand.u32 %v3236, 2147483648
      %v3279 = vor.u32 1.1754944e-38, %v3278
      %v3280 = vsel %vm3277, %v3279, %v3275
      %v3281 = vrcp.pop %v3238
      %v3282 = vmul.f32 %v3238, %v3281
      %v3283 = vsub.f32 1.0, %v3282
      %v3284 = vmul.f32 %v3281, %v3283
      %v3285 = vadd.f32 %v3281, %v3284
      %vm3286 = vweird.f32 %v3238
      %vm3287 = vweird.f32 %v3281
      %vm3288 = vmor %vm3286, %vm3287
      %v3289 = vsel %vm3288, %v3281, %v3285
      %v3290 = vand.u32 2147483647, %v3238
      %vm3291 = vcmp.eq.f32.partialorder %v3290, 8.507059e+37
      %v3292 = vand.u32 %v3238, 2147483648
      %v3293 = vor.u32 1.1754944e-38, %v3292
      %v3294 = vsel %vm3291, %v3293, %v3289
      %v3295 = vmul.f32 %v3224, %v3252
      %v3296 = vmul.f32 %v3226, %v3266
      %v3297 = vmul.f32 %v3228, %v3280
      %v3298 = vmul.f32 %v3230, %v3294
      %3299 = vst [vmem:[%s361] sm:$0xff] %v3295
      %3300 = vst [vmem:[%s361 + $0x8] sm:$0xff] %v3296
      %3301 = vst [vmem:[%s361 + $0x10] sm:$0xff] %v3297
      %3302 = vst [vmem:[%s361 + $0x18] sm:$0xff] %v3298
      %s3303 = smul.u32 4, %s21
      %p3304 = scmp.lt.s32.totalorder %s3303, 7
      %s3305 = scalar_select %p3304, %s3303, 7
      %s3306 = smul.addr %s3305, 8
      %s3307 = scalar_lea.vmem %s10, %s3306
      // Predicated region
      $region65: #{attention_speller.1} parent=59 // pred_check
        %p3308 = pneg %p254
      $region66: #{attention_speller.1} parent=59 // pred_check_branch
        %3310 = sbr.rel (%p3308) target = $region68
      $region67: #{attention_speller.1} parent=59 // pred_region
        %s3311 = smul.u32 4, %s21
      $region68: #{attention_speller.1} parent=59 // pred_fallthru
        _
    $region60: #{attention_speller.1} parent=5 // pred_fallthru
      _
    %p3312 = scmp.le.s32.totalorder 2, %s16
    // Predicated region
    $region69: #{attention_speller.1} parent=5 // pred_check
      %p3313 = pneg %p3312
    $region70: #{attention_speller.1} parent=5 // pred_check_branch
      %3315 = sbr.rel (%p3313) target = $region72
    $region71: #{attention_speller.1} parent=5 // pred_region
      %s3316 = ssub.s32 %s16, 2
      // Predicated region
      $region73: #{attention_speller.1} parent=71 // pred_check
        %p3317 = pneg %p260
      $region74: #{attention_speller.1} parent=71 // pred_check_branch
        %3319 = sbr.rel (%p3317) target = $region76
      $region75: #{attention_speller.1} parent=71 // pred_region
        %s3320 = smul.u32 4, %s22
        %p3321 = scmp.lt.s32.totalorder %s3320, 7
        %s3322 = scalar_select %p3321, %s3320, 7
        %s3323 = smul.addr %s3322, 8
        %s3324 = scalar_lea.vmem %s10, %s3323
      $region76: #{attention_speller.1} parent=71 // pred_fallthru
        _
    $region72: #{attention_speller.1} parent=5 // pred_fallthru
      _
  $region6: #{attention_speller.1} parent=0 // loop_footer
    %s20 = sadd.s32 1, %s16
  $region7: #{attention_speller.1} parent=0 // loop_footer_branch
    %15 = sbr.rel target = $region3
  $region8: #{attention_speller.1} parent=0 // loop_exit
    _

</llo_original>
